<compile_context>
chip_gen: v5e
topology: v5e:2x2
jax: 0.10.0
libtpu: 0.0.40
codegen_flags: <defaults>
</compile_context>

<pallas_src>
import jax
import jax.numpy as jnp
from jax.experimental import pallas as pl
from jax.experimental.pallas import tpu as pltpu

EPS = 1e-5
LANE_C = 128          # channel padding target -> lane-dense stores
STATS_ROWS = 8        # per-program stats block is (8, LANE_C) to satisfy (8,128) tiling


# ----------------------------- Pallas kernels ------------------------------ #

def conv_stats_kernel(p_ref, w_ref, b_ref, o_ref, sum_ref, ssq_ref):
    """One big conv matmul + bias, plus per-program partial BN statistics.

    p_ref:   (TM, K)        im2col patches tile (K = 9 * Cin_padded)
    w_ref:   (K, 128)       folded 3x3 weights, channel-padded to 128 lanes
    b_ref:   (1, 128)       conv bias (padded)
    o_ref:   (TM, 128)      conv output tile (pre-BN), lane-dense
    sum_ref: (8, 128)       row 0 = per-channel sum over this tile, rows 1..7 = 0
    ssq_ref: (8, 128)       row 0 = per-channel sum of squares,      rows 1..7 = 0
    """
    acc = jnp.dot(p_ref[...], w_ref[...], preferred_element_type=jnp.float32)
    acc = acc + b_ref[...]                      # (1,128) broadcasts over rows
    o_ref[...] = acc.astype(o_ref.dtype)

    # Partial (per grid program) BatchNorm training statistics.  Written as
    # disjoint rows so the grid stays "parallel" (no cross-step accumulation).
    s = jnp.sum(acc, axis=0, keepdims=True)
    q = jnp.sum(acc * acc, axis=0, keepdims=True)
    row = jax.lax.broadcasted_iota(jnp.int32, sum_ref.shape, 0)
    sum_ref[...] = jnp.where(row == 0, s, 0.0)
    ssq_ref[...] = jnp.where(row == 0, q, 0.0)


def bn_relu_kernel(y_ref, scale_ref, shift_ref, o_ref):
    """Folded BN affine + ReLU on a lane-dense (TM, 128) tile."""
    o_ref[...] = jnp.maximum(
        y_ref[...] * scale_ref[...] + shift_ref[...], 0.0).astype(o_ref.dtype)


# ------------------------------- wrappers ---------------------------------- #

def _pick_tile(m):
    for t in (256, 512, 128, 64, 8):
        if m % t == 0:
            return t
    return m


def _im2col(x_nhwc):
    """(N, H, W, C) -> (N*H*W, 9*C): 3x3 taps concatenated on the channel axis."""
    N, H, W, C = x_nhwc.shape
    xp = jnp.pad(x_nhwc, ((0, 0), (1, 1), (1, 1), (0, 0)))
    cols = [xp[:, dy:dy + H, dx:dx + W, :] for dy in range(3) for dx in range(3)]
    return jnp.concatenate(cols, axis=-1).reshape(N * H * W, 9 * C)


def _prep_weight(w_oihw, cin_p, cout_p):
    """(Cout, Cin, 3, 3) -> (9*cin_p, cout_p), matching the im2col tap order."""
    cout, cin, _, _ = w_oihw.shape
    wt = jnp.transpose(w_oihw, (2, 3, 1, 0))                     # (3,3,Cin,Cout)
    wt = jnp.pad(wt, ((0, 0), (0, 0), (0, cin_p - cin), (0, cout_p - cout)))
    return wt.reshape(9 * cin_p, cout_p)


def _pad_vec(v, cout_p):
    return jnp.pad(v, (0, cout_p - v.shape[0]))


def _conv_block(patches, w_kp, b_row, tile_m):
    """Conv matmul + bias + partial BN stats.  Grid over M tiles, 'parallel'."""
    M, K = patches.shape
    Cp = w_kp.shape[1]
    G = M // tile_m
    return pl.pallas_call(
        conv_stats_kernel,
        out_shape=(jax.ShapeDtypeStruct((M, Cp), jnp.float32),
                   jax.ShapeDtypeStruct((G * STATS_ROWS, Cp), jnp.float32),
                   jax.ShapeDtypeStruct((G * STATS_ROWS, Cp), jnp.float32)),
        grid=(G,),
        in_specs=[pl.BlockSpec((tile_m, K), lambda i: (i, 0)),
                  pl.BlockSpec((K, Cp), lambda i: (0, 0)),
                  pl.BlockSpec((1, Cp), lambda i: (0, 0))],
        out_specs=(pl.BlockSpec((tile_m, Cp), lambda i: (i, 0)),
                   pl.BlockSpec((STATS_ROWS, Cp), lambda i: (i, 0)),
                   pl.BlockSpec((STATS_ROWS, Cp), lambda i: (i, 0))),
        compiler_params=pltpu.CompilerParams(
            dimension_semantics=("parallel",)),
    )(patches, w_kp, b_row)


def _fold_bn(psum, pssq, gamma_p, beta_p, count):
    """Reduce per-program partial stats and fold into a per-channel affine."""
    s = jnp.sum(psum, axis=0)
    q = jnp.sum(pssq, axis=0)
    mean = s / count
    # TODO(synk): E[x^2]-E[x]^2 can cancel at production scales; Welford/2-pass
    # would be more robust, but is exact enough here and matches train-mode BN.
    var = jnp.maximum(q / count - mean * mean, 0.0)
    scale = gamma_p / jnp.sqrt(var + EPS)
    shift = beta_p - mean * scale
    return scale.reshape(1, -1), shift.reshape(1, -1)


def _bn_relu(y, scale_row, shift_row, tile_m):
    M, Cp = y.shape
    return pl.pallas_call(
        bn_relu_kernel,
        out_shape=jax.ShapeDtypeStruct((M, Cp), jnp.float32),
        grid=(M // tile_m,),
        in_specs=[pl.BlockSpec((tile_m, Cp), lambda i: (i, 0)),
                  pl.BlockSpec((1, Cp), lambda i: (0, 0)),
                  pl.BlockSpec((1, Cp), lambda i: (0, 0))],
        out_specs=pl.BlockSpec((tile_m, Cp), lambda i: (i, 0)),
        compiler_params=pltpu.CompilerParams(
            dimension_semantics=("parallel",)),
    )(y, scale_row, shift_row)


def double_conv_forward(x_nchw, params):
    """Pallas implementation of double_conv.forward (NCHW in, NCHW out)."""
    N, cin, H, W = x_nchw.shape
    cout = params["w1"].shape[0]
    assert cout <= LANE_C
    M = N * H * W
    tm = _pick_tile(M)
    cp = LANE_C

    x = jnp.transpose(x_nchw, (0, 2, 3, 1)).astype(jnp.float32)   # NHWC

    # ---- block 1: conv -> (BN stats) ----
    p1 = _im2col(x)                                               # (M, 9*Cin)
    w1 = _prep_weight(params["w1"], cin, cp)
    b1 = _pad_vec(params["b1"], cp).reshape(1, cp)
    yc1, s1, q1 = _conv_block(p1, w1, b1, tm)
    scale1, shift1 = _fold_bn(s1, q1, _pad_vec(params["g1"], cp),
                              _pad_vec(params["beta1"], cp), float(M))

    # Block-1 BN affine + ReLU: plain JAX elementwise, fused by XLA into the
    # block-2 im2col glue (no dedicated Pallas pass / extra HBM round trip).
    a1 = jnp.maximum(yc1 * scale1 + shift1, 0.0).reshape(N, H, W, cp)

    # ---- block 2: conv -> (BN stats) -> BN+ReLU ----
    p2 = _im2col(a1)                                              # (M, 9*128)
    w2 = _prep_weight(params["w2"], cp, cp)
    b2 = _pad_vec(params["b2"], cp).reshape(1, cp)
    yc2, s2, q2 = _conv_block(p2, w2, b2, tm)
    scale2, shift2 = _fold_bn(s2, q2, _pad_vec(params["g2"], cp),
                              _pad_vec(params["beta2"], cp), float(M))

    y2 = _bn_relu(yc2, scale2, shift2, tm)                        # (M, 128)

    y = y2.reshape(N, H, W, cp)[:, :, :, :cout]
    return jnp.transpose(y, (0, 3, 1, 2))                         # NCHW


# ------------------------- pure-JAX reference ------------------------------ #

def reference_forward(x_nchw, params):
    def conv(x, w, b):
        y = jax.lax.conv_general_dilated(
            x, w, window_strides=(1, 1), padding="SAME",
            dimension_numbers=("NCHW", "OIHW", "NCHW"))
        return y + b[None, :, None, None]

    def bn_relu(y, g, be):
        mean = jnp.mean(y, axis=(0, 2, 3), keepdims=True)
        var = jnp.var(y, axis=(0, 2, 3), keepdims=True)   # biased (train-mode BN)
        yn = (y - mean) / jnp.sqrt(var + EPS)
        yn = yn * g[None, :, None, None] + be[None, :, None, None]
        return jnp.maximum(yn, 0.0)

    y = bn_relu(conv(x_nchw, params["w1"], params["b1"]), params["g1"], params["beta1"])
    y = bn_relu(conv(y, params["w2"], params["b2"]), params["g2"], params["beta2"])
    return y


# --------------------------------- main ------------------------------------ #

def init_params(key, in_ch, out_ch):
    k1, k2, k3, k4 = jax.random.split(key, 4)
    s1 = 1.0 / jnp.sqrt(in_ch * 9.0)
    s2 = 1.0 / jnp.sqrt(out_ch * 9.0)
    return {
        "w1": jax.random.normal(k1, (out_ch, in_ch, 3, 3), jnp.float32) * s1,
        "b1": jax.random.normal(k2, (out_ch,), jnp.float32) * s1,
        "g1": jnp.ones((out_ch,), jnp.float32),
        "beta1": jnp.zeros((out_ch,), jnp.float32),
        "w2": jax.random.normal(k3, (out_ch, out_ch, 3, 3), jnp.float32) * s2,
        "b2": jax.random.normal(k4, (out_ch,), jnp.float32) * s2,
        "g2": jnp.ones((out_ch,), jnp.float32),
        "beta2": jnp.zeros((out_ch,), jnp.float32),
    }


if __name__ == "__main__":
    key = jax.random.PRNGKey(0)
    kx, kp = jax.random.split(key)

    N, in_ch, out_ch, H, W = 2, 4, 8, 16, 16
    x = jax.random.normal(kx, (N, in_ch, H, W), jnp.float32)   # NCHW like PyTorch
    params = init_params(kp, in_ch, out_ch)

    fwd = jax.jit(double_conv_forward)
    out = jax.block_until_ready(fwd(x, params))
    ref = jax.block_until_ready(reference_forward(x, params))

    assert out.shape == (N, out_ch, H, W), out.shape
    max_err = float(jnp.max(jnp.abs(out - ref)))
    assert jnp.allclose(out, ref, atol=2e-4, rtol=2e-4), max_err

    print("KERNEL_OK")
</pallas_src>

<mosaic_0001>
module attributes {stable_mosaic.version = 11 : i64} {
  func.func @conv_stats_kernel(%arg0: i32, %arg1: memref<256x36xf32, #tpu.memory_space<vmem>>, %arg2: memref<36x128xf32, #tpu.memory_space<vmem>>, %arg3: memref<1x128xf32, #tpu.memory_space<vmem>>, %arg4: memref<256x128xf32, #tpu.memory_space<vmem>>, %arg5: memref<8x128xf32, #tpu.memory_space<vmem>>, %arg6: memref<8x128xf32, #tpu.memory_space<vmem>>) attributes {dimension_semantics = [#tpu.dimension_semantics<parallel>], iteration_bounds = array<i64: 2>, scalar_prefetch = 0 : i64, scratch_operands = 0 : i64, tpu.core_type = #tpu.core_type<tc>, window_params = [{transform_indices = @transform_0, window_bounds = array<i64: 256, 36>}, {pipeline_mode = #tpu.pipeline_mode<synchronous>, transform_indices = @transform_1, window_bounds = array<i64: 36, 128>}, {pipeline_mode = #tpu.pipeline_mode<synchronous>, transform_indices = @transform_2, window_bounds = array<i64: 1, 128>}, {transform_indices = @transform_3, window_bounds = array<i64: 256, 128>}, {transform_indices = @transform_4, window_bounds = array<i64: 8, 128>}, {transform_indices = @transform_5, window_bounds = array<i64: 8, 128>}]} {
    %c0 = arith.constant 0 : index
    %c0_0 = arith.constant 0 : index
    %0 = vector.load %arg1[%c0, %c0_0] : memref<256x36xf32, #tpu.memory_space<vmem>>, vector<256x36xf32>
    %c0_1 = arith.constant 0 : index
    %c0_2 = arith.constant 0 : index
    %1 = vector.load %arg2[%c0_1, %c0_2] : memref<36x128xf32, #tpu.memory_space<vmem>>, vector<36x128xf32>
    %cst = arith.constant dense<0.000000e+00> : vector<256x128xf32>
    %2 = tpu.matmul %0, %1, %cst {dimension_numbers = #tpu.dot_dimension_numbers<[1], [0], [0], [1], [0, 0, 1, 1], [], []>} : vector<256x36xf32>, vector<36x128xf32>, vector<256x128xf32> -> vector<256x128xf32>
    %c0_3 = arith.constant 0 : index
    %c0_4 = arith.constant 0 : index
    %3 = vector.load %arg3[%c0_3, %c0_4] : memref<1x128xf32, #tpu.memory_space<vmem>>, vector<1x128xf32>
    %4 = vector.broadcast %3 : vector<1x128xf32> to vector<256x128xf32>
    %5 = arith.addf %2, %4 : vector<256x128xf32>
    %c0_5 = arith.constant 0 : index
    %c0_6 = arith.constant 0 : index
    %6 = vector.load %arg4[%c0_5, %c0_6] : memref<256x128xf32, #tpu.memory_space<vmem>>, vector<256x128xf32>
    tpu.vector_store %arg4[%c0_5, %c0_6], %5 {strides = array<i32>} : memref<256x128xf32, #tpu.memory_space<vmem>>, vector<256x128xf32>,
    %cst_7 = arith.constant dense<0.000000e+00> : vector<128xf32>
    %7 = vector.multi_reduction <add>, %5, %cst_7 [0] : vector<256x128xf32> to vector<128xf32>
    %8 = vector.shape_cast %7 : vector<128xf32> to vector<1x128xf32>
    %9 = arith.mulf %5, %5 : vector<256x128xf32>
    %cst_8 = arith.constant dense<0.000000e+00> : vector<128xf32>
    %10 = vector.multi_reduction <add>, %9, %cst_8 [0] : vector<256x128xf32> to vector<128xf32>
    %11 = vector.shape_cast %10 : vector<128xf32> to vector<1x128xf32>
    %12 = tpu.iota {dimensions = array<i32: 0>} : vector<8x128xi32>
    %c0_i32 = arith.constant 0 : i32
    %13 = vector.broadcast %c0_i32 : i32 to vector<8x128xi32>
    %14 = arith.cmpi eq, %12, %13 : vector<8x128xi32>
    %cst_9 = arith.constant 0.000000e+00 : f32
    %15 = vector.shape_cast %8 : vector<1x128xf32> to vector<1x128xf32>
    %16 = vector.broadcast %15 : vector<1x128xf32> to vector<8x128xf32>
    %17 = vector.broadcast %cst_9 : f32 to vector<8x128xf32>
    %18 = arith.select %14, %16, %17 : vector<8x128xi1>, vector<8x128xf32>
    %c0_10 = arith.constant 0 : index
    %c0_11 = arith.constant 0 : index
    %19 = vector.load %arg5[%c0_10, %c0_11] : memref<8x128xf32, #tpu.memory_space<vmem>>, vector<8x128xf32>
    tpu.vector_store %arg5[%c0_10, %c0_11], %18 {strides = array<i32>} : memref<8x128xf32, #tpu.memory_space<vmem>>, vector<8x128xf32>,
    %c0_i32_12 = arith.constant 0 : i32
    %20 = vector.broadcast %c0_i32_12 : i32 to vector<8x128xi32>
    %21 = arith.cmpi eq, %12, %20 : vector<8x128xi32>
    %cst_13 = arith.constant 0.000000e+00 : f32
    %22 = vector.shape_cast %11 : vector<1x128xf32> to vector<1x128xf32>
    %23 = vector.broadcast %22 : vector<1x128xf32> to vector<8x128xf32>
    %24 = vector.broadcast %cst_13 : f32 to vector<8x128xf32>
    %25 = arith.select %21, %23, %24 : vector<8x128xi1>, vector<8x128xf32>
    %c0_14 = arith.constant 0 : index
    %c0_15 = arith.constant 0 : index
    %26 = vector.load %arg6[%c0_14, %c0_15] : memref<8x128xf32, #tpu.memory_space<vmem>>, vector<8x128xf32>
    tpu.vector_store %arg6[%c0_14, %c0_15], %25 {strides = array<i32>} : memref<8x128xf32, #tpu.memory_space<vmem>>, vector<8x128xf32>,
    return
  }
  func.func @transform_0(%arg0: i32) -> (i32, i32) {
    %c0_i32 = arith.constant 0 : i32
    %c0_i32_0 = arith.constant 0 : i32
    return %arg0, %c0_i32 : i32, i32
  }
  func.func @transform_1(%arg0: i32) -> (i32, i32) {
    %c0_i32 = arith.constant 0 : i32
    %c0_i32_0 = arith.constant 0 : i32
    %c0_i32_1 = arith.constant 0 : i32
    return %c0_i32, %c0_i32_0 : i32, i32
  }
  func.func @transform_2(%arg0: i32) -> (i32, i32) {
    %c0_i32 = arith.constant 0 : i32
    %c0_i32_0 = arith.constant 0 : i32
    %c0_i32_1 = arith.constant 0 : i32
    return %c0_i32, %c0_i32_0 : i32, i32
  }
  func.func @transform_3(%arg0: i32) -> (i32, i32) {
    %c0_i32 = arith.constant 0 : i32
    %c0_i32_0 = arith.constant 0 : i32
    return %arg0, %c0_i32 : i32, i32
  }
  func.func @transform_4(%arg0: i32) -> (i32, i32) {
    %c0_i32 = arith.constant 0 : i32
    %c0_i32_0 = arith.constant 0 : i32
    return %arg0, %c0_i32 : i32, i32
  }
  func.func @transform_5(%arg0: i32) -> (i32, i32) {
    %c0_i32 = arith.constant 0 : i32
    %c0_i32_0 = arith.constant 0 : i32
    return %arg0, %c0_i32 : i32, i32
  }
}

module attributes {stable_mosaic.version = 11 : i64} {
  func.func @conv_stats_kernel(%arg0: i32, %arg1: memref<256x1152xf32, #tpu.memory_space<vmem>>, %arg2: memref<1152x128xf32, #tpu.memory_space<vmem>>, %arg3: memref<1x128xf32, #tpu.memory_space<vmem>>, %arg4: memref<256x128xf32, #tpu.memory_space<vmem>>, %arg5: memref<8x128xf32, #tpu.memory_space<vmem>>, %arg6: memref<8x128xf32, #tpu.memory_space<vmem>>) attributes {dimension_semantics = [#tpu.dimension_semantics<parallel>], iteration_bounds = array<i64: 2>, scalar_prefetch = 0 : i64, scratch_operands = 0 : i64, tpu.core_type = #tpu.core_type<tc>, window_params = [{transform_indices = @transform_0, window_bounds = array<i64: 256, 1152>}, {pipeline_mode = #tpu.pipeline_mode<synchronous>, transform_indices = @transform_1, window_bounds = array<i64: 1152, 128>}, {pipeline_mode = #tpu.pipeline_mode<synchronous>, transform_indices = @transform_2, window_bounds = array<i64: 1, 128>}, {transform_indices = @transform_3, window_bounds = array<i64: 256, 128>}, {transform_indices = @transform_4, window_bounds = array<i64: 8, 128>}, {transform_indices = @transform_5, window_bounds = array<i64: 8, 128>}]} {
    %c0 = arith.constant 0 : index
    %c0_0 = arith.constant 0 : index
    %0 = vector.load %arg1[%c0, %c0_0] : memref<256x1152xf32, #tpu.memory_space<vmem>>, vector<256x1152xf32>
    %c0_1 = arith.constant 0 : index
    %c0_2 = arith.constant 0 : index
    %1 = vector.load %arg2[%c0_1, %c0_2] : memref<1152x128xf32, #tpu.memory_space<vmem>>, vector<1152x128xf32>
    %cst = arith.constant dense<0.000000e+00> : vector<256x128xf32>
    %2 = tpu.matmul %0, %1, %cst {dimension_numbers = #tpu.dot_dimension_numbers<[1], [0], [0], [1], [0, 0, 1, 1], [], []>} : vector<256x1152xf32>, vector<1152x128xf32>, vector<256x128xf32> -> vector<256x128xf32>
    %c0_3 = arith.constant 0 : index
    %c0_4 = arith.constant 0 : index
    %3 = vector.load %arg3[%c0_3, %c0_4] : memref<1x128xf32, #tpu.memory_space<vmem>>, vector<1x128xf32>
    %4 = vector.broadcast %3 : vector<1x128xf32> to vector<256x128xf32>
    %5 = arith.addf %2, %4 : vector<256x128xf32>
    %c0_5 = arith.constant 0 : index
    %c0_6 = arith.constant 0 : index
    %6 = vector.load %arg4[%c0_5, %c0_6] : memref<256x128xf32, #tpu.memory_space<vmem>>, vector<256x128xf32>
    tpu.vector_store %arg4[%c0_5, %c0_6], %5 {strides = array<i32>} : memref<256x128xf32, #tpu.memory_space<vmem>>, vector<256x128xf32>,
    %cst_7 = arith.constant dense<0.000000e+00> : vector<128xf32>
    %7 = vector.multi_reduction <add>, %5, %cst_7 [0] : vector<256x128xf32> to vector<128xf32>
    %8 = vector.shape_cast %7 : vector<128xf32> to vector<1x128xf32>
    %9 = arith.mulf %5, %5 : vector<256x128xf32>
    %cst_8 = arith.constant dense<0.000000e+00> : vector<128xf32>
    %10 = vector.multi_reduction <add>, %9, %cst_8 [0] : vector<256x128xf32> to vector<128xf32>
    %11 = vector.shape_cast %10 : vector<128xf32> to vector<1x128xf32>
    %12 = tpu.iota {dimensions = array<i32: 0>} : vector<8x128xi32>
    %c0_i32 = arith.constant 0 : i32
    %13 = vector.broadcast %c0_i32 : i32 to vector<8x128xi32>
    %14 = arith.cmpi eq, %12, %13 : vector<8x128xi32>
    %cst_9 = arith.constant 0.000000e+00 : f32
    %15 = vector.shape_cast %8 : vector<1x128xf32> to vector<1x128xf32>
    %16 = vector.broadcast %15 : vector<1x128xf32> to vector<8x128xf32>
    %17 = vector.broadcast %cst_9 : f32 to vector<8x128xf32>
    %18 = arith.select %14, %16, %17 : vector<8x128xi1>, vector<8x128xf32>
    %c0_10 = arith.constant 0 : index
    %c0_11 = arith.constant 0 : index
    %19 = vector.load %arg5[%c0_10, %c0_11] : memref<8x128xf32, #tpu.memory_space<vmem>>, vector<8x128xf32>
    tpu.vector_store %arg5[%c0_10, %c0_11], %18 {strides = array<i32>} : memref<8x128xf32, #tpu.memory_space<vmem>>, vector<8x128xf32>,
    %c0_i32_12 = arith.constant 0 : i32
    %20 = vector.broadcast %c0_i32_12 : i32 to vector<8x128xi32>
    %21 = arith.cmpi eq, %12, %20 : vector<8x128xi32>
    %cst_13 = arith.constant 0.000000e+00 : f32
    %22 = vector.shape_cast %11 : vector<1x128xf32> to vector<1x128xf32>
    %23 = vector.broadcast %22 : vector<1x128xf32> to vector<8x128xf32>
    %24 = vector.broadcast %cst_13 : f32 to vector<8x128xf32>
    %25 = arith.select %21, %23, %24 : vector<8x128xi1>, vector<8x128xf32>
    %c0_14 = arith.constant 0 : index
    %c0_15 = arith.constant 0 : index
    %26 = vector.load %arg6[%c0_14, %c0_15] : memref<8x128xf32, #tpu.memory_space<vmem>>, vector<8x128xf32>
    tpu.vector_store %arg6[%c0_14, %c0_15], %25 {strides = array<i32>} : memref<8x128xf32, #tpu.memory_space<vmem>>, vector<8x128xf32>,
    return
  }
  func.func @transform_0(%arg0: i32) -> (i32, i32) {
    %c0_i32 = arith.constant 0 : i32
    %c0_i32_0 = arith.constant 0 : i32
    return %arg0, %c0_i32 : i32, i32
  }
  func.func @transform_1(%arg0: i32) -> (i32, i32) {
    %c0_i32 = arith.constant 0 : i32
    %c0_i32_0 = arith.constant 0 : i32
    %c0_i32_1 = arith.constant 0 : i32
    return %c0_i32, %c0_i32_0 : i32, i32
  }
  func.func @transform_2(%arg0: i32) -> (i32, i32) {
    %c0_i32 = arith.constant 0 : i32
    %c0_i32_0 = arith.constant 0 : i32
    %c0_i32_1 = arith.constant 0 : i32
    return %c0_i32, %c0_i32_0 : i32, i32
  }
  func.func @transform_3(%arg0: i32) -> (i32, i32) {
    %c0_i32 = arith.constant 0 : i32
    %c0_i32_0 = arith.constant 0 : i32
    return %arg0, %c0_i32 : i32, i32
  }
  func.func @transform_4(%arg0: i32) -> (i32, i32) {
    %c0_i32 = arith.constant 0 : i32
    %c0_i32_0 = arith.constant 0 : i32
    return %arg0, %c0_i32 : i32, i32
  }
  func.func @transform_5(%arg0: i32) -> (i32, i32) {
    %c0_i32 = arith.constant 0 : i32
    %c0_i32_0 = arith.constant 0 : i32
    return %arg0, %c0_i32 : i32, i32
  }
}

module attributes {stable_mosaic.version = 11 : i64} {
  func.func @bn_relu_kernel(%arg0: i32, %arg1: memref<256x128xf32, #tpu.memory_space<vmem>>, %arg2: memref<1x128xf32, #tpu.memory_space<vmem>>, %arg3: memref<1x128xf32, #tpu.memory_space<vmem>>, %arg4: memref<256x128xf32, #tpu.memory_space<vmem>>) attributes {dimension_semantics = [#tpu.dimension_semantics<parallel>], iteration_bounds = array<i64: 2>, scalar_prefetch = 0 : i64, scratch_operands = 0 : i64, tpu.core_type = #tpu.core_type<tc>, window_params = [{transform_indices = @transform_0, window_bounds = array<i64: 256, 128>}, {pipeline_mode = #tpu.pipeline_mode<synchronous>, transform_indices = @transform_1, window_bounds = array<i64: 1, 128>}, {pipeline_mode = #tpu.pipeline_mode<synchronous>, transform_indices = @transform_2, window_bounds = array<i64: 1, 128>}, {transform_indices = @transform_3, window_bounds = array<i64: 256, 128>}]} {
    %c0 = arith.constant 0 : index
    %c0_0 = arith.constant 0 : index
    %0 = vector.load %arg1[%c0, %c0_0] : memref<256x128xf32, #tpu.memory_space<vmem>>, vector<256x128xf32>
    %c0_1 = arith.constant 0 : index
    %c0_2 = arith.constant 0 : index
    %1 = vector.load %arg2[%c0_1, %c0_2] : memref<1x128xf32, #tpu.memory_space<vmem>>, vector<1x128xf32>
    %2 = vector.broadcast %1 : vector<1x128xf32> to vector<256x128xf32>
    %3 = arith.mulf %0, %2 : vector<256x128xf32>
    %c0_3 = arith.constant 0 : index
    %c0_4 = arith.constant 0 : index
    %4 = vector.load %arg3[%c0_3, %c0_4] : memref<1x128xf32, #tpu.memory_space<vmem>>, vector<1x128xf32>
    %5 = vector.broadcast %4 : vector<1x128xf32> to vector<256x128xf32>
    %6 = arith.addf %3, %5 : vector<256x128xf32>
    %cst = arith.constant 0.000000e+00 : f32
    %7 = vector.broadcast %cst : f32 to vector<256x128xf32>
    %8 = arith.maximumf %6, %7 : vector<256x128xf32>
    %c0_5 = arith.constant 0 : index
    %c0_6 = arith.constant 0 : index
    %9 = vector.load %arg4[%c0_5, %c0_6] : memref<256x128xf32, #tpu.memory_space<vmem>>, vector<256x128xf32>
    tpu.vector_store %arg4[%c0_5, %c0_6], %8 {strides = array<i32>} : memref<256x128xf32, #tpu.memory_space<vmem>>, vector<256x128xf32>,
    return
  }
  func.func @transform_0(%arg0: i32) -> (i32, i32) {
    %c0_i32 = arith.constant 0 : i32
    %c0_i32_0 = arith.constant 0 : i32
    return %arg0, %c0_i32 : i32, i32
  }
  func.func @transform_1(%arg0: i32) -> (i32, i32) {
    %c0_i32 = arith.constant 0 : i32
    %c0_i32_0 = arith.constant 0 : i32
    %c0_i32_1 = arith.constant 0 : i32
    return %c0_i32, %c0_i32_0 : i32, i32
  }
  func.func @transform_2(%arg0: i32) -> (i32, i32) {
    %c0_i32 = arith.constant 0 : i32
    %c0_i32_0 = arith.constant 0 : i32
    %c0_i32_1 = arith.constant 0 : i32
    return %c0_i32, %c0_i32_0 : i32, i32
  }
  func.func @transform_3(%arg0: i32) -> (i32, i32) {
    %c0_i32 = arith.constant 0 : i32
    %c0_i32_0 = arith.constant 0 : i32
    return %arg0, %c0_i32 : i32, i32
  }
}

</mosaic_0001>

<llo_original>
// kernel: double_conv_forward.3
$region0: #{double_conv_forward.3}
  #allocation0 [shape = 'u32[]', space=smem, size = 0x4, offset = 0x4, fixed_abs, tag = 'smem constant byte address 0x4 - core index']
  #allocation1 [shape = 'u32[72,128]{1,0:T(1,128)}', space=vmem, size = 0x9000, scoped, tag = 'internal scratch']
  %s0 = inlined_call_operand.vmem [shape: f32[512,36], index: 0, kind: input, shape index: {}]
  %s1 = inlined_call_operand.vmem [shape: f32[36,128], index: 1, kind: input, shape index: {}]
  %s2 = inlined_call_operand.vmem [shape: f32[1,128], index: 2, kind: input, shape index: {}]
  %s3 = inlined_call_operand.vmem [shape: f32[512,128], index: 3, kind: output, shape index: {0}]
  %s4 = inlined_call_operand.vmem [shape: f32[16,128], index: 4, kind: output, shape index: {1}]
  %s5 = inlined_call_operand.vmem [shape: f32[16,128], index: 5, kind: output, shape index: {2}]
  %6 = xla_tuple %s3, %s4, %s5
  %s7 = sld [smem:[#allocation0]]
  $region61: #{double_conv_forward.3} parent=0
    _
  %s9 = ssub.s32 1, %s7
  %s10 = scalar_select 0, %s9, %s7
  loop: start=0, step=1, limit=4
  $region2: #{double_conv_forward.3} parent=0 // loop_pre_header
    _
  $region3: #{double_conv_forward.3} parent=0 // loop_header
    %s12 = sphi 0, %s16
    %p13 = scmp.ge.s32.totalorder %s12, 4
    %s22 = sphi 0, %s24
    %s25 = sphi 0, %s22
    %s26 = sphi 0, %s25
    %s42 = sphi 0, %s26
    %s46 = sphi 0, %s46
    %s48 = sphi 0, %s46
    %s49 = sphi 0, %s48
    %s63 = sphi 0, %s49
    %s67 = sphi 0, %s67
    %s69 = sphi 0, %s67
    %s70 = sphi 0, %s69
    %s84 = sphi 0, %s70
    %s90 = sphi 0, %s92
    %s93 = sphi 0, %s90
    %s94 = sphi 0, %s93
    %s110 = sphi 0, %s94
    %s116 = sphi 0, %s118
    %s119 = sphi 0, %s116
    %s120 = sphi 0, %s119
    %s136 = sphi 0, %s120
    %s142 = sphi 0, %s144
    %s145 = sphi 0, %s142
    %s146 = sphi 0, %s145
    %s162 = sphi 0, %s146
  $region4: #{double_conv_forward.3} parent=0 // loop_header_branch
    %15 = sbr.rel (%p13) target = $region8
  $region5: #{double_conv_forward.3} parent=0 // loop_body
    %s17 = ssub.s32 %s12, 1
    %s18 = ssub.s32 %s12, 2
    %s19 = sadd.s32 %s12, 1
    %s20 = ssub.s32 %s12, %s19
    %p21 = scmp.eq.s32.totalorder %s20, 0
    %s23 = sadd.s32 %s22, 1
    %s24 = scalar_select %p21, %s22, %s23
    %p27 = pneg %p21
    %p28 = scmp.eq.s32.totalorder %s12, 1
    %p29 = por %p27, %p28
    %p30 = scmp.ne.s32.totalorder %s22, %s25
    %p31 = scmp.eq.s32.totalorder %s12, 0
    %p32 = por %p30, %p31
    %p33 = scmp.ne.s32.totalorder %s22, %s25
    %p34 = scmp.eq.s32.totalorder %s17, 1
    %p35 = por %p33, %p34
    %p36 = scmp.ne.s32.totalorder %s25, %s26
    %p37 = scmp.eq.s32.totalorder %s17, 0
    %p38 = por %p36, %p37
    %p39 = scmp.ne.s32.totalorder %s25, %s26
    %p40 = scmp.eq.s32.totalorder %s18, 1
    %p41 = por %p39, %p40
    %p43 = scmp.ne.s32.totalorder %s26, %s42
    %p44 = scmp.eq.s32.totalorder %s18, 0
    %p45 = por %p43, %p44
    %s47 = sadd.s32 %s46, 1
    %p50 = scmp.eq.s32.totalorder %s12, 1
    %p51 = scmp.ne.s32.totalorder %s46, %s48
    %p52 = scmp.eq.s32.totalorder %s12, 0
    %p53 = por %p51, %p52
    %p54 = scmp.ne.s32.totalorder %s46, %s48
    %p55 = scmp.eq.s32.totalorder %s17, 1
    %p56 = por %p54, %p55
    %p57 = scmp.ne.s32.totalorder %s48, %s49
    %p58 = scmp.eq.s32.totalorder %s17, 0
    %p59 = por %p57, %p58
    %p60 = scmp.ne.s32.totalorder %s48, %s49
    %p61 = scmp.eq.s32.totalorder %s18, 1
    %p62 = por %p60, %p61
    %p64 = scmp.ne.s32.totalorder %s49, %s63
    %p65 = scmp.eq.s32.totalorder %s18, 0
    %p66 = por %p64, %p65
    %s68 = sadd.s32 %s67, 1
    %p71 = scmp.eq.s32.totalorder %s12, 1
    %p72 = scmp.ne.s32.totalorder %s67, %s69
    %p73 = scmp.eq.s32.totalorder %s12, 0
    %p74 = por %p72, %p73
    %p75 = scmp.ne.s32.totalorder %s67, %s69
    %p76 = scmp.eq.s32.totalorder %s17, 1
    %p77 = por %p75, %p76
    %p78 = scmp.ne.s32.totalorder %s69, %s70
    %p79 = scmp.eq.s32.totalorder %s17, 0
    %p80 = por %p78, %p79
    %p81 = scmp.ne.s32.totalorder %s69, %s70
    %p82 = scmp.eq.s32.totalorder %s18, 1
    %p83 = por %p81, %p82
    %p85 = scmp.ne.s32.totalorder %s70, %s84
    %p86 = scmp.eq.s32.totalorder %s18, 0
    %p87 = por %p85, %p86
    %s88 = ssub.s32 %s12, %s19
    %p89 = scmp.eq.s32.totalorder %s88, 0
    %s91 = sadd.s32 %s90, 1
    %s92 = scalar_select %p89, %s90, %s91
    %p95 = pneg %p89
    %p96 = scmp.eq.s32.totalorder %s12, 1
    %p97 = por %p95, %p96
    %p98 = scmp.ne.s32.totalorder %s90, %s93
    %p99 = scmp.eq.s32.totalorder %s12, 0
    %p100 = por %p98, %p99
    %p101 = scmp.ne.s32.totalorder %s90, %s93
    %p102 = scmp.eq.s32.totalorder %s17, 1
    %p103 = por %p101, %p102
    %p104 = scmp.ne.s32.totalorder %s93, %s94
    %p105 = scmp.eq.s32.totalorder %s17, 0
    %p106 = por %p104, %p105
    %p107 = scmp.ne.s32.totalorder %s93, %s94
    %p108 = scmp.eq.s32.totalorder %s18, 1
    %p109 = por %p107, %p108
    %p111 = scmp.ne.s32.totalorder %s94, %s110
    %p112 = scmp.eq.s32.totalorder %s18, 0
    %p113 = por %p111, %p112
    %s114 = ssub.s32 %s12, %s19
    %p115 = scmp.eq.s32.totalorder %s114, 0
    %s117 = sadd.s32 %s116, 1
    %s118 = scalar_select %p115, %s116, %s117
    %p121 = pneg %p115
    %p122 = scmp.eq.s32.totalorder %s12, 1
    %p123 = por %p121, %p122
    %p124 = scmp.ne.s32.totalorder %s116, %s119
    %p125 = scmp.eq.s32.totalorder %s12, 0
    %p126 = por %p124, %p125
    %p127 = scmp.ne.s32.totalorder %s116, %s119
    %p128 = scmp.eq.s32.totalorder %s17, 1
    %p129 = por %p127, %p128
    %p130 = scmp.ne.s32.totalorder %s119, %s120
    %p131 = scmp.eq.s32.totalorder %s17, 0
    %p132 = por %p130, %p131
    %p133 = scmp.ne.s32.totalorder %s119, %s120
    %p134 = scmp.eq.s32.totalorder %s18, 1
    %p135 = por %p133, %p134
    %p137 = scmp.ne.s32.totalorder %s120, %s136
    %p138 = scmp.eq.s32.totalorder %s18, 0
    %p139 = por %p137, %p138
    %s140 = ssub.s32 %s12, %s19
    %p141 = scmp.eq.s32.totalorder %s140, 0
    %s143 = sadd.s32 %s142, 1
    %s144 = scalar_select %p141, %s142, %s143
    %p147 = pneg %p141
    %p148 = scmp.eq.s32.totalorder %s12, 1
    %p149 = por %p147, %p148
    %p150 = scmp.ne.s32.totalorder %s142, %s145
    %p151 = scmp.eq.s32.totalorder %s12, 0
    %p152 = por %p150, %p151
    %p153 = scmp.ne.s32.totalorder %s142, %s145
    %p154 = scmp.eq.s32.totalorder %s17, 1
    %p155 = por %p153, %p154
    %p156 = scmp.ne.s32.totalorder %s145, %s146
    %p157 = scmp.eq.s32.totalorder %s17, 0
    %p158 = por %p156, %p157
    %p159 = scmp.ne.s32.totalorder %s145, %s146
    %p160 = scmp.eq.s32.totalorder %s18, 1
    %p161 = por %p159, %p160
    %p163 = scmp.ne.s32.totalorder %s146, %s162
    %p164 = scmp.eq.s32.totalorder %s18, 0
    %p165 = por %p163, %p164
    %p166 = scmp.le.s32.totalorder 1, %s12
    %p167 = scmp.lt.s32.totalorder %s12, 3
    %p168 = pnand %p166, %p167
    %p169 = pneg %p168
    // Predicated region
    $region9: #{double_conv_forward.3} parent=5 // pred_check
      _
    $region10: #{double_conv_forward.3} parent=5 // pred_check_branch
      %171 = sbr.rel (%p168) target = $region12
    $region11: #{double_conv_forward.3} parent=5 // pred_region
      %s172 = ssub.s32 %s12, 1
      // Predicated region
      $region13: #{double_conv_forward.3} parent=11 // pred_check
        %p173 = pneg %p59
      $region14: #{double_conv_forward.3} parent=11 // pred_check_branch
        %175 = sbr.rel (%p173) target = $region16
      $region15: #{double_conv_forward.3} parent=11 // pred_region
        _
      $region16: #{double_conv_forward.3} parent=11 // pred_fallthru
        _
      // Predicated region
      $region17: #{double_conv_forward.3} parent=11 // pred_check
        %p176 = pneg %p80
      $region18: #{double_conv_forward.3} parent=11 // pred_check_branch
        %178 = sbr.rel (%p176) target = $region20
      $region19: #{double_conv_forward.3} parent=11 // pred_region
        _
      $region20: #{double_conv_forward.3} parent=11 // pred_fallthru
        _
    $region12: #{double_conv_forward.3} parent=5 // pred_fallthru
      _
    %p179 = scmp.lt.s32.totalorder %s12, 2
    // Predicated region
    $region21: #{double_conv_forward.3} parent=5 // pred_check
      %p180 = pneg %p179
    $region22: #{double_conv_forward.3} parent=5 // pred_check_branch
      %182 = sbr.rel (%p180) target = $region24
    $region23: #{double_conv_forward.3} parent=5 // pred_region
      // Predicated region
      $region25: #{double_conv_forward.3} parent=23 // pred_check
        %p183 = pneg %p32
      $region26: #{double_conv_forward.3} parent=23 // pred_check_branch
        %185 = sbr.rel (%p183) target = $region28
      $region27: #{double_conv_forward.3} parent=23 // pred_region
        %s186 = smul.u32 32, %s12
        %p187 = scmp.lt.s32.totalorder %s186, 63
        %s188 = scalar_select %p187, %s186, 63
        %s189 = smul.addr %s188, 8
        %s190 = scalar_lea.vmem %s0, %s189
        %s191 = smul.u32 32, %s12
      $region28: #{double_conv_forward.3} parent=23 // pred_fallthru
        _
    $region24: #{double_conv_forward.3} parent=5 // pred_fallthru
      _
    %p192 = scmp.le.s32.totalorder 1, %s12
    %p193 = scmp.lt.s32.totalorder %s12, 3
    %p194 = pnand %p192, %p193
    %p195 = pneg %p194
    // Predicated region
    $region29: #{double_conv_forward.3} parent=5 // pred_check
      _
    $region30: #{double_conv_forward.3} parent=5 // pred_check_branch
      %197 = sbr.rel (%p194) target = $region32
    $region31: #{double_conv_forward.3} parent=5 // pred_region
      %s198 = ssub.s32 %s12, 1
      %s199 = smul.u32 32, %s17
      %p200 = scmp.lt.s32.totalorder %s199, 63
      %s201 = scalar_select %p200, %s199, 63
      %s202 = smul.addr %s201, 8
      %s203 = scalar_lea.vmem %s0, %s202
      %p204 = pneg %p38
      %p205 = pneg %p35
      %p206 = pneg %p59
      %p207 = pneg %p56
      %p208 = pneg %p80
      %p209 = pneg %p77
      %p210 = pneg %p106
      %p211 = pneg %p103
      %s212 = smul.u32 32, %s17
      %p213 = scmp.lt.s32.totalorder %s212, 63
      %s214 = scalar_select %p213, %s212, 63
      %s215 = smul.addr %s214, 8
      %s216 = scalar_lea.vmem %s3, %s215
      %p217 = pneg %p132
      %p218 = pneg %p129
      %p219 = scmp.lt.s32.totalorder %s17, 1
      %s220 = scalar_select %p219, %s17, 1
      %s221 = smul.addr %s220, 8
      %s222 = scalar_lea.vmem %s4, %s221
      %p223 = pneg %p158
      %p224 = pneg %p155
      %p225 = scmp.lt.s32.totalorder %s17, 1
      %s226 = scalar_select %p225, %s17, 1
      %s227 = smul.addr %s226, 8
      %s228 = scalar_lea.vmem %s5, %s227
      %s229 = smul.u32 32, %s17
      %p230 = scmp.lt.s32.totalorder %s229, 63
      %s231 = scalar_select %p230, %s229, 63
      %s232 = smul.addr %s231, 8
      %s233 = scalar_lea.vmem %s0, %s232
      %s234 = smul.u32 32, %s17
      %s235 = smul.u32 32, %s17
      %p236 = scmp.lt.s32.totalorder %s235, 63
      %s237 = scalar_select %p236, %s235, 63
      %s238 = smul.addr %s237, 8
      %s239 = scalar_lea.vmem %s3, %s238
      %s240 = smul.u32 32, %s17
      %p241 = scmp.lt.s32.totalorder %s17, 1
      %s242 = scalar_select %p241, %s17, 1
      %s243 = smul.addr %s242, 8
      %s244 = scalar_lea.vmem %s4, %s243
      %p245 = scmp.lt.s32.totalorder %s17, 1
      %s246 = scalar_select %p245, %s17, 1
      %s247 = smul.addr %s246, 8
      %s248 = scalar_lea.vmem %s5, %s247
      %v249 = vld [vmem:[%s233] sm:$0xff]
      %v250 = vld [vmem:[%s233 + $0x8] sm:$0xff]
      %v251 = vld [vmem:[%s233 + $0x10] sm:$0xff]
      %v252 = vld [vmem:[%s233 + $0x18] sm:$0xff]
      %v253 = vld [vmem:[%s233 + $0x20] sm:$0xff]
      %v254 = vld [vmem:[%s233 + $0x28] sm:$0xff]
      %v255 = vld [vmem:[%s233 + $0x30] sm:$0xff]
      %v256 = vld [vmem:[%s233 + $0x38] sm:$0xff]
      %v257 = vld [vmem:[%s233 + $0x40] sm:$0xff]
      %v258 = vld [vmem:[%s233 + $0x48] sm:$0xff]
      %v259 = vld [vmem:[%s233 + $0x50] sm:$0xff]
      %v260 = vld [vmem:[%s233 + $0x58] sm:$0xff]
      %v261 = vld [vmem:[%s233 + $0x60] sm:$0xff]
      %v262 = vld [vmem:[%s233 + $0x68] sm:$0xff]
      %v263 = vld [vmem:[%s233 + $0x70] sm:$0xff]
      %v264 = vld [vmem:[%s233 + $0x78] sm:$0xff]
      %v265 = vld [vmem:[%s233 + $0x80] sm:$0xff]
      %v266 = vld [vmem:[%s233 + $0x88] sm:$0xff]
      %v267 = vld [vmem:[%s233 + $0x90] sm:$0xff]
      %v268 = vld [vmem:[%s233 + $0x98] sm:$0xff]
      %v269 = vld [vmem:[%s233 + $0xa0] sm:$0xff]
      %v270 = vld [vmem:[%s233 + $0xa8] sm:$0xff]
      %v271 = vld [vmem:[%s233 + $0xb0] sm:$0xff]
      %v272 = vld [vmem:[%s233 + $0xb8] sm:$0xff]
      %v273 = vld [vmem:[%s233 + $0xc0] sm:$0xff]
      %v274 = vld [vmem:[%s233 + $0xc8] sm:$0xff]
      %v275 = vld [vmem:[%s233 + $0xd0] sm:$0xff]
      %v276 = vld [vmem:[%s233 + $0xd8] sm:$0xff]
      %v277 = vld [vmem:[%s233 + $0xe0] sm:$0xff]
      %v278 = vld [vmem:[%s233 + $0xe8] sm:$0xff]
      %v279 = vld [vmem:[%s233 + $0xf0] sm:$0xff]
      %v280 = vld [vmem:[%s233 + $0xf8] sm:$0xff]
      %v281 = vld [vmem:[%s1] sm:$0xff]
      %v282 = vld [vmem:[%s1 + $0x8] sm:$0xff]
      %v283 = vld [vmem:[%s1 + $0x10] sm:$0xff]
      %v284 = vld [vmem:[%s1 + $0x18] sm:$0xff]
      %v285 = vld [vmem:[%s1 + $0x20] sm:$0xf]
      %v286 = vld [vmem:[%s2] sm:$0x1]
      %v288 = vperm.slane %v286, 0
      %vm290 = vcmask 293888
      %v292 = vsel %vm290, %v249, 0
      %v295 = vsel %vm290, %v250, 0
      %v298 = vsel %vm290, %v251, 0
      %v301 = vsel %vm290, %v252, 0
      %v304 = vsel %vm290, %v253, 0
      %v307 = vsel %vm290, %v254, 0
      %v310 = vsel %vm290, %v255, 0
      %v313 = vsel %vm290, %v256, 0
      %v316 = vsel %vm290, %v257, 0
      %v319 = vsel %vm290, %v258, 0
      %v322 = vsel %vm290, %v259, 0
      %v325 = vsel %vm290, %v260, 0
      %v328 = vsel %vm290, %v261, 0
      %v331 = vsel %vm290, %v262, 0
      %v334 = vsel %vm290, %v263, 0
      %v337 = vsel %vm290, %v264, 0
      %v340 = vsel %vm290, %v265, 0
      %v343 = vsel %vm290, %v266, 0
      %v346 = vsel %vm290, %v267, 0
      %v349 = vsel %vm290, %v268, 0
      %v352 = vsel %vm290, %v269, 0
      %v355 = vsel %vm290, %v270, 0
      %v358 = vsel %vm290, %v271, 0
      %v361 = vsel %vm290, %v272, 0
      %v364 = vsel %vm290, %v273, 0
      %v367 = vsel %vm290, %v274, 0
      %v370 = vsel %vm290, %v275, 0
      %v373 = vsel %vm290, %v276, 0
      %v376 = vsel %vm290, %v277, 0
      %v379 = vsel %vm290, %v278, 0
      %v382 = vsel %vm290, %v279, 0
      %v385 = vsel %vm290, %v280, 0
      %vm387 = vcmask 1043456
      %v389 = vsel %vm387, %v285, 0
      %391 = vmatpush.msra.mxu0 0.0
      %392 = vmatpush.msra.mxu0 0.0
      %393 = vmatpush.msra.mxu0 0.0
      %394 = vmatpush.msra.mxu0 0.0
      %395 = vmatpush.msra.mxu0 0.0
      %396 = vmatpush.msra.mxu0 0.0
      %397 = vmatpush.msra.mxu0 0.0
      %398 = vmatpush.msra.mxu0 0.0
      %399 = vmatpush.msra.mxu0 0.0
      %400 = vmatpush.msra.mxu0 0.0
      %401 = vmatpush.msra.mxu0 0.0
      %402 = vmatpush.msra.mxu0 %v389
      %403 = vmatpush.msra.mxu0 %v284
      %404 = vmatpush.msra.mxu0 %v283
      %405 = vmatpush.msra.mxu0 %v282
      %406 = vmatpush.msra.mxu0 %v281
      %407 = vmatmul.f32.gmra.mxu0 %v292
      %v408 = vpop.f32.mrf.mxu0
      %v409 = vadd.f32 %v288, %v408
      %410 = vmatmul.f32.gmra.mxu0 %v295
      %v411 = vpop.f32.mrf.mxu0
      %v412 = vadd.f32 %v288, %v411
      %413 = vmatmul.f32.gmra.mxu0 %v298
      %v414 = vpop.f32.mrf.mxu0
      %v415 = vadd.f32 %v288, %v414
      %416 = vmatmul.f32.gmra.mxu0 %v301
      %v417 = vpop.f32.mrf.mxu0
      %v418 = vadd.f32 %v288, %v417
      %419 = vmatmul.f32.gmra.mxu0 %v304
      %v420 = vpop.f32.mrf.mxu0
      %v421 = vadd.f32 %v288, %v420
      %422 = vmatmul.f32.gmra.mxu0 %v307
      %v423 = vpop.f32.mrf.mxu0
      %v424 = vadd.f32 %v288, %v423
      %425 = vmatmul.f32.gmra.mxu0 %v310
      %v426 = vpop.f32.mrf.mxu0
      %v427 = vadd.f32 %v288, %v426
      %428 = vmatmul.f32.gmra.mxu0 %v313
      %v429 = vpop.f32.mrf.mxu0
      %v430 = vadd.f32 %v288, %v429
      %431 = vmatmul.f32.gmra.mxu0 %v316
      %v432 = vpop.f32.mrf.mxu0
      %v433 = vadd.f32 %v288, %v432
      %434 = vmatmul.f32.gmra.mxu0 %v319
      %v435 = vpop.f32.mrf.mxu0
      %v436 = vadd.f32 %v288, %v435
      %437 = vmatmul.f32.gmra.mxu0 %v322
      %v438 = vpop.f32.mrf.mxu0
      %v439 = vadd.f32 %v288, %v438
      %440 = vmatmul.f32.gmra.mxu0 %v325
      %v441 = vpop.f32.mrf.mxu0
      %v442 = vadd.f32 %v288, %v441
      %443 = vmatmul.f32.gmra.mxu0 %v328
      %v444 = vpop.f32.mrf.mxu0
      %v445 = vadd.f32 %v288, %v444
      %446 = vmatmul.f32.gmra.mxu0 %v331
      %v447 = vpop.f32.mrf.mxu0
      %v448 = vadd.f32 %v288, %v447
      %449 = vmatmul.f32.gmra.mxu0 %v334
      %v450 = vpop.f32.mrf.mxu0
      %v451 = vadd.f32 %v288, %v450
      %452 = vmatmul.f32.gmra.mxu0 %v337
      %v453 = vpop.f32.mrf.mxu0
      %v454 = vadd.f32 %v288, %v453
      %455 = vmatmul.f32.gmra.mxu0 %v340
      %v456 = vpop.f32.mrf.mxu0
      %v457 = vadd.f32 %v288, %v456
      %458 = vmatmul.f32.gmra.mxu0 %v343
      %v459 = vpop.f32.mrf.mxu0
      %v460 = vadd.f32 %v288, %v459
      %461 = vmatmul.f32.gmra.mxu0 %v346
      %v462 = vpop.f32.mrf.mxu0
      %v463 = vadd.f32 %v288, %v462
      %464 = vmatmul.f32.gmra.mxu0 %v349
      %v465 = vpop.f32.mrf.mxu0
      %v466 = vadd.f32 %v288, %v465
      %467 = vmatmul.f32.gmra.mxu0 %v352
      %v468 = vpop.f32.mrf.mxu0
      %v469 = vadd.f32 %v288, %v468
      %470 = vmatmul.f32.gmra.mxu0 %v355
      %v471 = vpop.f32.mrf.mxu0
      %v472 = vadd.f32 %v288, %v471
      %473 = vmatmul.f32.gmra.mxu0 %v358
      %v474 = vpop.f32.mrf.mxu0
      %v475 = vadd.f32 %v288, %v474
      %476 = vmatmul.f32.gmra.mxu0 %v361
      %v477 = vpop.f32.mrf.mxu0
      %v478 = vadd.f32 %v288, %v477
      %479 = vmatmul.f32.gmra.mxu0 %v364
      %v480 = vpop.f32.mrf.mxu0
      %v481 = vadd.f32 %v288, %v480
      %482 = vmatmul.f32.gmra.mxu0 %v367
      %v483 = vpop.f32.mrf.mxu0
      %v484 = vadd.f32 %v288, %v483
      %485 = vmatmul.f32.gmra.mxu0 %v370
      %v486 = vpop.f32.mrf.mxu0
      %v487 = vadd.f32 %v288, %v486
      %488 = vmatmul.f32.gmra.mxu0 %v373
      %v489 = vpop.f32.mrf.mxu0
      %v490 = vadd.f32 %v288, %v489
      %491 = vmatmul.f32.gmra.mxu0 %v376
      %v492 = vpop.f32.mrf.mxu0
      %v493 = vadd.f32 %v288, %v492
      %494 = vmatmul.f32.gmra.mxu0 %v379
      %v495 = vpop.f32.mrf.mxu0
      %v496 = vadd.f32 %v288, %v495
      %497 = vmatmul.f32.gmra.mxu0 %v382
      %v498 = vpop.f32.mrf.mxu0
      %v499 = vadd.f32 %v288, %v498
      %500 = vmatmul.f32.gmra.mxu0 %v385
      %v501 = vpop.f32.mrf.mxu0
      %v502 = vadd.f32 %v288, %v501
      %503 = vdwg.mxu0
      %504 = vst [vmem:[%s239] sm:$0xff] %v409
      %505 = vst [vmem:[%s239 + $0x8] sm:$0xff] %v412
      %506 = vst [vmem:[%s239 + $0x10] sm:$0xff] %v415
      %507 = vst [vmem:[%s239 + $0x18] sm:$0xff] %v418
      %508 = vst [vmem:[%s239 + $0x20] sm:$0xff] %v421
      %509 = vst [vmem:[%s239 + $0x28] sm:$0xff] %v424
      %510 = vst [vmem:[%s239 + $0x30] sm:$0xff] %v427
      %511 = vst [vmem:[%s239 + $0x38] sm:$0xff] %v430
      %512 = vst [vmem:[%s239 + $0x40] sm:$0xff] %v433
      %513 = vst [vmem:[%s239 + $0x48] sm:$0xff] %v436
      %514 = vst [vmem:[%s239 + $0x50] sm:$0xff] %v439
      %515 = vst [vmem:[%s239 + $0x58] sm:$0xff] %v442
      %516 = vst [vmem:[%s239 + $0x60] sm:$0xff] %v445
      %517 = vst [vmem:[%s239 + $0x68] sm:$0xff] %v448
      %518 = vst [vmem:[%s239 + $0x70] sm:$0xff] %v451
      %519 = vst [vmem:[%s239 + $0x78] sm:$0xff] %v454
      %520 = vst [vmem:[%s239 + $0x80] sm:$0xff] %v457
      %521 = vst [vmem:[%s239 + $0x88] sm:$0xff] %v460
      %522 = vst [vmem:[%s239 + $0x90] sm:$0xff] %v463
      %523 = vst [vmem:[%s239 + $0x98] sm:$0xff] %v466
      %524 = vst [vmem:[%s239 + $0xa0] sm:$0xff] %v469
      %525 = vst [vmem:[%s239 + $0xa8] sm:$0xff] %v472
      %526 = vst [vmem:[%s239 + $0xb0] sm:$0xff] %v475
      %527 = vst [vmem:[%s239 + $0xb8] sm:$0xff] %v478
      %528 = vst [vmem:[%s239 + $0xc0] sm:$0xff] %v481
      %529 = vst [vmem:[%s239 + $0xc8] sm:$0xff] %v484
      %530 = vst [vmem:[%s239 + $0xd0] sm:$0xff] %v487
      %531 = vst [vmem:[%s239 + $0xd8] sm:$0xff] %v490
      %532 = vst [vmem:[%s239 + $0xe0] sm:$0xff] %v493
      %533 = vst [vmem:[%s239 + $0xe8] sm:$0xff] %v496
      %534 = vst [vmem:[%s239 + $0xf0] sm:$0xff] %v499
      %535 = vst [vmem:[%s239 + $0xf8] sm:$0xff] %v502
      %v536 = vadd.f32 %v409, %v412
      %v537 = vadd.f32 %v536, %v415
      %v538 = vadd.f32 %v537, %v418
      %v539 = vadd.f32 %v538, %v421
      %v540 = vadd.f32 %v539, %v424
      %v541 = vadd.f32 %v540, %v427
      %v542 = vadd.f32 %v541, %v430
      %v543 = vadd.f32 %v542, %v433
      %v544 = vadd.f32 %v543, %v436
      %v545 = vadd.f32 %v544, %v439
      %v546 = vadd.f32 %v545, %v442
      %v547 = vadd.f32 %v546, %v445
      %v548 = vadd.f32 %v547, %v448
      %v549 = vadd.f32 %v548, %v451
      %v550 = vadd.f32 %v549, %v454
      %v551 = vadd.f32 %v550, %v457
      %v552 = vadd.f32 %v551, %v460
      %v553 = vadd.f32 %v552, %v463
      %v554 = vadd.f32 %v553, %v466
      %v555 = vadd.f32 %v554, %v469
      %v556 = vadd.f32 %v555, %v472
      %v557 = vadd.f32 %v556, %v475
      %v558 = vadd.f32 %v557, %v478
      %v559 = vadd.f32 %v558, %v481
      %v560 = vadd.f32 %v559, %v484
      %v561 = vadd.f32 %v560, %v487
      %v562 = vadd.f32 %v561, %v490
      %v563 = vadd.f32 %v562, %v493
      %v564 = vadd.f32 %v563, %v496
      %v565 = vadd.f32 %v564, %v499
      %v566 = vadd.f32 %v565, %v502
      %v567 = vrot.slane %v566, 4
      %v568 = vadd.f32 %v566, %v567
      %v569 = vrot.slane %v568, 2
      %v570 = vadd.f32 %v568, %v569
      %v571 = vrot.slane %v570, 1
      %v572 = vadd.f32 %v570, %v571
      %v573 = vmul.f32 %v409, %v409
      %v574 = vmul.f32 %v412, %v412
      %v575 = vmul.f32 %v415, %v415
      %v576 = vmul.f32 %v418, %v418
      %v577 = vmul.f32 %v421, %v421
      %v578 = vmul.f32 %v424, %v424
      %v579 = vmul.f32 %v427, %v427
      %v580 = vmul.f32 %v430, %v430
      %v581 = vmul.f32 %v433, %v433
      %v582 = vmul.f32 %v436, %v436
      %v583 = vmul.f32 %v439, %v439
      %v584 = vmul.f32 %v442, %v442
      %v585 = vmul.f32 %v445, %v445
      %v586 = vmul.f32 %v448, %v448
      %v587 = vmul.f32 %v451, %v451
      %v588 = vmul.f32 %v454, %v454
      %v589 = vmul.f32 %v457, %v457
      %v590 = vmul.f32 %v460, %v460
      %v591 = vmul.f32 %v463, %v463
      %v592 = vmul.f32 %v466, %v466
      %v593 = vmul.f32 %v469, %v469
      %v594 = vmul.f32 %v472, %v472
      %v595 = vmul.f32 %v475, %v475
      %v596 = vmul.f32 %v478, %v478
      %v597 = vmul.f32 %v481, %v481
      %v598 = vmul.f32 %v484, %v484
      %v599 = vmul.f32 %v487, %v487
      %v600 = vmul.f32 %v490, %v490
      %v601 = vmul.f32 %v493, %v493
      %v602 = vmul.f32 %v496, %v496
      %v603 = vmul.f32 %v499, %v499
      %v604 = vmul.f32 %v502, %v502
      %v605 = vadd.f32 %v573, %v574
      %v606 = vadd.f32 %v605, %v575
      %v607 = vadd.f32 %v606, %v576
      %v608 = vadd.f32 %v607, %v577
      %v609 = vadd.f32 %v608, %v578
      %v610 = vadd.f32 %v609, %v579
      %v611 = vadd.f32 %v610, %v580
      %v612 = vadd.f32 %v611, %v581
      %v613 = vadd.f32 %v612, %v582
      %v614 = vadd.f32 %v613, %v583
      %v615 = vadd.f32 %v614, %v584
      %v616 = vadd.f32 %v615, %v585
      %v617 = vadd.f32 %v616, %v586
      %v618 = vadd.f32 %v617, %v587
      %v619 = vadd.f32 %v618, %v588
      %v620 = vadd.f32 %v619, %v589
      %v621 = vadd.f32 %v620, %v590
      %v622 = vadd.f32 %v621, %v591
      %v623 = vadd.f32 %v622, %v592
      %v624 = vadd.f32 %v623, %v593
      %v625 = vadd.f32 %v624, %v594
      %v626 = vadd.f32 %v625, %v595
      %v627 = vadd.f32 %v626, %v596
      %v628 = vadd.f32 %v627, %v597
      %v629 = vadd.f32 %v628, %v598
      %v630 = vadd.f32 %v629, %v599
      %v631 = vadd.f32 %v630, %v600
      %v632 = vadd.f32 %v631, %v601
      %v633 = vadd.f32 %v632, %v602
      %v634 = vadd.f32 %v633, %v603
      %v635 = vadd.f32 %v634, %v604
      %v636 = vrot.slane %v635, 4
      %v637 = vadd.f32 %v635, %v636
      %v638 = vrot.slane %v637, 2
      %v639 = vadd.f32 %v637, %v638
      %v640 = vrot.slane %v639, 1
      %v641 = vadd.f32 %v639, %v640
      %v642 = vlaneseq
      %v643 = vshrl.u32 %v642, 7
      %vm644 = vcmp.eq.s32.totalorder %v643, 0
      %v645 = vsel %vm644, %v572, 0.0
      %646 = vst [vmem:[%s244] sm:$0xff] %v645
      %v647 = vsel %vm644, %v641, 0.0
      %648 = vst [vmem:[%s248] sm:$0xff] %v647
      %s649 = smul.u32 32, %s17
      %p650 = scmp.lt.s32.totalorder %s649, 63
      %s651 = scalar_select %p650, %s649, 63
      %s652 = smul.addr %s651, 8
      %s653 = scalar_lea.vmem %s3, %s652
      %p654 = scmp.lt.s32.totalorder %s17, 1
      %s655 = scalar_select %p654, %s17, 1
      %s656 = smul.addr %s655, 8
      %s657 = scalar_lea.vmem %s4, %s656
      %p658 = scmp.lt.s32.totalorder %s17, 1
      %s659 = scalar_select %p658, %s17, 1
      %s660 = smul.addr %s659, 8
      %s661 = scalar_lea.vmem %s5, %s660
      // Predicated region
      $region33: #{double_conv_forward.3} parent=31 // pred_check
        %p662 = pneg %p103
      $region34: #{double_conv_forward.3} parent=31 // pred_check_branch
        %664 = sbr.rel (%p662) target = $region36
      $region35: #{double_conv_forward.3} parent=31 // pred_region
        %s665 = smul.u32 32, %s17
      $region36: #{double_conv_forward.3} parent=31 // pred_fallthru
        _
      // Predicated region
      $region37: #{double_conv_forward.3} parent=31 // pred_check
        %p666 = pneg %p129
      $region38: #{double_conv_forward.3} parent=31 // pred_check_branch
        %668 = sbr.rel (%p666) target = $region40
      $region39: #{double_conv_forward.3} parent=31 // pred_region
        _
      $region40: #{double_conv_forward.3} parent=31 // pred_fallthru
        _
      // Predicated region
      $region41: #{double_conv_forward.3} parent=31 // pred_check
        %p669 = pneg %p155
      $region42: #{double_conv_forward.3} parent=31 // pred_check_branch
        %671 = sbr.rel (%p669) target = $region44
      $region43: #{double_conv_forward.3} parent=31 // pred_region
        _
      $region44: #{double_conv_forward.3} parent=31 // pred_fallthru
        _
    $region32: #{double_conv_forward.3} parent=5 // pred_fallthru
      _
    %p672 = scmp.le.s32.totalorder 2, %s12
    // Predicated region
    $region45: #{double_conv_forward.3} parent=5 // pred_check
      %p673 = pneg %p672
    $region46: #{double_conv_forward.3} parent=5 // pred_check_branch
      %675 = sbr.rel (%p673) target = $region48
    $region47: #{double_conv_forward.3} parent=5 // pred_region
      %s676 = ssub.s32 %s12, 2
      // Predicated region
      $region49: #{double_conv_forward.3} parent=47 // pred_check
        %p677 = pneg %p109
      $region50: #{double_conv_forward.3} parent=47 // pred_check_branch
        %679 = sbr.rel (%p677) target = $region52
      $region51: #{double_conv_forward.3} parent=47 // pred_region
        %s680 = smul.u32 32, %s18
        %p681 = scmp.lt.s32.totalorder %s680, 63
        %s682 = scalar_select %p681, %s680, 63
        %s683 = smul.addr %s682, 8
        %s684 = scalar_lea.vmem %s3, %s683
      $region52: #{double_conv_forward.3} parent=47 // pred_fallthru
        _
      // Predicated region
      $region53: #{double_conv_forward.3} parent=47 // pred_check
        %p685 = pneg %p135
      $region54: #{double_conv_forward.3} parent=47 // pred_check_branch
        %687 = sbr.rel (%p685) target = $region56
      $region55: #{double_conv_forward.3} parent=47 // pred_region
        %p688 = scmp.lt.s32.totalorder %s18, 1
        %s689 = scalar_select %p688, %s18, 1
        %s690 = smul.addr %s689, 8
        %s691 = scalar_lea.vmem %s4, %s690
      $region56: #{double_conv_forward.3} parent=47 // pred_fallthru
        _
      // Predicated region
      $region57: #{double_conv_forward.3} parent=47 // pred_check
        %p692 = pneg %p161
      $region58: #{double_conv_forward.3} parent=47 // pred_check_branch
        %694 = sbr.rel (%p692) target = $region60
      $region59: #{double_conv_forward.3} parent=47 // pred_region
        %p695 = scmp.lt.s32.totalorder %s18, 1
        %s696 = scalar_select %p695, %s18, 1
        %s697 = smul.addr %s696, 8
        %s698 = scalar_lea.vmem %s5, %s697
      $region60: #{double_conv_forward.3} parent=47 // pred_fallthru
        _
    $region48: #{double_conv_forward.3} parent=5 // pred_fallthru
      _
  $region6: #{double_conv_forward.3} parent=0 // loop_footer
    %s16 = sadd.s32 1, %s12
  $region7: #{double_conv_forward.3} parent=0 // loop_footer_branch
    %11 = sbr.rel target = $region3
  $region8: #{double_conv_forward.3} parent=0 // loop_exit
    _

// kernel: double_conv_forward.5
$region0: #{double_conv_forward.5}
  #allocation0 [shape = 'u32[]', space=smem, size = 0x4, offset = 0x4, fixed_abs, tag = 'smem constant byte address 0x4 - core index']
  #allocation1 [shape = 'u32[72,128]{1,0:T(1,128)}', space=vmem, size = 0x9000, scoped, tag = 'internal scratch']
  %s0 = inlined_call_operand.vmem [shape: f32[512,128], index: 0, kind: input, shape index: {}]
  %s1 = inlined_call_operand.vmem [shape: f32[1,128], index: 1, kind: input, shape index: {}]
  %s2 = inlined_call_operand.vmem [shape: f32[1,128], index: 2, kind: input, shape index: {}]
  %s3 = inlined_call_operand.vmem [shape: f32[512,128], index: 3, kind: output, shape index: {}]
  %s4 = sld [smem:[#allocation0]]
  $region45: #{double_conv_forward.5} parent=0
    _
  %s6 = ssub.s32 1, %s4
  %s7 = scalar_select 0, %s6, %s4
  loop: start=0, step=1, limit=4
  $region2: #{double_conv_forward.5} parent=0 // loop_pre_header
    _
  $region3: #{double_conv_forward.5} parent=0 // loop_header
    %s9 = sphi 0, %s13
    %p10 = scmp.ge.s32.totalorder %s9, 4
    %s19 = sphi 0, %s21
    %s22 = sphi 0, %s19
    %s23 = sphi 0, %s22
    %s39 = sphi 0, %s23
    %s43 = sphi 0, %s43
    %s45 = sphi 0, %s43
    %s46 = sphi 0, %s45
    %s60 = sphi 0, %s46
    %s64 = sphi 0, %s64
    %s66 = sphi 0, %s64
    %s67 = sphi 0, %s66
    %s81 = sphi 0, %s67
    %s87 = sphi 0, %s89
    %s90 = sphi 0, %s87
    %s91 = sphi 0, %s90
    %s107 = sphi 0, %s91
  $region4: #{double_conv_forward.5} parent=0 // loop_header_branch
    %12 = sbr.rel (%p10) target = $region8
  $region5: #{double_conv_forward.5} parent=0 // loop_body
    %s14 = ssub.s32 %s9, 1
    %s15 = ssub.s32 %s9, 2
    %s16 = sadd.s32 %s9, 1
    %s17 = ssub.s32 %s9, %s16
    %p18 = scmp.eq.s32.totalorder %s17, 0
    %s20 = sadd.s32 %s19, 1
    %s21 = scalar_select %p18, %s19, %s20
    %p24 = pneg %p18
    %p25 = scmp.eq.s32.totalorder %s9, 1
    %p26 = por %p24, %p25
    %p27 = scmp.ne.s32.totalorder %s19, %s22
    %p28 = scmp.eq.s32.totalorder %s9, 0
    %p29 = por %p27, %p28
    %p30 = scmp.ne.s32.totalorder %s19, %s22
    %p31 = scmp.eq.s32.totalorder %s14, 1
    %p32 = por %p30, %p31
    %p33 = scmp.ne.s32.totalorder %s22, %s23
    %p34 = scmp.eq.s32.totalorder %s14, 0
    %p35 = por %p33, %p34
    %p36 = scmp.ne.s32.totalorder %s22, %s23
    %p37 = scmp.eq.s32.totalorder %s15, 1
    %p38 = por %p36, %p37
    %p40 = scmp.ne.s32.totalorder %s23, %s39
    %p41 = scmp.eq.s32.totalorder %s15, 0
    %p42 = por %p40, %p41
    %s44 = sadd.s32 %s43, 1
    %p47 = scmp.eq.s32.totalorder %s9, 1
    %p48 = scmp.ne.s32.totalorder %s43, %s45
    %p49 = scmp.eq.s32.totalorder %s9, 0
    %p50 = por %p48, %p49
    %p51 = scmp.ne.s32.totalorder %s43, %s45
    %p52 = scmp.eq.s32.totalorder %s14, 1
    %p53 = por %p51, %p52
    %p54 = scmp.ne.s32.totalorder %s45, %s46
    %p55 = scmp.eq.s32.totalorder %s14, 0
    %p56 = por %p54, %p55
    %p57 = scmp.ne.s32.totalorder %s45, %s46
    %p58 = scmp.eq.s32.totalorder %s15, 1
    %p59 = por %p57, %p58
    %p61 = scmp.ne.s32.totalorder %s46, %s60
    %p62 = scmp.eq.s32.totalorder %s15, 0
    %p63 = por %p61, %p62
    %s65 = sadd.s32 %s64, 1
    %p68 = scmp.eq.s32.totalorder %s9, 1
    %p69 = scmp.ne.s32.totalorder %s64, %s66
    %p70 = scmp.eq.s32.totalorder %s9, 0
    %p71 = por %p69, %p70
    %p72 = scmp.ne.s32.totalorder %s64, %s66
    %p73 = scmp.eq.s32.totalorder %s14, 1
    %p74 = por %p72, %p73
    %p75 = scmp.ne.s32.totalorder %s66, %s67
    %p76 = scmp.eq.s32.totalorder %s14, 0
    %p77 = por %p75, %p76
    %p78 = scmp.ne.s32.totalorder %s66, %s67
    %p79 = scmp.eq.s32.totalorder %s15, 1
    %p80 = por %p78, %p79
    %p82 = scmp.ne.s32.totalorder %s67, %s81
    %p83 = scmp.eq.s32.totalorder %s15, 0
    %p84 = por %p82, %p83
    %s85 = ssub.s32 %s9, %s16
    %p86 = scmp.eq.s32.totalorder %s85, 0
    %s88 = sadd.s32 %s87, 1
    %s89 = scalar_select %p86, %s87, %s88
    %p92 = pneg %p86
    %p93 = scmp.eq.s32.totalorder %s9, 1
    %p94 = por %p92, %p93
    %p95 = scmp.ne.s32.totalorder %s87, %s90
    %p96 = scmp.eq.s32.totalorder %s9, 0
    %p97 = por %p95, %p96
    %p98 = scmp.ne.s32.totalorder %s87, %s90
    %p99 = scmp.eq.s32.totalorder %s14, 1
    %p100 = por %p98, %p99
    %p101 = scmp.ne.s32.totalorder %s90, %s91
    %p102 = scmp.eq.s32.totalorder %s14, 0
    %p103 = por %p101, %p102
    %p104 = scmp.ne.s32.totalorder %s90, %s91
    %p105 = scmp.eq.s32.totalorder %s15, 1
    %p106 = por %p104, %p105
    %p108 = scmp.ne.s32.totalorder %s91, %s107
    %p109 = scmp.eq.s32.totalorder %s15, 0
    %p110 = por %p108, %p109
    %p111 = scmp.le.s32.totalorder 1, %s9
    %p112 = scmp.lt.s32.totalorder %s9, 3
    %p113 = pnand %p111, %p112
    %p114 = pneg %p113
    // Predicated region
    $region9: #{double_conv_forward.5} parent=5 // pred_check
      _
    $region10: #{double_conv_forward.5} parent=5 // pred_check_branch
      %116 = sbr.rel (%p113) target = $region12
    $region11: #{double_conv_forward.5} parent=5 // pred_region
      %s117 = ssub.s32 %s9, 1
      // Predicated region
      $region13: #{double_conv_forward.5} parent=11 // pred_check
        %p118 = pneg %p56
      $region14: #{double_conv_forward.5} parent=11 // pred_check_branch
        %120 = sbr.rel (%p118) target = $region16
      $region15: #{double_conv_forward.5} parent=11 // pred_region
        _
      $region16: #{double_conv_forward.5} parent=11 // pred_fallthru
        _
      // Predicated region
      $region17: #{double_conv_forward.5} parent=11 // pred_check
        %p121 = pneg %p77
      $region18: #{double_conv_forward.5} parent=11 // pred_check_branch
        %123 = sbr.rel (%p121) target = $region20
      $region19: #{double_conv_forward.5} parent=11 // pred_region
        _
      $region20: #{double_conv_forward.5} parent=11 // pred_fallthru
        _
    $region12: #{double_conv_forward.5} parent=5 // pred_fallthru
      _
    %p124 = scmp.lt.s32.totalorder %s9, 2
    // Predicated region
    $region21: #{double_conv_forward.5} parent=5 // pred_check
      %p125 = pneg %p124
    $region22: #{double_conv_forward.5} parent=5 // pred_check_branch
      %127 = sbr.rel (%p125) target = $region24
    $region23: #{double_conv_forward.5} parent=5 // pred_region
      // Predicated region
      $region25: #{double_conv_forward.5} parent=23 // pred_check
        %p128 = pneg %p29
      $region26: #{double_conv_forward.5} parent=23 // pred_check_branch
        %130 = sbr.rel (%p128) target = $region28
      $region27: #{double_conv_forward.5} parent=23 // pred_region
        %s131 = smul.u32 32, %s9
        %p132 = scmp.lt.s32.totalorder %s131, 63
        %s133 = scalar_select %p132, %s131, 63
        %s134 = smul.addr %s133, 8
        %s135 = scalar_lea.vmem %s0, %s134
        %s136 = smul.u32 32, %s9
      $region28: #{double_conv_forward.5} parent=23 // pred_fallthru
        _
    $region24: #{double_conv_forward.5} parent=5 // pred_fallthru
      _
    %p137 = scmp.le.s32.totalorder 1, %s9
    %p138 = scmp.lt.s32.totalorder %s9, 3
    %p139 = pnand %p137, %p138
    %p140 = pneg %p139
    // Predicated region
    $region29: #{double_conv_forward.5} parent=5 // pred_check
      _
    $region30: #{double_conv_forward.5} parent=5 // pred_check_branch
      %142 = sbr.rel (%p139) target = $region32
    $region31: #{double_conv_forward.5} parent=5 // pred_region
      %s143 = ssub.s32 %s9, 1
      %s144 = smul.u32 32, %s14
      %p145 = scmp.lt.s32.totalorder %s144, 63
      %s146 = scalar_select %p145, %s144, 63
      %s147 = smul.addr %s146, 8
      %s148 = scalar_lea.vmem %s0, %s147
      %p149 = pneg %p35
      %p150 = pneg %p32
      %p151 = pneg %p56
      %p152 = pneg %p53
      %p153 = pneg %p77
      %p154 = pneg %p74
      %p155 = pneg %p103
      %p156 = pneg %p100
      %s157 = smul.u32 32, %s14
      %p158 = scmp.lt.s32.totalorder %s157, 63
      %s159 = scalar_select %p158, %s157, 63
      %s160 = smul.addr %s159, 8
      %s161 = scalar_lea.vmem %s3, %s160
      %s162 = smul.u32 32, %s14
      %p163 = scmp.lt.s32.totalorder %s162, 63
      %s164 = scalar_select %p163, %s162, 63
      %s165 = smul.addr %s164, 8
      %s166 = scalar_lea.vmem %s0, %s165
      %s167 = smul.u32 32, %s14
      %s168 = smul.u32 32, %s14
      %p169 = scmp.lt.s32.totalorder %s168, 63
      %s170 = scalar_select %p169, %s168, 63
      %s171 = smul.addr %s170, 8
      %s172 = scalar_lea.vmem %s3, %s171
      %s173 = smul.u32 32, %s14
      %v174 = vld [vmem:[%s166] sm:$0xff]
      %v175 = vld [vmem:[%s166 + $0x8] sm:$0xff]
      %v176 = vld [vmem:[%s166 + $0x10] sm:$0xff]
      %v177 = vld [vmem:[%s166 + $0x18] sm:$0xff]
      %v178 = vld [vmem:[%s166 + $0x20] sm:$0xff]
      %v179 = vld [vmem:[%s166 + $0x28] sm:$0xff]
      %v180 = vld [vmem:[%s166 + $0x30] sm:$0xff]
      %v181 = vld [vmem:[%s166 + $0x38] sm:$0xff]
      %v182 = vld [vmem:[%s166 + $0x40] sm:$0xff]
      %v183 = vld [vmem:[%s166 + $0x48] sm:$0xff]
      %v184 = vld [vmem:[%s166 + $0x50] sm:$0xff]
      %v185 = vld [vmem:[%s166 + $0x58] sm:$0xff]
      %v186 = vld [vmem:[%s166 + $0x60] sm:$0xff]
      %v187 = vld [vmem:[%s166 + $0x68] sm:$0xff]
      %v188 = vld [vmem:[%s166 + $0x70] sm:$0xff]
      %v189 = vld [vmem:[%s166 + $0x78] sm:$0xff]
      %v190 = vld [vmem:[%s166 + $0x80] sm:$0xff]
      %v191 = vld [vmem:[%s166 + $0x88] sm:$0xff]
      %v192 = vld [vmem:[%s166 + $0x90] sm:$0xff]
      %v193 = vld [vmem:[%s166 + $0x98] sm:$0xff]
      %v194 = vld [vmem:[%s166 + $0xa0] sm:$0xff]
      %v195 = vld [vmem:[%s166 + $0xa8] sm:$0xff]
      %v196 = vld [vmem:[%s166 + $0xb0] sm:$0xff]
      %v197 = vld [vmem:[%s166 + $0xb8] sm:$0xff]
      %v198 = vld [vmem:[%s166 + $0xc0] sm:$0xff]
      %v199 = vld [vmem:[%s166 + $0xc8] sm:$0xff]
      %v200 = vld [vmem:[%s166 + $0xd0] sm:$0xff]
      %v201 = vld [vmem:[%s166 + $0xd8] sm:$0xff]
      %v202 = vld [vmem:[%s166 + $0xe0] sm:$0xff]
      %v203 = vld [vmem:[%s166 + $0xe8] sm:$0xff]
      %v204 = vld [vmem:[%s166 + $0xf0] sm:$0xff]
      %v205 = vld [vmem:[%s166 + $0xf8] sm:$0xff]
      %v206 = vld [vmem:[%s1] sm:$0x1]
      %v208 = vperm.slane %v206, 0
      %v210 = vmul.f32 %v174, %v208
      %v211 = vmul.f32 %v175, %v208
      %v212 = vmul.f32 %v176, %v208
      %v213 = vmul.f32 %v177, %v208
      %v214 = vmul.f32 %v178, %v208
      %v215 = vmul.f32 %v179, %v208
      %v216 = vmul.f32 %v180, %v208
      %v217 = vmul.f32 %v181, %v208
      %v218 = vmul.f32 %v182, %v208
      %v219 = vmul.f32 %v183, %v208
      %v220 = vmul.f32 %v184, %v208
      %v221 = vmul.f32 %v185, %v208
      %v222 = vmul.f32 %v186, %v208
      %v223 = vmul.f32 %v187, %v208
      %v224 = vmul.f32 %v188, %v208
      %v225 = vmul.f32 %v189, %v208
      %v226 = vmul.f32 %v190, %v208
      %v227 = vmul.f32 %v191, %v208
      %v228 = vmul.f32 %v192, %v208
      %v229 = vmul.f32 %v193, %v208
      %v230 = vmul.f32 %v194, %v208
      %v231 = vmul.f32 %v195, %v208
      %v232 = vmul.f32 %v196, %v208
      %v233 = vmul.f32 %v197, %v208
      %v234 = vmul.f32 %v198, %v208
      %v235 = vmul.f32 %v199, %v208
      %v236 = vmul.f32 %v200, %v208
      %v237 = vmul.f32 %v201, %v208
      %v238 = vmul.f32 %v202, %v208
      %v239 = vmul.f32 %v203, %v208
      %v240 = vmul.f32 %v204, %v208
      %v241 = vmul.f32 %v205, %v208
      %v242 = vld [vmem:[%s2] sm:$0x1]
      %v244 = vperm.slane %v242, 0
      %v246 = vadd.f32 %v210, %v244
      %v247 = vadd.f32 %v211, %v244
      %v248 = vadd.f32 %v212, %v244
      %v249 = vadd.f32 %v213, %v244
      %v250 = vadd.f32 %v214, %v244
      %v251 = vadd.f32 %v215, %v244
      %v252 = vadd.f32 %v216, %v244
      %v253 = vadd.f32 %v217, %v244
      %v254 = vadd.f32 %v218, %v244
      %v255 = vadd.f32 %v219, %v244
      %v256 = vadd.f32 %v220, %v244
      %v257 = vadd.f32 %v221, %v244
      %v258 = vadd.f32 %v222, %v244
      %v259 = vadd.f32 %v223, %v244
      %v260 = vadd.f32 %v224, %v244
      %v261 = vadd.f32 %v225, %v244
      %v262 = vadd.f32 %v226, %v244
      %v263 = vadd.f32 %v227, %v244
      %v264 = vadd.f32 %v228, %v244
      %v265 = vadd.f32 %v229, %v244
      %v266 = vadd.f32 %v230, %v244
      %v267 = vadd.f32 %v231, %v244
      %v268 = vadd.f32 %v232, %v244
      %v269 = vadd.f32 %v233, %v244
      %v270 = vadd.f32 %v234, %v244
      %v271 = vadd.f32 %v235, %v244
      %v272 = vadd.f32 %v236, %v244
      %v273 = vadd.f32 %v237, %v244
      %v274 = vadd.f32 %v238, %v244
      %v275 = vadd.f32 %v239, %v244
      %v276 = vadd.f32 %v240, %v244
      %v277 = vadd.f32 %v241, %v244
      %v278 = vmax.f32 %v246, 0.0
      %v279 = vmax.f32 %v247, 0.0
      %v280 = vmax.f32 %v248, 0.0
      %v281 = vmax.f32 %v249, 0.0
      %v282 = vmax.f32 %v250, 0.0
      %v283 = vmax.f32 %v251, 0.0
      %v284 = vmax.f32 %v252, 0.0
      %v285 = vmax.f32 %v253, 0.0
      %v286 = vmax.f32 %v254, 0.0
      %v287 = vmax.f32 %v255, 0.0
      %v288 = vmax.f32 %v256, 0.0
      %v289 = vmax.f32 %v257, 0.0
      %v290 = vmax.f32 %v258, 0.0
      %v291 = vmax.f32 %v259, 0.0
      %v292 = vmax.f32 %v260, 0.0
      %v293 = vmax.f32 %v261, 0.0
      %v294 = vmax.f32 %v262, 0.0
      %v295 = vmax.f32 %v263, 0.0
      %v296 = vmax.f32 %v264, 0.0
      %v297 = vmax.f32 %v265, 0.0
      %v298 = vmax.f32 %v266, 0.0
      %v299 = vmax.f32 %v267, 0.0
      %v300 = vmax.f32 %v268, 0.0
      %v301 = vmax.f32 %v269, 0.0
      %v302 = vmax.f32 %v270, 0.0
      %v303 = vmax.f32 %v271, 0.0
      %v304 = vmax.f32 %v272, 0.0
      %v305 = vmax.f32 %v273, 0.0
      %v306 = vmax.f32 %v274, 0.0
      %v307 = vmax.f32 %v275, 0.0
      %v308 = vmax.f32 %v276, 0.0
      %v309 = vmax.f32 %v277, 0.0
      %310 = vst [vmem:[%s172] sm:$0xff] %v278
      %311 = vst [vmem:[%s172 + $0x8] sm:$0xff] %v279
      %312 = vst [vmem:[%s172 + $0x10] sm:$0xff] %v280
      %313 = vst [vmem:[%s172 + $0x18] sm:$0xff] %v281
      %314 = vst [vmem:[%s172 + $0x20] sm:$0xff] %v282
      %315 = vst [vmem:[%s172 + $0x28] sm:$0xff] %v283
      %316 = vst [vmem:[%s172 + $0x30] sm:$0xff] %v284
      %317 = vst [vmem:[%s172 + $0x38] sm:$0xff] %v285
      %318 = vst [vmem:[%s172 + $0x40] sm:$0xff] %v286
      %319 = vst [vmem:[%s172 + $0x48] sm:$0xff] %v287
      %320 = vst [vmem:[%s172 + $0x50] sm:$0xff] %v288
      %321 = vst [vmem:[%s172 + $0x58] sm:$0xff] %v289
      %322 = vst [vmem:[%s172 + $0x60] sm:$0xff] %v290
      %323 = vst [vmem:[%s172 + $0x68] sm:$0xff] %v291
      %324 = vst [vmem:[%s172 + $0x70] sm:$0xff] %v292
      %325 = vst [vmem:[%s172 + $0x78] sm:$0xff] %v293
      %326 = vst [vmem:[%s172 + $0x80] sm:$0xff] %v294
      %327 = vst [vmem:[%s172 + $0x88] sm:$0xff] %v295
      %328 = vst [vmem:[%s172 + $0x90] sm:$0xff] %v296
      %329 = vst [vmem:[%s172 + $0x98] sm:$0xff] %v297
      %330 = vst [vmem:[%s172 + $0xa0] sm:$0xff] %v298
      %331 = vst [vmem:[%s172 + $0xa8] sm:$0xff] %v299
      %332 = vst [vmem:[%s172 + $0xb0] sm:$0xff] %v300
      %333 = vst [vmem:[%s172 + $0xb8] sm:$0xff] %v301
      %334 = vst [vmem:[%s172 + $0xc0] sm:$0xff] %v302
      %335 = vst [vmem:[%s172 + $0xc8] sm:$0xff] %v303
      %336 = vst [vmem:[%s172 + $0xd0] sm:$0xff] %v304
      %337 = vst [vmem:[%s172 + $0xd8] sm:$0xff] %v305
      %338 = vst [vmem:[%s172 + $0xe0] sm:$0xff] %v306
      %339 = vst [vmem:[%s172 + $0xe8] sm:$0xff] %v307
      %340 = vst [vmem:[%s172 + $0xf0] sm:$0xff] %v308
      %341 = vst [vmem:[%s172 + $0xf8] sm:$0xff] %v309
      %s342 = smul.u32 32, %s14
      %p343 = scmp.lt.s32.totalorder %s342, 63
      %s344 = scalar_select %p343, %s342, 63
      %s345 = smul.addr %s344, 8
      %s346 = scalar_lea.vmem %s3, %s345
      // Predicated region
      $region33: #{double_conv_forward.5} parent=31 // pred_check
        %p347 = pneg %p100
      $region34: #{double_conv_forward.5} parent=31 // pred_check_branch
        %349 = sbr.rel (%p347) target = $region36
      $region35: #{double_conv_forward.5} parent=31 // pred_region
        %s350 = smul.u32 32, %s14
      $region36: #{double_conv_forward.5} parent=31 // pred_fallthru
        _
    $region32: #{double_conv_forward.5} parent=5 // pred_fallthru
      _
    %p351 = scmp.le.s32.totalorder 2, %s9
    // Predicated region
    $region37: #{double_conv_forward.5} parent=5 // pred_check
      %p352 = pneg %p351
    $region38: #{double_conv_forward.5} parent=5 // pred_check_branch
      %354 = sbr.rel (%p352) target = $region40
    $region39: #{double_conv_forward.5} parent=5 // pred_region
      %s355 = ssub.s32 %s9, 2
      // Predicated region
      $region41: #{double_conv_forward.5} parent=39 // pred_check
        %p356 = pneg %p106
      $region42: #{double_conv_forward.5} parent=39 // pred_check_branch
        %358 = sbr.rel (%p356) target = $region44
      $region43: #{double_conv_forward.5} parent=39 // pred_region
        %s359 = smul.u32 32, %s15
        %p360 = scmp.lt.s32.totalorder %s359, 63
        %s361 = scalar_select %p360, %s359, 63
        %s362 = smul.addr %s361, 8
        %s363 = scalar_lea.vmem %s3, %s362
      $region44: #{double_conv_forward.5} parent=39 // pred_fallthru
        _
    $region40: #{double_conv_forward.5} parent=5 // pred_fallthru
      _
  $region6: #{double_conv_forward.5} parent=0 // loop_footer
    %s13 = sadd.s32 1, %s9
  $region7: #{double_conv_forward.5} parent=0 // loop_footer_branch
    %8 = sbr.rel target = $region3
  $region8: #{double_conv_forward.5} parent=0 // loop_exit
    _

// kernel: double_conv_forward.4
$region0: #{double_conv_forward.4}
  #allocation0 [shape = 'u32[]', space=smem, size = 0x4, offset = 0x4, fixed_abs, tag = 'smem constant byte address 0x4 - core index']
  #allocation1 [shape = 'u32[72,128]{1,0:T(1,128)}', space=vmem, size = 0x9000, scoped, tag = 'internal scratch']
  %s0 = inlined_call_operand.vmem [shape: f32[512,1152], index: 0, kind: input, shape index: {}]
  %s1 = inlined_call_operand.vmem [shape: f32[1152,128], index: 1, kind: input, shape index: {}]
  %s2 = inlined_call_operand.vmem [shape: f32[1,128], index: 2, kind: input, shape index: {}]
  %s3 = inlined_call_operand.vmem [shape: f32[512,128], index: 3, kind: output, shape index: {0}]
  %s4 = inlined_call_operand.vmem [shape: f32[16,128], index: 4, kind: output, shape index: {1}]
  %s5 = inlined_call_operand.vmem [shape: f32[16,128], index: 5, kind: output, shape index: {2}]
  %6 = xla_tuple %s3, %s4, %s5
  %s7 = sld [smem:[#allocation0]]
  $region61: #{double_conv_forward.4} parent=0
    _
  %s9 = ssub.s32 1, %s7
  %s10 = scalar_select 0, %s9, %s7
  loop: start=0, step=1, limit=4
  $region2: #{double_conv_forward.4} parent=0 // loop_pre_header
    _
  $region3: #{double_conv_forward.4} parent=0 // loop_header
    %s12 = sphi 0, %s16
    %p13 = scmp.ge.s32.totalorder %s12, 4
    %s22 = sphi 0, %s24
    %s25 = sphi 0, %s22
    %s26 = sphi 0, %s25
    %s42 = sphi 0, %s26
    %s46 = sphi 0, %s46
    %s48 = sphi 0, %s46
    %s49 = sphi 0, %s48
    %s63 = sphi 0, %s49
    %s67 = sphi 0, %s67
    %s69 = sphi 0, %s67
    %s70 = sphi 0, %s69
    %s84 = sphi 0, %s70
    %s90 = sphi 0, %s92
    %s93 = sphi 0, %s90
    %s94 = sphi 0, %s93
    %s110 = sphi 0, %s94
    %s116 = sphi 0, %s118
    %s119 = sphi 0, %s116
    %s120 = sphi 0, %s119
    %s136 = sphi 0, %s120
    %s142 = sphi 0, %s144
    %s145 = sphi 0, %s142
    %s146 = sphi 0, %s145
    %s162 = sphi 0, %s146
  $region4: #{double_conv_forward.4} parent=0 // loop_header_branch
    %15 = sbr.rel (%p13) target = $region8
  $region5: #{double_conv_forward.4} parent=0 // loop_body
    %s17 = ssub.s32 %s12, 1
    %s18 = ssub.s32 %s12, 2
    %s19 = sadd.s32 %s12, 1
    %s20 = ssub.s32 %s12, %s19
    %p21 = scmp.eq.s32.totalorder %s20, 0
    %s23 = sadd.s32 %s22, 1
    %s24 = scalar_select %p21, %s22, %s23
    %p27 = pneg %p21
    %p28 = scmp.eq.s32.totalorder %s12, 1
    %p29 = por %p27, %p28
    %p30 = scmp.ne.s32.totalorder %s22, %s25
    %p31 = scmp.eq.s32.totalorder %s12, 0
    %p32 = por %p30, %p31
    %p33 = scmp.ne.s32.totalorder %s22, %s25
    %p34 = scmp.eq.s32.totalorder %s17, 1
    %p35 = por %p33, %p34
    %p36 = scmp.ne.s32.totalorder %s25, %s26
    %p37 = scmp.eq.s32.totalorder %s17, 0
    %p38 = por %p36, %p37
    %p39 = scmp.ne.s32.totalorder %s25, %s26
    %p40 = scmp.eq.s32.totalorder %s18, 1
    %p41 = por %p39, %p40
    %p43 = scmp.ne.s32.totalorder %s26, %s42
    %p44 = scmp.eq.s32.totalorder %s18, 0
    %p45 = por %p43, %p44
    %s47 = sadd.s32 %s46, 1
    %p50 = scmp.eq.s32.totalorder %s12, 1
    %p51 = scmp.ne.s32.totalorder %s46, %s48
    %p52 = scmp.eq.s32.totalorder %s12, 0
    %p53 = por %p51, %p52
    %p54 = scmp.ne.s32.totalorder %s46, %s48
    %p55 = scmp.eq.s32.totalorder %s17, 1
    %p56 = por %p54, %p55
    %p57 = scmp.ne.s32.totalorder %s48, %s49
    %p58 = scmp.eq.s32.totalorder %s17, 0
    %p59 = por %p57, %p58
    %p60 = scmp.ne.s32.totalorder %s48, %s49
    %p61 = scmp.eq.s32.totalorder %s18, 1
    %p62 = por %p60, %p61
    %p64 = scmp.ne.s32.totalorder %s49, %s63
    %p65 = scmp.eq.s32.totalorder %s18, 0
    %p66 = por %p64, %p65
    %s68 = sadd.s32 %s67, 1
    %p71 = scmp.eq.s32.totalorder %s12, 1
    %p72 = scmp.ne.s32.totalorder %s67, %s69
    %p73 = scmp.eq.s32.totalorder %s12, 0
    %p74 = por %p72, %p73
    %p75 = scmp.ne.s32.totalorder %s67, %s69
    %p76 = scmp.eq.s32.totalorder %s17, 1
    %p77 = por %p75, %p76
    %p78 = scmp.ne.s32.totalorder %s69, %s70
    %p79 = scmp.eq.s32.totalorder %s17, 0
    %p80 = por %p78, %p79
    %p81 = scmp.ne.s32.totalorder %s69, %s70
    %p82 = scmp.eq.s32.totalorder %s18, 1
    %p83 = por %p81, %p82
    %p85 = scmp.ne.s32.totalorder %s70, %s84
    %p86 = scmp.eq.s32.totalorder %s18, 0
    %p87 = por %p85, %p86
    %s88 = ssub.s32 %s12, %s19
    %p89 = scmp.eq.s32.totalorder %s88, 0
    %s91 = sadd.s32 %s90, 1
    %s92 = scalar_select %p89, %s90, %s91
    %p95 = pneg %p89
    %p96 = scmp.eq.s32.totalorder %s12, 1
    %p97 = por %p95, %p96
    %p98 = scmp.ne.s32.totalorder %s90, %s93
    %p99 = scmp.eq.s32.totalorder %s12, 0
    %p100 = por %p98, %p99
    %p101 = scmp.ne.s32.totalorder %s90, %s93
    %p102 = scmp.eq.s32.totalorder %s17, 1
    %p103 = por %p101, %p102
    %p104 = scmp.ne.s32.totalorder %s93, %s94
    %p105 = scmp.eq.s32.totalorder %s17, 0
    %p106 = por %p104, %p105
    %p107 = scmp.ne.s32.totalorder %s93, %s94
    %p108 = scmp.eq.s32.totalorder %s18, 1
    %p109 = por %p107, %p108
    %p111 = scmp.ne.s32.totalorder %s94, %s110
    %p112 = scmp.eq.s32.totalorder %s18, 0
    %p113 = por %p111, %p112
    %s114 = ssub.s32 %s12, %s19
    %p115 = scmp.eq.s32.totalorder %s114, 0
    %s117 = sadd.s32 %s116, 1
    %s118 = scalar_select %p115, %s116, %s117
    %p121 = pneg %p115
    %p122 = scmp.eq.s32.totalorder %s12, 1
    %p123 = por %p121, %p122
    %p124 = scmp.ne.s32.totalorder %s116, %s119
    %p125 = scmp.eq.s32.totalorder %s12, 0
    %p126 = por %p124, %p125
    %p127 = scmp.ne.s32.totalorder %s116, %s119
    %p128 = scmp.eq.s32.totalorder %s17, 1
    %p129 = por %p127, %p128
    %p130 = scmp.ne.s32.totalorder %s119, %s120
    %p131 = scmp.eq.s32.totalorder %s17, 0
    %p132 = por %p130, %p131
    %p133 = scmp.ne.s32.totalorder %s119, %s120
    %p134 = scmp.eq.s32.totalorder %s18, 1
    %p135 = por %p133, %p134
    %p137 = scmp.ne.s32.totalorder %s120, %s136
    %p138 = scmp.eq.s32.totalorder %s18, 0
    %p139 = por %p137, %p138
    %s140 = ssub.s32 %s12, %s19
    %p141 = scmp.eq.s32.totalorder %s140, 0
    %s143 = sadd.s32 %s142, 1
    %s144 = scalar_select %p141, %s142, %s143
    %p147 = pneg %p141
    %p148 = scmp.eq.s32.totalorder %s12, 1
    %p149 = por %p147, %p148
    %p150 = scmp.ne.s32.totalorder %s142, %s145
    %p151 = scmp.eq.s32.totalorder %s12, 0
    %p152 = por %p150, %p151
    %p153 = scmp.ne.s32.totalorder %s142, %s145
    %p154 = scmp.eq.s32.totalorder %s17, 1
    %p155 = por %p153, %p154
    %p156 = scmp.ne.s32.totalorder %s145, %s146
    %p157 = scmp.eq.s32.totalorder %s17, 0
    %p158 = por %p156, %p157
    %p159 = scmp.ne.s32.totalorder %s145, %s146
    %p160 = scmp.eq.s32.totalorder %s18, 1
    %p161 = por %p159, %p160
    %p163 = scmp.ne.s32.totalorder %s146, %s162
    %p164 = scmp.eq.s32.totalorder %s18, 0
    %p165 = por %p163, %p164
    %p166 = scmp.le.s32.totalorder 1, %s12
    %p167 = scmp.lt.s32.totalorder %s12, 3
    %p168 = pnand %p166, %p167
    %p169 = pneg %p168
    // Predicated region
    $region9: #{double_conv_forward.4} parent=5 // pred_check
      _
    $region10: #{double_conv_forward.4} parent=5 // pred_check_branch
      %171 = sbr.rel (%p168) target = $region12
    $region11: #{double_conv_forward.4} parent=5 // pred_region
      %s172 = ssub.s32 %s12, 1
      // Predicated region
      $region13: #{double_conv_forward.4} parent=11 // pred_check
        %p173 = pneg %p59
      $region14: #{double_conv_forward.4} parent=11 // pred_check_branch
        %175 = sbr.rel (%p173) target = $region16
      $region15: #{double_conv_forward.4} parent=11 // pred_region
        _
      $region16: #{double_conv_forward.4} parent=11 // pred_fallthru
        _
      // Predicated region
      $region17: #{double_conv_forward.4} parent=11 // pred_check
        %p176 = pneg %p80
      $region18: #{double_conv_forward.4} parent=11 // pred_check_branch
        %178 = sbr.rel (%p176) target = $region20
      $region19: #{double_conv_forward.4} parent=11 // pred_region
        _
      $region20: #{double_conv_forward.4} parent=11 // pred_fallthru
        _
    $region12: #{double_conv_forward.4} parent=5 // pred_fallthru
      _
    %p179 = scmp.lt.s32.totalorder %s12, 2
    // Predicated region
    $region21: #{double_conv_forward.4} parent=5 // pred_check
      %p180 = pneg %p179
    $region22: #{double_conv_forward.4} parent=5 // pred_check_branch
      %182 = sbr.rel (%p180) target = $region24
    $region23: #{double_conv_forward.4} parent=5 // pred_region
      // Predicated region
      $region25: #{double_conv_forward.4} parent=23 // pred_check
        %p183 = pneg %p32
      $region26: #{double_conv_forward.4} parent=23 // pred_check_branch
        %185 = sbr.rel (%p183) target = $region28
      $region27: #{double_conv_forward.4} parent=23 // pred_region
        %s186 = smul.u32 32, %s12
        %p187 = scmp.lt.s32.totalorder %s186, 63
        %s188 = scalar_select %p187, %s186, 63
        %s189 = smul.addr %s188, 9
        %s190 = smul.addr %s189, 8
        %s191 = scalar_lea.vmem %s0, %s190
        %s192 = smul.u32 32, %s12
      $region28: #{double_conv_forward.4} parent=23 // pred_fallthru
        _
    $region24: #{double_conv_forward.4} parent=5 // pred_fallthru
      _
    %p193 = scmp.le.s32.totalorder 1, %s12
    %p194 = scmp.lt.s32.totalorder %s12, 3
    %p195 = pnand %p193, %p194
    %p196 = pneg %p195
    // Predicated region
    $region29: #{double_conv_forward.4} parent=5 // pred_check
      _
    $region30: #{double_conv_forward.4} parent=5 // pred_check_branch
      %198 = sbr.rel (%p195) target = $region32
    $region31: #{double_conv_forward.4} parent=5 // pred_region
      %s199 = ssub.s32 %s12, 1
      %s200 = smul.u32 32, %s17
      %p201 = scmp.lt.s32.totalorder %s200, 63
      %s202 = scalar_select %p201, %s200, 63
      %s203 = smul.addr %s202, 9
      %s204 = smul.addr %s203, 8
      %s205 = scalar_lea.vmem %s0, %s204
      %p206 = pneg %p38
      %p207 = pneg %p35
      %p208 = pneg %p59
      %p209 = pneg %p56
      %p210 = pneg %p80
      %p211 = pneg %p77
      %p212 = pneg %p106
      %p213 = pneg %p103
      %s214 = smul.u32 32, %s17
      %p215 = scmp.lt.s32.totalorder %s214, 63
      %s216 = scalar_select %p215, %s214, 63
      %s217 = smul.addr %s216, 8
      %s218 = scalar_lea.vmem %s3, %s217
      %p219 = pneg %p132
      %p220 = pneg %p129
      %p221 = scmp.lt.s32.totalorder %s17, 1
      %s222 = scalar_select %p221, %s17, 1
      %s223 = smul.addr %s222, 8
      %s224 = scalar_lea.vmem %s4, %s223
      %p225 = pneg %p158
      %p226 = pneg %p155
      %p227 = scmp.lt.s32.totalorder %s17, 1
      %s228 = scalar_select %p227, %s17, 1
      %s229 = smul.addr %s228, 8
      %s230 = scalar_lea.vmem %s5, %s229
      %s231 = smul.u32 32, %s17
      %p232 = scmp.lt.s32.totalorder %s231, 63
      %s233 = scalar_select %p232, %s231, 63
      %s234 = smul.addr %s233, 9
      %s235 = smul.addr %s234, 8
      %s236 = scalar_lea.vmem %s0, %s235
      %s237 = smul.u32 32, %s17
      %s238 = smul.u32 32, %s17
      %p239 = scmp.lt.s32.totalorder %s238, 63
      %s240 = scalar_select %p239, %s238, 63
      %s241 = smul.addr %s240, 8
      %s242 = scalar_lea.vmem %s3, %s241
      %s243 = smul.u32 32, %s17
      %p244 = scmp.lt.s32.totalorder %s17, 1
      %s245 = scalar_select %p244, %s17, 1
      %s246 = smul.addr %s245, 8
      %s247 = scalar_lea.vmem %s4, %s246
      %p248 = scmp.lt.s32.totalorder %s17, 1
      %s249 = scalar_select %p248, %s17, 1
      %s250 = smul.addr %s249, 8
      %s251 = scalar_lea.vmem %s5, %s250
      %v252 = vld [vmem:[%s236] sm:$0xff]
      %v253 = vld [vmem:[%s236 + $0x8] sm:$0xff]
      %v254 = vld [vmem:[%s236 + $0x10] sm:$0xff]
      %v255 = vld [vmem:[%s236 + $0x18] sm:$0xff]
      %v256 = vld [vmem:[%s236 + $0x20] sm:$0xff]
      %v257 = vld [vmem:[%s236 + $0x28] sm:$0xff]
      %v258 = vld [vmem:[%s236 + $0x30] sm:$0xff]
      %v259 = vld [vmem:[%s236 + $0x38] sm:$0xff]
      %v260 = vld [vmem:[%s236 + $0x40] sm:$0xff]
      %v261 = vld [vmem:[%s236 + $0x48] sm:$0xff]
      %v262 = vld [vmem:[%s236 + $0x50] sm:$0xff]
      %v263 = vld [vmem:[%s236 + $0x58] sm:$0xff]
      %v264 = vld [vmem:[%s236 + $0x60] sm:$0xff]
      %v265 = vld [vmem:[%s236 + $0x68] sm:$0xff]
      %v266 = vld [vmem:[%s236 + $0x70] sm:$0xff]
      %v267 = vld [vmem:[%s236 + $0x78] sm:$0xff]
      %v268 = vld [vmem:[%s236 + $0x80] sm:$0xff]
      %v269 = vld [vmem:[%s236 + $0x88] sm:$0xff]
      %v270 = vld [vmem:[%s236 + $0x90] sm:$0xff]
      %v271 = vld [vmem:[%s236 + $0x98] sm:$0xff]
      %v272 = vld [vmem:[%s236 + $0xa0] sm:$0xff]
      %v273 = vld [vmem:[%s236 + $0xa8] sm:$0xff]
      %v274 = vld [vmem:[%s236 + $0xb0] sm:$0xff]
      %v275 = vld [vmem:[%s236 + $0xb8] sm:$0xff]
      %v276 = vld [vmem:[%s236 + $0xc0] sm:$0xff]
      %v277 = vld [vmem:[%s236 + $0xc8] sm:$0xff]
      %v278 = vld [vmem:[%s236 + $0xd0] sm:$0xff]
      %v279 = vld [vmem:[%s236 + $0xd8] sm:$0xff]
      %v280 = vld [vmem:[%s236 + $0xe0] sm:$0xff]
      %v281 = vld [vmem:[%s236 + $0xe8] sm:$0xff]
      %v282 = vld [vmem:[%s236 + $0xf0] sm:$0xff]
      %v283 = vld [vmem:[%s236 + $0xf8] sm:$0xff]
      %v284 = vld [vmem:[%s236 + $0x100] sm:$0xff]
      %v285 = vld [vmem:[%s236 + $0x108] sm:$0xff]
      %v286 = vld [vmem:[%s236 + $0x110] sm:$0xff]
      %v287 = vld [vmem:[%s236 + $0x118] sm:$0xff]
      %v288 = vld [vmem:[%s236 + $0x120] sm:$0xff]
      %v289 = vld [vmem:[%s236 + $0x128] sm:$0xff]
      %v290 = vld [vmem:[%s236 + $0x130] sm:$0xff]
      %v291 = vld [vmem:[%s236 + $0x138] sm:$0xff]
      %v292 = vld [vmem:[%s236 + $0x140] sm:$0xff]
      %v293 = vld [vmem:[%s236 + $0x148] sm:$0xff]
      %v294 = vld [vmem:[%s236 + $0x150] sm:$0xff]
      %v295 = vld [vmem:[%s236 + $0x158] sm:$0xff]
      %v296 = vld [vmem:[%s236 + $0x160] sm:$0xff]
      %v297 = vld [vmem:[%s236 + $0x168] sm:$0xff]
      %v298 = vld [vmem:[%s236 + $0x170] sm:$0xff]
      %v299 = vld [vmem:[%s236 + $0x178] sm:$0xff]
      %v300 = vld [vmem:[%s236 + $0x180] sm:$0xff]
      %v301 = vld [vmem:[%s236 + $0x188] sm:$0xff]
      %v302 = vld [vmem:[%s236 + $0x190] sm:$0xff]
      %v303 = vld [vmem:[%s236 + $0x198] sm:$0xff]
      %v304 = vld [vmem:[%s236 + $0x1a0] sm:$0xff]
      %v305 = vld [vmem:[%s236 + $0x1a8] sm:$0xff]
      %v306 = vld [vmem:[%s236 + $0x1b0] sm:$0xff]
      %v307 = vld [vmem:[%s236 + $0x1b8] sm:$0xff]
      %v308 = vld [vmem:[%s236 + $0x1c0] sm:$0xff]
      %v309 = vld [vmem:[%s236 + $0x1c8] sm:$0xff]
      %v310 = vld [vmem:[%s236 + $0x1d0] sm:$0xff]
      %v311 = vld [vmem:[%s236 + $0x1d8] sm:$0xff]
      %v312 = vld [vmem:[%s236 + $0x1e0] sm:$0xff]
      %v313 = vld [vmem:[%s236 + $0x1e8] sm:$0xff]
      %v314 = vld [vmem:[%s236 + $0x1f0] sm:$0xff]
      %v315 = vld [vmem:[%s236 + $0x1f8] sm:$0xff]
      %v316 = vld [vmem:[%s236 + $0x200] sm:$0xff]
      %v317 = vld [vmem:[%s236 + $0x208] sm:$0xff]
      %v318 = vld [vmem:[%s236 + $0x210] sm:$0xff]
      %v319 = vld [vmem:[%s236 + $0x218] sm:$0xff]
      %v320 = vld [vmem:[%s236 + $0x220] sm:$0xff]
      %v321 = vld [vmem:[%s236 + $0x228] sm:$0xff]
      %v322 = vld [vmem:[%s236 + $0x230] sm:$0xff]
      %v323 = vld [vmem:[%s236 + $0x238] sm:$0xff]
      %v324 = vld [vmem:[%s236 + $0x240] sm:$0xff]
      %v325 = vld [vmem:[%s236 + $0x248] sm:$0xff]
      %v326 = vld [vmem:[%s236 + $0x250] sm:$0xff]
      %v327 = vld [vmem:[%s236 + $0x258] sm:$0xff]
      %v328 = vld [vmem:[%s236 + $0x260] sm:$0xff]
      %v329 = vld [vmem:[%s236 + $0x268] sm:$0xff]
      %v330 = vld [vmem:[%s236 + $0x270] sm:$0xff]
      %v331 = vld [vmem:[%s236 + $0x278] sm:$0xff]
      %v332 = vld [vmem:[%s236 + $0x280] sm:$0xff]
      %v333 = vld [vmem:[%s236 + $0x288] sm:$0xff]
      %v334 = vld [vmem:[%s236 + $0x290] sm:$0xff]
      %v335 = vld [vmem:[%s236 + $0x298] sm:$0xff]
      %v336 = vld [vmem:[%s236 + $0x2a0] sm:$0xff]
      %v337 = vld [vmem:[%s236 + $0x2a8] sm:$0xff]
      %v338 = vld [vmem:[%s236 + $0x2b0] sm:$0xff]
      %v339 = vld [vmem:[%s236 + $0x2b8] sm:$0xff]
      %v340 = vld [vmem:[%s236 + $0x2c0] sm:$0xff]
      %v341 = vld [vmem:[%s236 + $0x2c8] sm:$0xff]
      %v342 = vld [vmem:[%s236 + $0x2d0] sm:$0xff]
      %v343 = vld [vmem:[%s236 + $0x2d8] sm:$0xff]
      %v344 = vld [vmem:[%s236 + $0x2e0] sm:$0xff]
      %v345 = vld [vmem:[%s236 + $0x2e8] sm:$0xff]
      %v346 = vld [vmem:[%s236 + $0x2f0] sm:$0xff]
      %v347 = vld [vmem:[%s236 + $0x2f8] sm:$0xff]
      %v348 = vld [vmem:[%s236 + $0x300] sm:$0xff]
      %v349 = vld [vmem:[%s236 + $0x308] sm:$0xff]
      %v350 = vld [vmem:[%s236 + $0x310] sm:$0xff]
      %v351 = vld [vmem:[%s236 + $0x318] sm:$0xff]
      %v352 = vld [vmem:[%s236 + $0x320] sm:$0xff]
      %v353 = vld [vmem:[%s236 + $0x328] sm:$0xff]
      %v354 = vld [vmem:[%s236 + $0x330] sm:$0xff]
      %v355 = vld [vmem:[%s236 + $0x338] sm:$0xff]
      %v356 = vld [vmem:[%s236 + $0x340] sm:$0xff]
      %v357 = vld [vmem:[%s236 + $0x348] sm:$0xff]
      %v358 = vld [vmem:[%s236 + $0x350] sm:$0xff]
      %v359 = vld [vmem:[%s236 + $0x358] sm:$0xff]
      %v360 = vld [vmem:[%s236 + $0x360] sm:$0xff]
      %v361 = vld [vmem:[%s236 + $0x368] sm:$0xff]
      %v362 = vld [vmem:[%s236 + $0x370] sm:$0xff]
      %v363 = vld [vmem:[%s236 + $0x378] sm:$0xff]
      %v364 = vld [vmem:[%s236 + $0x380] sm:$0xff]
      %v365 = vld [vmem:[%s236 + $0x388] sm:$0xff]
      %v366 = vld [vmem:[%s236 + $0x390] sm:$0xff]
      %v367 = vld [vmem:[%s236 + $0x398] sm:$0xff]
      %v368 = vld [vmem:[%s236 + $0x3a0] sm:$0xff]
      %v369 = vld [vmem:[%s236 + $0x3a8] sm:$0xff]
      %v370 = vld [vmem:[%s236 + $0x3b0] sm:$0xff]
      %v371 = vld [vmem:[%s236 + $0x3b8] sm:$0xff]
      %v372 = vld [vmem:[%s236 + $0x3c0] sm:$0xff]
      %v373 = vld [vmem:[%s236 + $0x3c8] sm:$0xff]
      %v374 = vld [vmem:[%s236 + $0x3d0] sm:$0xff]
      %v375 = vld [vmem:[%s236 + $0x3d8] sm:$0xff]
      %v376 = vld [vmem:[%s236 + $0x3e0] sm:$0xff]
      %v377 = vld [vmem:[%s236 + $0x3e8] sm:$0xff]
      %v378 = vld [vmem:[%s236 + $0x3f0] sm:$0xff]
      %v379 = vld [vmem:[%s236 + $0x3f8] sm:$0xff]
      %v380 = vld [vmem:[%s236 + $0x400] sm:$0xff]
      %v381 = vld [vmem:[%s236 + $0x408] sm:$0xff]
      %v382 = vld [vmem:[%s236 + $0x410] sm:$0xff]
      %v383 = vld [vmem:[%s236 + $0x418] sm:$0xff]
      %v384 = vld [vmem:[%s236 + $0x420] sm:$0xff]
      %v385 = vld [vmem:[%s236 + $0x428] sm:$0xff]
      %v386 = vld [vmem:[%s236 + $0x430] sm:$0xff]
      %v387 = vld [vmem:[%s236 + $0x438] sm:$0xff]
      %v388 = vld [vmem:[%s236 + $0x440] sm:$0xff]
      %v389 = vld [vmem:[%s236 + $0x448] sm:$0xff]
      %v390 = vld [vmem:[%s236 + $0x450] sm:$0xff]
      %v391 = vld [vmem:[%s236 + $0x458] sm:$0xff]
      %v392 = vld [vmem:[%s236 + $0x460] sm:$0xff]
      %v393 = vld [vmem:[%s236 + $0x468] sm:$0xff]
      %v394 = vld [vmem:[%s236 + $0x470] sm:$0xff]
      %v395 = vld [vmem:[%s236 + $0x478] sm:$0xff]
      %v396 = vld [vmem:[%s236 + $0x480] sm:$0xff]
      %v397 = vld [vmem:[%s236 + $0x488] sm:$0xff]
      %v398 = vld [vmem:[%s236 + $0x490] sm:$0xff]
      %v399 = vld [vmem:[%s236 + $0x498] sm:$0xff]
      %v400 = vld [vmem:[%s236 + $0x4a0] sm:$0xff]
      %v401 = vld [vmem:[%s236 + $0x4a8] sm:$0xff]
      %v402 = vld [vmem:[%s236 + $0x4b0] sm:$0xff]
      %v403 = vld [vmem:[%s236 + $0x4b8] sm:$0xff]
      %v404 = vld [vmem:[%s236 + $0x4c0] sm:$0xff]
      %v405 = vld [vmem:[%s236 + $0x4c8] sm:$0xff]
      %v406 = vld [vmem:[%s236 + $0x4d0] sm:$0xff]
      %v407 = vld [vmem:[%s236 + $0x4d8] sm:$0xff]
      %v408 = vld [vmem:[%s236 + $0x4e0] sm:$0xff]
      %v409 = vld [vmem:[%s236 + $0x4e8] sm:$0xff]
      %v410 = vld [vmem:[%s236 + $0x4f0] sm:$0xff]
      %v411 = vld [vmem:[%s236 + $0x4f8] sm:$0xff]
      %v412 = vld [vmem:[%s236 + $0x500] sm:$0xff]
      %v413 = vld [vmem:[%s236 + $0x508] sm:$0xff]
      %v414 = vld [vmem:[%s236 + $0x510] sm:$0xff]
      %v415 = vld [vmem:[%s236 + $0x518] sm:$0xff]
      %v416 = vld [vmem:[%s236 + $0x520] sm:$0xff]
      %v417 = vld [vmem:[%s236 + $0x528] sm:$0xff]
      %v418 = vld [vmem:[%s236 + $0x530] sm:$0xff]
      %v419 = vld [vmem:[%s236 + $0x538] sm:$0xff]
      %v420 = vld [vmem:[%s236 + $0x540] sm:$0xff]
      %v421 = vld [vmem:[%s236 + $0x548] sm:$0xff]
      %v422 = vld [vmem:[%s236 + $0x550] sm:$0xff]
      %v423 = vld [vmem:[%s236 + $0x558] sm:$0xff]
      %v424 = vld [vmem:[%s236 + $0x560] sm:$0xff]
      %v425 = vld [vmem:[%s236 + $0x568] sm:$0xff]
      %v426 = vld [vmem:[%s236 + $0x570] sm:$0xff]
      %v427 = vld [vmem:[%s236 + $0x578] sm:$0xff]
      %v428 = vld [vmem:[%s236 + $0x580] sm:$0xff]
      %v429 = vld [vmem:[%s236 + $0x588] sm:$0xff]
      %v430 = vld [vmem:[%s236 + $0x590] sm:$0xff]
      %v431 = vld [vmem:[%s236 + $0x598] sm:$0xff]
      %v432 = vld [vmem:[%s236 + $0x5a0] sm:$0xff]
      %v433 = vld [vmem:[%s236 + $0x5a8] sm:$0xff]
      %v434 = vld [vmem:[%s236 + $0x5b0] sm:$0xff]
      %v435 = vld [vmem:[%s236 + $0x5b8] sm:$0xff]
      %v436 = vld [vmem:[%s236 + $0x5c0] sm:$0xff]
      %v437 = vld [vmem:[%s236 + $0x5c8] sm:$0xff]
      %v438 = vld [vmem:[%s236 + $0x5d0] sm:$0xff]
      %v439 = vld [vmem:[%s236 + $0x5d8] sm:$0xff]
      %v440 = vld [vmem:[%s236 + $0x5e0] sm:$0xff]
      %v441 = vld [vmem:[%s236 + $0x5e8] sm:$0xff]
      %v442 = vld [vmem:[%s236 + $0x5f0] sm:$0xff]
      %v443 = vld [vmem:[%s236 + $0x5f8] sm:$0xff]
      %v444 = vld [vmem:[%s236 + $0x600] sm:$0xff]
      %v445 = vld [vmem:[%s236 + $0x608] sm:$0xff]
      %v446 = vld [vmem:[%s236 + $0x610] sm:$0xff]
      %v447 = vld [vmem:[%s236 + $0x618] sm:$0xff]
      %v448 = vld [vmem:[%s236 + $0x620] sm:$0xff]
      %v449 = vld [vmem:[%s236 + $0x628] sm:$0xff]
      %v450 = vld [vmem:[%s236 + $0x630] sm:$0xff]
      %v451 = vld [vmem:[%s236 + $0x638] sm:$0xff]
      %v452 = vld [vmem:[%s236 + $0x640] sm:$0xff]
      %v453 = vld [vmem:[%s236 + $0x648] sm:$0xff]
      %v454 = vld [vmem:[%s236 + $0x650] sm:$0xff]
      %v455 = vld [vmem:[%s236 + $0x658] sm:$0xff]
      %v456 = vld [vmem:[%s236 + $0x660] sm:$0xff]
      %v457 = vld [vmem:[%s236 + $0x668] sm:$0xff]
      %v458 = vld [vmem:[%s236 + $0x670] sm:$0xff]
      %v459 = vld [vmem:[%s236 + $0x678] sm:$0xff]
      %v460 = vld [vmem:[%s236 + $0x680] sm:$0xff]
      %v461 = vld [vmem:[%s236 + $0x688] sm:$0xff]
      %v462 = vld [vmem:[%s236 + $0x690] sm:$0xff]
      %v463 = vld [vmem:[%s236 + $0x698] sm:$0xff]
      %v464 = vld [vmem:[%s236 + $0x6a0] sm:$0xff]
      %v465 = vld [vmem:[%s236 + $0x6a8] sm:$0xff]
      %v466 = vld [vmem:[%s236 + $0x6b0] sm:$0xff]
      %v467 = vld [vmem:[%s236 + $0x6b8] sm:$0xff]
      %v468 = vld [vmem:[%s236 + $0x6c0] sm:$0xff]
      %v469 = vld [vmem:[%s236 + $0x6c8] sm:$0xff]
      %v470 = vld [vmem:[%s236 + $0x6d0] sm:$0xff]
      %v471 = vld [vmem:[%s236 + $0x6d8] sm:$0xff]
      %v472 = vld [vmem:[%s236 + $0x6e0] sm:$0xff]
      %v473 = vld [vmem:[%s236 + $0x6e8] sm:$0xff]
      %v474 = vld [vmem:[%s236 + $0x6f0] sm:$0xff]
      %v475 = vld [vmem:[%s236 + $0x6f8] sm:$0xff]
      %v476 = vld [vmem:[%s236 + $0x700] sm:$0xff]
      %v477 = vld [vmem:[%s236 + $0x708] sm:$0xff]
      %v478 = vld [vmem:[%s236 + $0x710] sm:$0xff]
      %v479 = vld [vmem:[%s236 + $0x718] sm:$0xff]
      %v480 = vld [vmem:[%s236 + $0x720] sm:$0xff]
      %v481 = vld [vmem:[%s236 + $0x728] sm:$0xff]
      %v482 = vld [vmem:[%s236 + $0x730] sm:$0xff]
      %v483 = vld [vmem:[%s236 + $0x738] sm:$0xff]
      %v484 = vld [vmem:[%s236 + $0x740] sm:$0xff]
      %v485 = vld [vmem:[%s236 + $0x748] sm:$0xff]
      %v486 = vld [vmem:[%s236 + $0x750] sm:$0xff]
      %v487 = vld [vmem:[%s236 + $0x758] sm:$0xff]
      %v488 = vld [vmem:[%s236 + $0x760] sm:$0xff]
      %v489 = vld [vmem:[%s236 + $0x768] sm:$0xff]
      %v490 = vld [vmem:[%s236 + $0x770] sm:$0xff]
      %v491 = vld [vmem:[%s236 + $0x778] sm:$0xff]
      %v492 = vld [vmem:[%s236 + $0x780] sm:$0xff]
      %v493 = vld [vmem:[%s236 + $0x788] sm:$0xff]
      %v494 = vld [vmem:[%s236 + $0x790] sm:$0xff]
      %v495 = vld [vmem:[%s236 + $0x798] sm:$0xff]
      %v496 = vld [vmem:[%s236 + $0x7a0] sm:$0xff]
      %v497 = vld [vmem:[%s236 + $0x7a8] sm:$0xff]
      %v498 = vld [vmem:[%s236 + $0x7b0] sm:$0xff]
      %v499 = vld [vmem:[%s236 + $0x7b8] sm:$0xff]
      %v500 = vld [vmem:[%s236 + $0x7c0] sm:$0xff]
      %v501 = vld [vmem:[%s236 + $0x7c8] sm:$0xff]
      %v502 = vld [vmem:[%s236 + $0x7d0] sm:$0xff]
      %v503 = vld [vmem:[%s236 + $0x7d8] sm:$0xff]
      %v504 = vld [vmem:[%s236 + $0x7e0] sm:$0xff]
      %v505 = vld [vmem:[%s236 + $0x7e8] sm:$0xff]
      %v506 = vld [vmem:[%s236 + $0x7f0] sm:$0xff]
      %v507 = vld [vmem:[%s236 + $0x7f8] sm:$0xff]
      %v508 = vld [vmem:[%s236 + $0x800] sm:$0xff]
      %v509 = vld [vmem:[%s236 + $0x808] sm:$0xff]
      %v510 = vld [vmem:[%s236 + $0x810] sm:$0xff]
      %v511 = vld [vmem:[%s236 + $0x818] sm:$0xff]
      %v512 = vld [vmem:[%s236 + $0x820] sm:$0xff]
      %v513 = vld [vmem:[%s236 + $0x828] sm:$0xff]
      %v514 = vld [vmem:[%s236 + $0x830] sm:$0xff]
      %v515 = vld [vmem:[%s236 + $0x838] sm:$0xff]
      %v516 = vld [vmem:[%s236 + $0x840] sm:$0xff]
      %v517 = vld [vmem:[%s236 + $0x848] sm:$0xff]
      %v518 = vld [vmem:[%s236 + $0x850] sm:$0xff]
      %v519 = vld [vmem:[%s236 + $0x858] sm:$0xff]
      %v520 = vld [vmem:[%s236 + $0x860] sm:$0xff]
      %v521 = vld [vmem:[%s236 + $0x868] sm:$0xff]
      %v522 = vld [vmem:[%s236 + $0x870] sm:$0xff]
      %v523 = vld [vmem:[%s236 + $0x878] sm:$0xff]
      %v524 = vld [vmem:[%s236 + $0x880] sm:$0xff]
      %v525 = vld [vmem:[%s236 + $0x888] sm:$0xff]
      %v526 = vld [vmem:[%s236 + $0x890] sm:$0xff]
      %v527 = vld [vmem:[%s236 + $0x898] sm:$0xff]
      %v528 = vld [vmem:[%s236 + $0x8a0] sm:$0xff]
      %v529 = vld [vmem:[%s236 + $0x8a8] sm:$0xff]
      %v530 = vld [vmem:[%s236 + $0x8b0] sm:$0xff]
      %v531 = vld [vmem:[%s236 + $0x8b8] sm:$0xff]
      %v532 = vld [vmem:[%s236 + $0x8c0] sm:$0xff]
      %v533 = vld [vmem:[%s236 + $0x8c8] sm:$0xff]
      %v534 = vld [vmem:[%s236 + $0x8d0] sm:$0xff]
      %v535 = vld [vmem:[%s236 + $0x8d8] sm:$0xff]
      %v536 = vld [vmem:[%s236 + $0x8e0] sm:$0xff]
      %v537 = vld [vmem:[%s236 + $0x8e8] sm:$0xff]
      %v538 = vld [vmem:[%s236 + $0x8f0] sm:$0xff]
      %v539 = vld [vmem:[%s236 + $0x8f8] sm:$0xff]
      %v540 = vld [vmem:[%s1] sm:$0xff]
      %v541 = vld [vmem:[%s1 + $0x8] sm:$0xff]
      %v542 = vld [vmem:[%s1 + $0x10] sm:$0xff]
      %v543 = vld [vmem:[%s1 + $0x18] sm:$0xff]
      %v544 = vld [vmem:[%s1 + $0x20] sm:$0xff]
      %v545 = vld [vmem:[%s1 + $0x28] sm:$0xff]
      %v546 = vld [vmem:[%s1 + $0x30] sm:$0xff]
      %v547 = vld [vmem:[%s1 + $0x38] sm:$0xff]
      %v548 = vld [vmem:[%s1 + $0x40] sm:$0xff]
      %v549 = vld [vmem:[%s1 + $0x48] sm:$0xff]
      %v550 = vld [vmem:[%s1 + $0x50] sm:$0xff]
      %v551 = vld [vmem:[%s1 + $0x58] sm:$0xff]
      %v552 = vld [vmem:[%s1 + $0x60] sm:$0xff]
      %v553 = vld [vmem:[%s1 + $0x68] sm:$0xff]
      %v554 = vld [vmem:[%s1 + $0x70] sm:$0xff]
      %v555 = vld [vmem:[%s1 + $0x78] sm:$0xff]
      %v556 = vld [vmem:[%s1 + $0x80] sm:$0xff]
      %v557 = vld [vmem:[%s1 + $0x88] sm:$0xff]
      %v558 = vld [vmem:[%s1 + $0x90] sm:$0xff]
      %v559 = vld [vmem:[%s1 + $0x98] sm:$0xff]
      %v560 = vld [vmem:[%s1 + $0xa0] sm:$0xff]
      %v561 = vld [vmem:[%s1 + $0xa8] sm:$0xff]
      %v562 = vld [vmem:[%s1 + $0xb0] sm:$0xff]
      %v563 = vld [vmem:[%s1 + $0xb8] sm:$0xff]
      %v564 = vld [vmem:[%s1 + $0xc0] sm:$0xff]
      %v565 = vld [vmem:[%s1 + $0xc8] sm:$0xff]
      %v566 = vld [vmem:[%s1 + $0xd0] sm:$0xff]
      %v567 = vld [vmem:[%s1 + $0xd8] sm:$0xff]
      %v568 = vld [vmem:[%s1 + $0xe0] sm:$0xff]
      %v569 = vld [vmem:[%s1 + $0xe8] sm:$0xff]
      %v570 = vld [vmem:[%s1 + $0xf0] sm:$0xff]
      %v571 = vld [vmem:[%s1 + $0xf8] sm:$0xff]
      %v572 = vld [vmem:[%s1 + $0x100] sm:$0xff]
      %v573 = vld [vmem:[%s1 + $0x108] sm:$0xff]
      %v574 = vld [vmem:[%s1 + $0x110] sm:$0xff]
      %v575 = vld [vmem:[%s1 + $0x118] sm:$0xff]
      %v576 = vld [vmem:[%s1 + $0x120] sm:$0xff]
      %v577 = vld [vmem:[%s1 + $0x128] sm:$0xff]
      %v578 = vld [vmem:[%s1 + $0x130] sm:$0xff]
      %v579 = vld [vmem:[%s1 + $0x138] sm:$0xff]
      %v580 = vld [vmem:[%s1 + $0x140] sm:$0xff]
      %v581 = vld [vmem:[%s1 + $0x148] sm:$0xff]
      %v582 = vld [vmem:[%s1 + $0x150] sm:$0xff]
      %v583 = vld [vmem:[%s1 + $0x158] sm:$0xff]
      %v584 = vld [vmem:[%s1 + $0x160] sm:$0xff]
      %v585 = vld [vmem:[%s1 + $0x168] sm:$0xff]
      %v586 = vld [vmem:[%s1 + $0x170] sm:$0xff]
      %v587 = vld [vmem:[%s1 + $0x178] sm:$0xff]
      %v588 = vld [vmem:[%s1 + $0x180] sm:$0xff]
      %v589 = vld [vmem:[%s1 + $0x188] sm:$0xff]
      %v590 = vld [vmem:[%s1 + $0x190] sm:$0xff]
      %v591 = vld [vmem:[%s1 + $0x198] sm:$0xff]
      %v592 = vld [vmem:[%s1 + $0x1a0] sm:$0xff]
      %v593 = vld [vmem:[%s1 + $0x1a8] sm:$0xff]
      %v594 = vld [vmem:[%s1 + $0x1b0] sm:$0xff]
      %v595 = vld [vmem:[%s1 + $0x1b8] sm:$0xff]
      %v596 = vld [vmem:[%s1 + $0x1c0] sm:$0xff]
      %v597 = vld [vmem:[%s1 + $0x1c8] sm:$0xff]
      %v598 = vld [vmem:[%s1 + $0x1d0] sm:$0xff]
      %v599 = vld [vmem:[%s1 + $0x1d8] sm:$0xff]
      %v600 = vld [vmem:[%s1 + $0x1e0] sm:$0xff]
      %v601 = vld [vmem:[%s1 + $0x1e8] sm:$0xff]
      %v602 = vld [vmem:[%s1 + $0x1f0] sm:$0xff]
      %v603 = vld [vmem:[%s1 + $0x1f8] sm:$0xff]
      %v604 = vld [vmem:[%s1 + $0x200] sm:$0xff]
      %v605 = vld [vmem:[%s1 + $0x208] sm:$0xff]
      %v606 = vld [vmem:[%s1 + $0x210] sm:$0xff]
      %v607 = vld [vmem:[%s1 + $0x218] sm:$0xff]
      %v608 = vld [vmem:[%s1 + $0x220] sm:$0xff]
      %v609 = vld [vmem:[%s1 + $0x228] sm:$0xff]
      %v610 = vld [vmem:[%s1 + $0x230] sm:$0xff]
      %v611 = vld [vmem:[%s1 + $0x238] sm:$0xff]
      %v612 = vld [vmem:[%s1 + $0x240] sm:$0xff]
      %v613 = vld [vmem:[%s1 + $0x248] sm:$0xff]
      %v614 = vld [vmem:[%s1 + $0x250] sm:$0xff]
      %v615 = vld [vmem:[%s1 + $0x258] sm:$0xff]
      %v616 = vld [vmem:[%s1 + $0x260] sm:$0xff]
      %v617 = vld [vmem:[%s1 + $0x268] sm:$0xff]
      %v618 = vld [vmem:[%s1 + $0x270] sm:$0xff]
      %v619 = vld [vmem:[%s1 + $0x278] sm:$0xff]
      %v620 = vld [vmem:[%s1 + $0x280] sm:$0xff]
      %v621 = vld [vmem:[%s1 + $0x288] sm:$0xff]
      %v622 = vld [vmem:[%s1 + $0x290] sm:$0xff]
      %v623 = vld [vmem:[%s1 + $0x298] sm:$0xff]
      %v624 = vld [vmem:[%s1 + $0x2a0] sm:$0xff]
      %v625 = vld [vmem:[%s1 + $0x2a8] sm:$0xff]
      %v626 = vld [vmem:[%s1 + $0x2b0] sm:$0xff]
      %v627 = vld [vmem:[%s1 + $0x2b8] sm:$0xff]
      %v628 = vld [vmem:[%s1 + $0x2c0] sm:$0xff]
      %v629 = vld [vmem:[%s1 + $0x2c8] sm:$0xff]
      %v630 = vld [vmem:[%s1 + $0x2d0] sm:$0xff]
      %v631 = vld [vmem:[%s1 + $0x2d8] sm:$0xff]
      %v632 = vld [vmem:[%s1 + $0x2e0] sm:$0xff]
      %v633 = vld [vmem:[%s1 + $0x2e8] sm:$0xff]
      %v634 = vld [vmem:[%s1 + $0x2f0] sm:$0xff]
      %v635 = vld [vmem:[%s1 + $0x2f8] sm:$0xff]
      %v636 = vld [vmem:[%s1 + $0x300] sm:$0xff]
      %v637 = vld [vmem:[%s1 + $0x308] sm:$0xff]
      %v638 = vld [vmem:[%s1 + $0x310] sm:$0xff]
      %v639 = vld [vmem:[%s1 + $0x318] sm:$0xff]
      %v640 = vld [vmem:[%s1 + $0x320] sm:$0xff]
      %v641 = vld [vmem:[%s1 + $0x328] sm:$0xff]
      %v642 = vld [vmem:[%s1 + $0x330] sm:$0xff]
      %v643 = vld [vmem:[%s1 + $0x338] sm:$0xff]
      %v644 = vld [vmem:[%s1 + $0x340] sm:$0xff]
      %v645 = vld [vmem:[%s1 + $0x348] sm:$0xff]
      %v646 = vld [vmem:[%s1 + $0x350] sm:$0xff]
      %v647 = vld [vmem:[%s1 + $0x358] sm:$0xff]
      %v648 = vld [vmem:[%s1 + $0x360] sm:$0xff]
      %v649 = vld [vmem:[%s1 + $0x368] sm:$0xff]
      %v650 = vld [vmem:[%s1 + $0x370] sm:$0xff]
      %v651 = vld [vmem:[%s1 + $0x378] sm:$0xff]
      %v652 = vld [vmem:[%s1 + $0x380] sm:$0xff]
      %v653 = vld [vmem:[%s1 + $0x388] sm:$0xff]
      %v654 = vld [vmem:[%s1 + $0x390] sm:$0xff]
      %v655 = vld [vmem:[%s1 + $0x398] sm:$0xff]
      %v656 = vld [vmem:[%s1 + $0x3a0] sm:$0xff]
      %v657 = vld [vmem:[%s1 + $0x3a8] sm:$0xff]
      %v658 = vld [vmem:[%s1 + $0x3b0] sm:$0xff]
      %v659 = vld [vmem:[%s1 + $0x3b8] sm:$0xff]
      %v660 = vld [vmem:[%s1 + $0x3c0] sm:$0xff]
      %v661 = vld [vmem:[%s1 + $0x3c8] sm:$0xff]
      %v662 = vld [vmem:[%s1 + $0x3d0] sm:$0xff]
      %v663 = vld [vmem:[%s1 + $0x3d8] sm:$0xff]
      %v664 = vld [vmem:[%s1 + $0x3e0] sm:$0xff]
      %v665 = vld [vmem:[%s1 + $0x3e8] sm:$0xff]
      %v666 = vld [vmem:[%s1 + $0x3f0] sm:$0xff]
      %v667 = vld [vmem:[%s1 + $0x3f8] sm:$0xff]
      %v668 = vld [vmem:[%s1 + $0x400] sm:$0xff]
      %v669 = vld [vmem:[%s1 + $0x408] sm:$0xff]
      %v670 = vld [vmem:[%s1 + $0x410] sm:$0xff]
      %v671 = vld [vmem:[%s1 + $0x418] sm:$0xff]
      %v672 = vld [vmem:[%s1 + $0x420] sm:$0xff]
      %v673 = vld [vmem:[%s1 + $0x428] sm:$0xff]
      %v674 = vld [vmem:[%s1 + $0x430] sm:$0xff]
      %v675 = vld [vmem:[%s1 + $0x438] sm:$0xff]
      %v676 = vld [vmem:[%s1 + $0x440] sm:$0xff]
      %v677 = vld [vmem:[%s1 + $0x448] sm:$0xff]
      %v678 = vld [vmem:[%s1 + $0x450] sm:$0xff]
      %v679 = vld [vmem:[%s1 + $0x458] sm:$0xff]
      %v680 = vld [vmem:[%s1 + $0x460] sm:$0xff]
      %v681 = vld [vmem:[%s1 + $0x468] sm:$0xff]
      %v682 = vld [vmem:[%s1 + $0x470] sm:$0xff]
      %v683 = vld [vmem:[%s1 + $0x478] sm:$0xff]
      %v684 = vld [vmem:[%s2] sm:$0x1]
      %v686 = vperm.slane %v684, 0
      %688 = vmatpush.msra.mxu0 %v555
      %689 = vmatpush.msra.mxu0 %v554
      %690 = vmatpush.msra.mxu0 %v553
      %691 = vmatpush.msra.mxu0 %v552
      %692 = vmatpush.msra.mxu0 %v551
      %693 = vmatpush.msra.mxu0 %v550
      %694 = vmatpush.msra.mxu0 %v549
      %695 = vmatpush.msra.mxu0 %v548
      %696 = vmatpush.msra.mxu0 %v547
      %697 = vmatpush.msra.mxu0 %v546
      %698 = vmatpush.msra.mxu0 %v545
      %699 = vmatpush.msra.mxu0 %v544
      %700 = vmatpush.msra.mxu0 %v543
      %701 = vmatpush.msra.mxu0 %v542
      %702 = vmatpush.msra.mxu0 %v541
      %703 = vmatpush.msra.mxu0 %v540
      %704 = vmatmul.f32.gmra.mxu0 %v252
      %v705 = vpop.f32.mrf.mxu0
      %v706 = vadd.f32 %v686, %v705
      %707 = vmatmul.f32.gmra.mxu0 %v261
      %v708 = vpop.f32.mrf.mxu0
      %v709 = vadd.f32 %v686, %v708
      %710 = vmatmul.f32.gmra.mxu0 %v270
      %v711 = vpop.f32.mrf.mxu0
      %v712 = vadd.f32 %v686, %v711
      %713 = vmatmul.f32.gmra.mxu0 %v279
      %v714 = vpop.f32.mrf.mxu0
      %v715 = vadd.f32 %v686, %v714
      %716 = vmatmul.f32.gmra.mxu0 %v288
      %v717 = vpop.f32.mrf.mxu0
      %v718 = vadd.f32 %v686, %v717
      %719 = vmatmul.f32.gmra.mxu0 %v297
      %v720 = vpop.f32.mrf.mxu0
      %v721 = vadd.f32 %v686, %v720
      %722 = vmatmul.f32.gmra.mxu0 %v306
      %v723 = vpop.f32.mrf.mxu0
      %v724 = vadd.f32 %v686, %v723
      %725 = vmatmul.f32.gmra.mxu0 %v315
      %v726 = vpop.f32.mrf.mxu0
      %v727 = vadd.f32 %v686, %v726
      %728 = vmatmul.f32.gmra.mxu0 %v324
      %v729 = vpop.f32.mrf.mxu0
      %v730 = vadd.f32 %v686, %v729
      %731 = vmatmul.f32.gmra.mxu0 %v333
      %v732 = vpop.f32.mrf.mxu0
      %v733 = vadd.f32 %v686, %v732
      %734 = vmatmul.f32.gmra.mxu0 %v342
      %v735 = vpop.f32.mrf.mxu0
      %v736 = vadd.f32 %v686, %v735
      %737 = vmatmul.f32.gmra.mxu0 %v351
      %v738 = vpop.f32.mrf.mxu0
      %v739 = vadd.f32 %v686, %v738
      %740 = vmatmul.f32.gmra.mxu0 %v360
      %v741 = vpop.f32.mrf.mxu0
      %v742 = vadd.f32 %v686, %v741
      %743 = vmatmul.f32.gmra.mxu0 %v369
      %v744 = vpop.f32.mrf.mxu0
      %v745 = vadd.f32 %v686, %v744
      %746 = vmatmul.f32.gmra.mxu0 %v378
      %v747 = vpop.f32.mrf.mxu0
      %v748 = vadd.f32 %v686, %v747
      %749 = vmatmul.f32.gmra.mxu0 %v387
      %v750 = vpop.f32.mrf.mxu0
      %v751 = vadd.f32 %v686, %v750
      %752 = vmatmul.f32.gmra.mxu0 %v396
      %v753 = vpop.f32.mrf.mxu0
      %v754 = vadd.f32 %v686, %v753
      %755 = vmatmul.f32.gmra.mxu0 %v405
      %v756 = vpop.f32.mrf.mxu0
      %v757 = vadd.f32 %v686, %v756
      %758 = vmatmul.f32.gmra.mxu0 %v414
      %v759 = vpop.f32.mrf.mxu0
      %v760 = vadd.f32 %v686, %v759
      %761 = vmatmul.f32.gmra.mxu0 %v423
      %v762 = vpop.f32.mrf.mxu0
      %v763 = vadd.f32 %v686, %v762
      %764 = vmatmul.f32.gmra.mxu0 %v432
      %v765 = vpop.f32.mrf.mxu0
      %v766 = vadd.f32 %v686, %v765
      %767 = vmatmul.f32.gmra.mxu0 %v441
      %v768 = vpop.f32.mrf.mxu0
      %v769 = vadd.f32 %v686, %v768
      %770 = vmatmul.f32.gmra.mxu0 %v450
      %v771 = vpop.f32.mrf.mxu0
      %v772 = vadd.f32 %v686, %v771
      %773 = vmatmul.f32.gmra.mxu0 %v459
      %v774 = vpop.f32.mrf.mxu0
      %v775 = vadd.f32 %v686, %v774
      %776 = vmatmul.f32.gmra.mxu0 %v468
      %v777 = vpop.f32.mrf.mxu0
      %v778 = vadd.f32 %v686, %v777
      %779 = vmatmul.f32.gmra.mxu0 %v477
      %v780 = vpop.f32.mrf.mxu0
      %v781 = vadd.f32 %v686, %v780
      %782 = vmatmul.f32.gmra.mxu0 %v486
      %v783 = vpop.f32.mrf.mxu0
      %v784 = vadd.f32 %v686, %v783
      %785 = vmatmul.f32.gmra.mxu0 %v495
      %v786 = vpop.f32.mrf.mxu0
      %v787 = vadd.f32 %v686, %v786
      %788 = vmatmul.f32.gmra.mxu0 %v504
      %v789 = vpop.f32.mrf.mxu0
      %v790 = vadd.f32 %v686, %v789
      %791 = vmatmul.f32.gmra.mxu0 %v513
      %v792 = vpop.f32.mrf.mxu0
      %v793 = vadd.f32 %v686, %v792
      %794 = vmatmul.f32.gmra.mxu0 %v522
      %v795 = vpop.f32.mrf.mxu0
      %v796 = vadd.f32 %v686, %v795
      %797 = vmatmul.f32.gmra.mxu0 %v531
      %v798 = vpop.f32.mrf.mxu0
      %v799 = vadd.f32 %v686, %v798
      %800 = vdwg.mxu0
      %801 = vmatpush.msra.mxu0 %v571
      %802 = vmatpush.msra.mxu0 %v570
      %803 = vmatpush.msra.mxu0 %v569
      %804 = vmatpush.msra.mxu0 %v568
      %805 = vmatpush.msra.mxu0 %v567
      %806 = vmatpush.msra.mxu0 %v566
      %807 = vmatpush.msra.mxu0 %v565
      %808 = vmatpush.msra.mxu0 %v564
      %809 = vmatpush.msra.mxu0 %v563
      %810 = vmatpush.msra.mxu0 %v562
      %811 = vmatpush.msra.mxu0 %v561
      %812 = vmatpush.msra.mxu0 %v560
      %813 = vmatpush.msra.mxu0 %v559
      %814 = vmatpush.msra.mxu0 %v558
      %815 = vmatpush.msra.mxu0 %v557
      %816 = vmatpush.msra.mxu0 %v556
      %817 = vmatmul.f32.gmra.mxu0 %v253
      %v818 = vpop.f32.mrf.mxu0
      %v819 = vadd.f32 %v706, %v818
      %820 = vmatmul.f32.gmra.mxu0 %v262
      %v821 = vpop.f32.mrf.mxu0
      %v822 = vadd.f32 %v709, %v821
      %823 = vmatmul.f32.gmra.mxu0 %v271
      %v824 = vpop.f32.mrf.mxu0
      %v825 = vadd.f32 %v712, %v824
      %826 = vmatmul.f32.gmra.mxu0 %v280
      %v827 = vpop.f32.mrf.mxu0
      %v828 = vadd.f32 %v715, %v827
      %829 = vmatmul.f32.gmra.mxu0 %v289
      %v830 = vpop.f32.mrf.mxu0
      %v831 = vadd.f32 %v718, %v830
      %832 = vmatmul.f32.gmra.mxu0 %v298
      %v833 = vpop.f32.mrf.mxu0
      %v834 = vadd.f32 %v721, %v833
      %835 = vmatmul.f32.gmra.mxu0 %v307
      %v836 = vpop.f32.mrf.mxu0
      %v837 = vadd.f32 %v724, %v836
      %838 = vmatmul.f32.gmra.mxu0 %v316
      %v839 = vpop.f32.mrf.mxu0
      %v840 = vadd.f32 %v727, %v839
      %841 = vmatmul.f32.gmra.mxu0 %v325
      %v842 = vpop.f32.mrf.mxu0
      %v843 = vadd.f32 %v730, %v842
      %844 = vmatmul.f32.gmra.mxu0 %v334
      %v845 = vpop.f32.mrf.mxu0
      %v846 = vadd.f32 %v733, %v845
      %847 = vmatmul.f32.gmra.mxu0 %v343
      %v848 = vpop.f32.mrf.mxu0
      %v849 = vadd.f32 %v736, %v848
      %850 = vmatmul.f32.gmra.mxu0 %v352
      %v851 = vpop.f32.mrf.mxu0
      %v852 = vadd.f32 %v739, %v851
      %853 = vmatmul.f32.gmra.mxu0 %v361
      %v854 = vpop.f32.mrf.mxu0
      %v855 = vadd.f32 %v742, %v854
      %856 = vmatmul.f32.gmra.mxu0 %v370
      %v857 = vpop.f32.mrf.mxu0
      %v858 = vadd.f32 %v745, %v857
      %859 = vmatmul.f32.gmra.mxu0 %v379
      %v860 = vpop.f32.mrf.mxu0
      %v861 = vadd.f32 %v748, %v860
      %862 = vmatmul.f32.gmra.mxu0 %v388
      %v863 = vpop.f32.mrf.mxu0
      %v864 = vadd.f32 %v751, %v863
      %865 = vmatmul.f32.gmra.mxu0 %v397
      %v866 = vpop.f32.mrf.mxu0
      %v867 = vadd.f32 %v754, %v866
      %868 = vmatmul.f32.gmra.mxu0 %v406
      %v869 = vpop.f32.mrf.mxu0
      %v870 = vadd.f32 %v757, %v869
      %871 = vmatmul.f32.gmra.mxu0 %v415
      %v872 = vpop.f32.mrf.mxu0
      %v873 = vadd.f32 %v760, %v872
      %874 = vmatmul.f32.gmra.mxu0 %v424
      %v875 = vpop.f32.mrf.mxu0
      %v876 = vadd.f32 %v763, %v875
      %877 = vmatmul.f32.gmra.mxu0 %v433
      %v878 = vpop.f32.mrf.mxu0
      %v879 = vadd.f32 %v766, %v878
      %880 = vmatmul.f32.gmra.mxu0 %v442
      %v881 = vpop.f32.mrf.mxu0
      %v882 = vadd.f32 %v769, %v881
      %883 = vmatmul.f32.gmra.mxu0 %v451
      %v884 = vpop.f32.mrf.mxu0
      %v885 = vadd.f32 %v772, %v884
      %886 = vmatmul.f32.gmra.mxu0 %v460
      %v887 = vpop.f32.mrf.mxu0
      %v888 = vadd.f32 %v775, %v887
      %889 = vmatmul.f32.gmra.mxu0 %v469
      %v890 = vpop.f32.mrf.mxu0
      %v891 = vadd.f32 %v778, %v890
      %892 = vmatmul.f32.gmra.mxu0 %v478
      %v893 = vpop.f32.mrf.mxu0
      %v894 = vadd.f32 %v781, %v893
      %895 = vmatmul.f32.gmra.mxu0 %v487
      %v896 = vpop.f32.mrf.mxu0
      %v897 = vadd.f32 %v784, %v896
      %898 = vmatmul.f32.gmra.mxu0 %v496
      %v899 = vpop.f32.mrf.mxu0
      %v900 = vadd.f32 %v787, %v899
      %901 = vmatmul.f32.gmra.mxu0 %v505
      %v902 = vpop.f32.mrf.mxu0
      %v903 = vadd.f32 %v790, %v902
      %904 = vmatmul.f32.gmra.mxu0 %v514
      %v905 = vpop.f32.mrf.mxu0
      %v906 = vadd.f32 %v793, %v905
      %907 = vmatmul.f32.gmra.mxu0 %v523
      %v908 = vpop.f32.mrf.mxu0
      %v909 = vadd.f32 %v796, %v908
      %910 = vmatmul.f32.gmra.mxu0 %v532
      %v911 = vpop.f32.mrf.mxu0
      %v912 = vadd.f32 %v799, %v911
      %913 = vdwg.mxu0
      %914 = vmatpush.msra.mxu0 %v587
      %915 = vmatpush.msra.mxu0 %v586
      %916 = vmatpush.msra.mxu0 %v585
      %917 = vmatpush.msra.mxu0 %v584
      %918 = vmatpush.msra.mxu0 %v583
      %919 = vmatpush.msra.mxu0 %v582
      %920 = vmatpush.msra.mxu0 %v581
      %921 = vmatpush.msra.mxu0 %v580
      %922 = vmatpush.msra.mxu0 %v579
      %923 = vmatpush.msra.mxu0 %v578
      %924 = vmatpush.msra.mxu0 %v577
      %925 = vmatpush.msra.mxu0 %v576
      %926 = vmatpush.msra.mxu0 %v575
      %927 = vmatpush.msra.mxu0 %v574
      %928 = vmatpush.msra.mxu0 %v573
      %929 = vmatpush.msra.mxu0 %v572
      %930 = vmatmul.f32.gmra.mxu0 %v254
      %v931 = vpop.f32.mrf.mxu0
      %v932 = vadd.f32 %v819, %v931
      %933 = vmatmul.f32.gmra.mxu0 %v263
      %v934 = vpop.f32.mrf.mxu0
      %v935 = vadd.f32 %v822, %v934
      %936 = vmatmul.f32.gmra.mxu0 %v272
      %v937 = vpop.f32.mrf.mxu0
      %v938 = vadd.f32 %v825, %v937
      %939 = vmatmul.f32.gmra.mxu0 %v281
      %v940 = vpop.f32.mrf.mxu0
      %v941 = vadd.f32 %v828, %v940
      %942 = vmatmul.f32.gmra.mxu0 %v290
      %v943 = vpop.f32.mrf.mxu0
      %v944 = vadd.f32 %v831, %v943
      %945 = vmatmul.f32.gmra.mxu0 %v299
      %v946 = vpop.f32.mrf.mxu0
      %v947 = vadd.f32 %v834, %v946
      %948 = vmatmul.f32.gmra.mxu0 %v308
      %v949 = vpop.f32.mrf.mxu0
      %v950 = vadd.f32 %v837, %v949
      %951 = vmatmul.f32.gmra.mxu0 %v317
      %v952 = vpop.f32.mrf.mxu0
      %v953 = vadd.f32 %v840, %v952
      %954 = vmatmul.f32.gmra.mxu0 %v326
      %v955 = vpop.f32.mrf.mxu0
      %v956 = vadd.f32 %v843, %v955
      %957 = vmatmul.f32.gmra.mxu0 %v335
      %v958 = vpop.f32.mrf.mxu0
      %v959 = vadd.f32 %v846, %v958
      %960 = vmatmul.f32.gmra.mxu0 %v344
      %v961 = vpop.f32.mrf.mxu0
      %v962 = vadd.f32 %v849, %v961
      %963 = vmatmul.f32.gmra.mxu0 %v353
      %v964 = vpop.f32.mrf.mxu0
      %v965 = vadd.f32 %v852, %v964
      %966 = vmatmul.f32.gmra.mxu0 %v362
      %v967 = vpop.f32.mrf.mxu0
      %v968 = vadd.f32 %v855, %v967
      %969 = vmatmul.f32.gmra.mxu0 %v371
      %v970 = vpop.f32.mrf.mxu0
      %v971 = vadd.f32 %v858, %v970
      %972 = vmatmul.f32.gmra.mxu0 %v380
      %v973 = vpop.f32.mrf.mxu0
      %v974 = vadd.f32 %v861, %v973
      %975 = vmatmul.f32.gmra.mxu0 %v389
      %v976 = vpop.f32.mrf.mxu0
      %v977 = vadd.f32 %v864, %v976
      %978 = vmatmul.f32.gmra.mxu0 %v398
      %v979 = vpop.f32.mrf.mxu0
      %v980 = vadd.f32 %v867, %v979
      %981 = vmatmul.f32.gmra.mxu0 %v407
      %v982 = vpop.f32.mrf.mxu0
      %v983 = vadd.f32 %v870, %v982
      %984 = vmatmul.f32.gmra.mxu0 %v416
      %v985 = vpop.f32.mrf.mxu0
      %v986 = vadd.f32 %v873, %v985
      %987 = vmatmul.f32.gmra.mxu0 %v425
      %v988 = vpop.f32.mrf.mxu0
      %v989 = vadd.f32 %v876, %v988
      %990 = vmatmul.f32.gmra.mxu0 %v434
      %v991 = vpop.f32.mrf.mxu0
      %v992 = vadd.f32 %v879, %v991
      %993 = vmatmul.f32.gmra.mxu0 %v443
      %v994 = vpop.f32.mrf.mxu0
      %v995 = vadd.f32 %v882, %v994
      %996 = vmatmul.f32.gmra.mxu0 %v452
      %v997 = vpop.f32.mrf.mxu0
      %v998 = vadd.f32 %v885, %v997
      %999 = vmatmul.f32.gmra.mxu0 %v461
      %v1000 = vpop.f32.mrf.mxu0
      %v1001 = vadd.f32 %v888, %v1000
      %1002 = vmatmul.f32.gmra.mxu0 %v470
      %v1003 = vpop.f32.mrf.mxu0
      %v1004 = vadd.f32 %v891, %v1003
      %1005 = vmatmul.f32.gmra.mxu0 %v479
      %v1006 = vpop.f32.mrf.mxu0
      %v1007 = vadd.f32 %v894, %v1006
      %1008 = vmatmul.f32.gmra.mxu0 %v488
      %v1009 = vpop.f32.mrf.mxu0
      %v1010 = vadd.f32 %v897, %v1009
      %1011 = vmatmul.f32.gmra.mxu0 %v497
      %v1012 = vpop.f32.mrf.mxu0
      %v1013 = vadd.f32 %v900, %v1012
      %1014 = vmatmul.f32.gmra.mxu0 %v506
      %v1015 = vpop.f32.mrf.mxu0
      %v1016 = vadd.f32 %v903, %v1015
      %1017 = vmatmul.f32.gmra.mxu0 %v515
      %v1018 = vpop.f32.mrf.mxu0
      %v1019 = vadd.f32 %v906, %v1018
      %1020 = vmatmul.f32.gmra.mxu0 %v524
      %v1021 = vpop.f32.mrf.mxu0
      %v1022 = vadd.f32 %v909, %v1021
      %1023 = vmatmul.f32.gmra.mxu0 %v533
      %v1024 = vpop.f32.mrf.mxu0
      %v1025 = vadd.f32 %v912, %v1024
      %1026 = vdwg.mxu0
      %1027 = vmatpush.msra.mxu0 %v603
      %1028 = vmatpush.msra.mxu0 %v602
      %1029 = vmatpush.msra.mxu0 %v601
      %1030 = vmatpush.msra.mxu0 %v600
      %1031 = vmatpush.msra.mxu0 %v599
      %1032 = vmatpush.msra.mxu0 %v598
      %1033 = vmatpush.msra.mxu0 %v597
      %1034 = vmatpush.msra.mxu0 %v596
      %1035 = vmatpush.msra.mxu0 %v595
      %1036 = vmatpush.msra.mxu0 %v594
      %1037 = vmatpush.msra.mxu0 %v593
      %1038 = vmatpush.msra.mxu0 %v592
      %1039 = vmatpush.msra.mxu0 %v591
      %1040 = vmatpush.msra.mxu0 %v590
      %1041 = vmatpush.msra.mxu0 %v589
      %1042 = vmatpush.msra.mxu0 %v588
      %1043 = vmatmul.f32.gmra.mxu0 %v255
      %v1044 = vpop.f32.mrf.mxu0
      %v1045 = vadd.f32 %v932, %v1044
      %1046 = vmatmul.f32.gmra.mxu0 %v264
      %v1047 = vpop.f32.mrf.mxu0
      %v1048 = vadd.f32 %v935, %v1047
      %1049 = vmatmul.f32.gmra.mxu0 %v273
      %v1050 = vpop.f32.mrf.mxu0
      %v1051 = vadd.f32 %v938, %v1050
      %1052 = vmatmul.f32.gmra.mxu0 %v282
      %v1053 = vpop.f32.mrf.mxu0
      %v1054 = vadd.f32 %v941, %v1053
      %1055 = vmatmul.f32.gmra.mxu0 %v291
      %v1056 = vpop.f32.mrf.mxu0
      %v1057 = vadd.f32 %v944, %v1056
      %1058 = vmatmul.f32.gmra.mxu0 %v300
      %v1059 = vpop.f32.mrf.mxu0
      %v1060 = vadd.f32 %v947, %v1059
      %1061 = vmatmul.f32.gmra.mxu0 %v309
      %v1062 = vpop.f32.mrf.mxu0
      %v1063 = vadd.f32 %v950, %v1062
      %1064 = vmatmul.f32.gmra.mxu0 %v318
      %v1065 = vpop.f32.mrf.mxu0
      %v1066 = vadd.f32 %v953, %v1065
      %1067 = vmatmul.f32.gmra.mxu0 %v327
      %v1068 = vpop.f32.mrf.mxu0
      %v1069 = vadd.f32 %v956, %v1068
      %1070 = vmatmul.f32.gmra.mxu0 %v336
      %v1071 = vpop.f32.mrf.mxu0
      %v1072 = vadd.f32 %v959, %v1071
      %1073 = vmatmul.f32.gmra.mxu0 %v345
      %v1074 = vpop.f32.mrf.mxu0
      %v1075 = vadd.f32 %v962, %v1074
      %1076 = vmatmul.f32.gmra.mxu0 %v354
      %v1077 = vpop.f32.mrf.mxu0
      %v1078 = vadd.f32 %v965, %v1077
      %1079 = vmatmul.f32.gmra.mxu0 %v363
      %v1080 = vpop.f32.mrf.mxu0
      %v1081 = vadd.f32 %v968, %v1080
      %1082 = vmatmul.f32.gmra.mxu0 %v372
      %v1083 = vpop.f32.mrf.mxu0
      %v1084 = vadd.f32 %v971, %v1083
      %1085 = vmatmul.f32.gmra.mxu0 %v381
      %v1086 = vpop.f32.mrf.mxu0
      %v1087 = vadd.f32 %v974, %v1086
      %1088 = vmatmul.f32.gmra.mxu0 %v390
      %v1089 = vpop.f32.mrf.mxu0
      %v1090 = vadd.f32 %v977, %v1089
      %1091 = vmatmul.f32.gmra.mxu0 %v399
      %v1092 = vpop.f32.mrf.mxu0
      %v1093 = vadd.f32 %v980, %v1092
      %1094 = vmatmul.f32.gmra.mxu0 %v408
      %v1095 = vpop.f32.mrf.mxu0
      %v1096 = vadd.f32 %v983, %v1095
      %1097 = vmatmul.f32.gmra.mxu0 %v417
      %v1098 = vpop.f32.mrf.mxu0
      %v1099 = vadd.f32 %v986, %v1098
      %1100 = vmatmul.f32.gmra.mxu0 %v426
      %v1101 = vpop.f32.mrf.mxu0
      %v1102 = vadd.f32 %v989, %v1101
      %1103 = vmatmul.f32.gmra.mxu0 %v435
      %v1104 = vpop.f32.mrf.mxu0
      %v1105 = vadd.f32 %v992, %v1104
      %1106 = vmatmul.f32.gmra.mxu0 %v444
      %v1107 = vpop.f32.mrf.mxu0
      %v1108 = vadd.f32 %v995, %v1107
      %1109 = vmatmul.f32.gmra.mxu0 %v453
      %v1110 = vpop.f32.mrf.mxu0
      %v1111 = vadd.f32 %v998, %v1110
      %1112 = vmatmul.f32.gmra.mxu0 %v462
      %v1113 = vpop.f32.mrf.mxu0
      %v1114 = vadd.f32 %v1001, %v1113
      %1115 = vmatmul.f32.gmra.mxu0 %v471
      %v1116 = vpop.f32.mrf.mxu0
      %v1117 = vadd.f32 %v1004, %v1116
      %1118 = vmatmul.f32.gmra.mxu0 %v480
      %v1119 = vpop.f32.mrf.mxu0
      %v1120 = vadd.f32 %v1007, %v1119
      %1121 = vmatmul.f32.gmra.mxu0 %v489
      %v1122 = vpop.f32.mrf.mxu0
      %v1123 = vadd.f32 %v1010, %v1122
      %1124 = vmatmul.f32.gmra.mxu0 %v498
      %v1125 = vpop.f32.mrf.mxu0
      %v1126 = vadd.f32 %v1013, %v1125
      %1127 = vmatmul.f32.gmra.mxu0 %v507
      %v1128 = vpop.f32.mrf.mxu0
      %v1129 = vadd.f32 %v1016, %v1128
      %1130 = vmatmul.f32.gmra.mxu0 %v516
      %v1131 = vpop.f32.mrf.mxu0
      %v1132 = vadd.f32 %v1019, %v1131
      %1133 = vmatmul.f32.gmra.mxu0 %v525
      %v1134 = vpop.f32.mrf.mxu0
      %v1135 = vadd.f32 %v1022, %v1134
      %1136 = vmatmul.f32.gmra.mxu0 %v534
      %v1137 = vpop.f32.mrf.mxu0
      %v1138 = vadd.f32 %v1025, %v1137
      %1139 = vdwg.mxu0
      %1140 = vmatpush.msra.mxu0 %v619
      %1141 = vmatpush.msra.mxu0 %v618
      %1142 = vmatpush.msra.mxu0 %v617
      %1143 = vmatpush.msra.mxu0 %v616
      %1144 = vmatpush.msra.mxu0 %v615
      %1145 = vmatpush.msra.mxu0 %v614
      %1146 = vmatpush.msra.mxu0 %v613
      %1147 = vmatpush.msra.mxu0 %v612
      %1148 = vmatpush.msra.mxu0 %v611
      %1149 = vmatpush.msra.mxu0 %v610
      %1150 = vmatpush.msra.mxu0 %v609
      %1151 = vmatpush.msra.mxu0 %v608
      %1152 = vmatpush.msra.mxu0 %v607
      %1153 = vmatpush.msra.mxu0 %v606
      %1154 = vmatpush.msra.mxu0 %v605
      %1155 = vmatpush.msra.mxu0 %v604
      %1156 = vmatmul.f32.gmra.mxu0 %v256
      %v1157 = vpop.f32.mrf.mxu0
      %v1158 = vadd.f32 %v1045, %v1157
      %1159 = vmatmul.f32.gmra.mxu0 %v265
      %v1160 = vpop.f32.mrf.mxu0
      %v1161 = vadd.f32 %v1048, %v1160
      %1162 = vmatmul.f32.gmra.mxu0 %v274
      %v1163 = vpop.f32.mrf.mxu0
      %v1164 = vadd.f32 %v1051, %v1163
      %1165 = vmatmul.f32.gmra.mxu0 %v283
      %v1166 = vpop.f32.mrf.mxu0
      %v1167 = vadd.f32 %v1054, %v1166
      %1168 = vmatmul.f32.gmra.mxu0 %v292
      %v1169 = vpop.f32.mrf.mxu0
      %v1170 = vadd.f32 %v1057, %v1169
      %1171 = vmatmul.f32.gmra.mxu0 %v301
      %v1172 = vpop.f32.mrf.mxu0
      %v1173 = vadd.f32 %v1060, %v1172
      %1174 = vmatmul.f32.gmra.mxu0 %v310
      %v1175 = vpop.f32.mrf.mxu0
      %v1176 = vadd.f32 %v1063, %v1175
      %1177 = vmatmul.f32.gmra.mxu0 %v319
      %v1178 = vpop.f32.mrf.mxu0
      %v1179 = vadd.f32 %v1066, %v1178
      %1180 = vmatmul.f32.gmra.mxu0 %v328
      %v1181 = vpop.f32.mrf.mxu0
      %v1182 = vadd.f32 %v1069, %v1181
      %1183 = vmatmul.f32.gmra.mxu0 %v337
      %v1184 = vpop.f32.mrf.mxu0
      %v1185 = vadd.f32 %v1072, %v1184
      %1186 = vmatmul.f32.gmra.mxu0 %v346
      %v1187 = vpop.f32.mrf.mxu0
      %v1188 = vadd.f32 %v1075, %v1187
      %1189 = vmatmul.f32.gmra.mxu0 %v355
      %v1190 = vpop.f32.mrf.mxu0
      %v1191 = vadd.f32 %v1078, %v1190
      %1192 = vmatmul.f32.gmra.mxu0 %v364
      %v1193 = vpop.f32.mrf.mxu0
      %v1194 = vadd.f32 %v1081, %v1193
      %1195 = vmatmul.f32.gmra.mxu0 %v373
      %v1196 = vpop.f32.mrf.mxu0
      %v1197 = vadd.f32 %v1084, %v1196
      %1198 = vmatmul.f32.gmra.mxu0 %v382
      %v1199 = vpop.f32.mrf.mxu0
      %v1200 = vadd.f32 %v1087, %v1199
      %1201 = vmatmul.f32.gmra.mxu0 %v391
      %v1202 = vpop.f32.mrf.mxu0
      %v1203 = vadd.f32 %v1090, %v1202
      %1204 = vmatmul.f32.gmra.mxu0 %v400
      %v1205 = vpop.f32.mrf.mxu0
      %v1206 = vadd.f32 %v1093, %v1205
      %1207 = vmatmul.f32.gmra.mxu0 %v409
      %v1208 = vpop.f32.mrf.mxu0
      %v1209 = vadd.f32 %v1096, %v1208
      %1210 = vmatmul.f32.gmra.mxu0 %v418
      %v1211 = vpop.f32.mrf.mxu0
      %v1212 = vadd.f32 %v1099, %v1211
      %1213 = vmatmul.f32.gmra.mxu0 %v427
      %v1214 = vpop.f32.mrf.mxu0
      %v1215 = vadd.f32 %v1102, %v1214
      %1216 = vmatmul.f32.gmra.mxu0 %v436
      %v1217 = vpop.f32.mrf.mxu0
      %v1218 = vadd.f32 %v1105, %v1217
      %1219 = vmatmul.f32.gmra.mxu0 %v445
      %v1220 = vpop.f32.mrf.mxu0
      %v1221 = vadd.f32 %v1108, %v1220
      %1222 = vmatmul.f32.gmra.mxu0 %v454
      %v1223 = vpop.f32.mrf.mxu0
      %v1224 = vadd.f32 %v1111, %v1223
      %1225 = vmatmul.f32.gmra.mxu0 %v463
      %v1226 = vpop.f32.mrf.mxu0
      %v1227 = vadd.f32 %v1114, %v1226
      %1228 = vmatmul.f32.gmra.mxu0 %v472
      %v1229 = vpop.f32.mrf.mxu0
      %v1230 = vadd.f32 %v1117, %v1229
      %1231 = vmatmul.f32.gmra.mxu0 %v481
      %v1232 = vpop.f32.mrf.mxu0
      %v1233 = vadd.f32 %v1120, %v1232
      %1234 = vmatmul.f32.gmra.mxu0 %v490
      %v1235 = vpop.f32.mrf.mxu0
      %v1236 = vadd.f32 %v1123, %v1235
      %1237 = vmatmul.f32.gmra.mxu0 %v499
      %v1238 = vpop.f32.mrf.mxu0
      %v1239 = vadd.f32 %v1126, %v1238
      %1240 = vmatmul.f32.gmra.mxu0 %v508
      %v1241 = vpop.f32.mrf.mxu0
      %v1242 = vadd.f32 %v1129, %v1241
      %1243 = vmatmul.f32.gmra.mxu0 %v517
      %v1244 = vpop.f32.mrf.mxu0
      %v1245 = vadd.f32 %v1132, %v1244
      %1246 = vmatmul.f32.gmra.mxu0 %v526
      %v1247 = vpop.f32.mrf.mxu0
      %v1248 = vadd.f32 %v1135, %v1247
      %1249 = vmatmul.f32.gmra.mxu0 %v535
      %v1250 = vpop.f32.mrf.mxu0
      %v1251 = vadd.f32 %v1138, %v1250
      %1252 = vdwg.mxu0
      %1253 = vmatpush.msra.mxu0 %v635
      %1254 = vmatpush.msra.mxu0 %v634
      %1255 = vmatpush.msra.mxu0 %v633
      %1256 = vmatpush.msra.mxu0 %v632
      %1257 = vmatpush.msra.mxu0 %v631
      %1258 = vmatpush.msra.mxu0 %v630
      %1259 = vmatpush.msra.mxu0 %v629
      %1260 = vmatpush.msra.mxu0 %v628
      %1261 = vmatpush.msra.mxu0 %v627
      %1262 = vmatpush.msra.mxu0 %v626
      %1263 = vmatpush.msra.mxu0 %v625
      %1264 = vmatpush.msra.mxu0 %v624
      %1265 = vmatpush.msra.mxu0 %v623
      %1266 = vmatpush.msra.mxu0 %v622
      %1267 = vmatpush.msra.mxu0 %v621
      %1268 = vmatpush.msra.mxu0 %v620
      %1269 = vmatmul.f32.gmra.mxu0 %v257
      %v1270 = vpop.f32.mrf.mxu0
      %v1271 = vadd.f32 %v1158, %v1270
      %1272 = vmatmul.f32.gmra.mxu0 %v266
      %v1273 = vpop.f32.mrf.mxu0
      %v1274 = vadd.f32 %v1161, %v1273
      %1275 = vmatmul.f32.gmra.mxu0 %v275
      %v1276 = vpop.f32.mrf.mxu0
      %v1277 = vadd.f32 %v1164, %v1276
      %1278 = vmatmul.f32.gmra.mxu0 %v284
      %v1279 = vpop.f32.mrf.mxu0
      %v1280 = vadd.f32 %v1167, %v1279
      %1281 = vmatmul.f32.gmra.mxu0 %v293
      %v1282 = vpop.f32.mrf.mxu0
      %v1283 = vadd.f32 %v1170, %v1282
      %1284 = vmatmul.f32.gmra.mxu0 %v302
      %v1285 = vpop.f32.mrf.mxu0
      %v1286 = vadd.f32 %v1173, %v1285
      %1287 = vmatmul.f32.gmra.mxu0 %v311
      %v1288 = vpop.f32.mrf.mxu0
      %v1289 = vadd.f32 %v1176, %v1288
      %1290 = vmatmul.f32.gmra.mxu0 %v320
      %v1291 = vpop.f32.mrf.mxu0
      %v1292 = vadd.f32 %v1179, %v1291
      %1293 = vmatmul.f32.gmra.mxu0 %v329
      %v1294 = vpop.f32.mrf.mxu0
      %v1295 = vadd.f32 %v1182, %v1294
      %1296 = vmatmul.f32.gmra.mxu0 %v338
      %v1297 = vpop.f32.mrf.mxu0
      %v1298 = vadd.f32 %v1185, %v1297
      %1299 = vmatmul.f32.gmra.mxu0 %v347
      %v1300 = vpop.f32.mrf.mxu0
      %v1301 = vadd.f32 %v1188, %v1300
      %1302 = vmatmul.f32.gmra.mxu0 %v356
      %v1303 = vpop.f32.mrf.mxu0
      %v1304 = vadd.f32 %v1191, %v1303
      %1305 = vmatmul.f32.gmra.mxu0 %v365
      %v1306 = vpop.f32.mrf.mxu0
      %v1307 = vadd.f32 %v1194, %v1306
      %1308 = vmatmul.f32.gmra.mxu0 %v374
      %v1309 = vpop.f32.mrf.mxu0
      %v1310 = vadd.f32 %v1197, %v1309
      %1311 = vmatmul.f32.gmra.mxu0 %v383
      %v1312 = vpop.f32.mrf.mxu0
      %v1313 = vadd.f32 %v1200, %v1312
      %1314 = vmatmul.f32.gmra.mxu0 %v392
      %v1315 = vpop.f32.mrf.mxu0
      %v1316 = vadd.f32 %v1203, %v1315
      %1317 = vmatmul.f32.gmra.mxu0 %v401
      %v1318 = vpop.f32.mrf.mxu0
      %v1319 = vadd.f32 %v1206, %v1318
      %1320 = vmatmul.f32.gmra.mxu0 %v410
      %v1321 = vpop.f32.mrf.mxu0
      %v1322 = vadd.f32 %v1209, %v1321
      %1323 = vmatmul.f32.gmra.mxu0 %v419
      %v1324 = vpop.f32.mrf.mxu0
      %v1325 = vadd.f32 %v1212, %v1324
      %1326 = vmatmul.f32.gmra.mxu0 %v428
      %v1327 = vpop.f32.mrf.mxu0
      %v1328 = vadd.f32 %v1215, %v1327
      %1329 = vmatmul.f32.gmra.mxu0 %v437
      %v1330 = vpop.f32.mrf.mxu0
      %v1331 = vadd.f32 %v1218, %v1330
      %1332 = vmatmul.f32.gmra.mxu0 %v446
      %v1333 = vpop.f32.mrf.mxu0
      %v1334 = vadd.f32 %v1221, %v1333
      %1335 = vmatmul.f32.gmra.mxu0 %v455
      %v1336 = vpop.f32.mrf.mxu0
      %v1337 = vadd.f32 %v1224, %v1336
      %1338 = vmatmul.f32.gmra.mxu0 %v464
      %v1339 = vpop.f32.mrf.mxu0
      %v1340 = vadd.f32 %v1227, %v1339
      %1341 = vmatmul.f32.gmra.mxu0 %v473
      %v1342 = vpop.f32.mrf.mxu0
      %v1343 = vadd.f32 %v1230, %v1342
      %1344 = vmatmul.f32.gmra.mxu0 %v482
      %v1345 = vpop.f32.mrf.mxu0
      %v1346 = vadd.f32 %v1233, %v1345
      %1347 = vmatmul.f32.gmra.mxu0 %v491
      %v1348 = vpop.f32.mrf.mxu0
      %v1349 = vadd.f32 %v1236, %v1348
      %1350 = vmatmul.f32.gmra.mxu0 %v500
      %v1351 = vpop.f32.mrf.mxu0
      %v1352 = vadd.f32 %v1239, %v1351
      %1353 = vmatmul.f32.gmra.mxu0 %v509
      %v1354 = vpop.f32.mrf.mxu0
      %v1355 = vadd.f32 %v1242, %v1354
      %1356 = vmatmul.f32.gmra.mxu0 %v518
      %v1357 = vpop.f32.mrf.mxu0
      %v1358 = vadd.f32 %v1245, %v1357
      %1359 = vmatmul.f32.gmra.mxu0 %v527
      %v1360 = vpop.f32.mrf.mxu0
      %v1361 = vadd.f32 %v1248, %v1360
      %1362 = vmatmul.f32.gmra.mxu0 %v536
      %v1363 = vpop.f32.mrf.mxu0
      %v1364 = vadd.f32 %v1251, %v1363
      %1365 = vdwg.mxu0
      %1366 = vmatpush.msra.mxu0 %v651
      %1367 = vmatpush.msra.mxu0 %v650
      %1368 = vmatpush.msra.mxu0 %v649
      %1369 = vmatpush.msra.mxu0 %v648
      %1370 = vmatpush.msra.mxu0 %v647
      %1371 = vmatpush.msra.mxu0 %v646
      %1372 = vmatpush.msra.mxu0 %v645
      %1373 = vmatpush.msra.mxu0 %v644
      %1374 = vmatpush.msra.mxu0 %v643
      %1375 = vmatpush.msra.mxu0 %v642
      %1376 = vmatpush.msra.mxu0 %v641
      %1377 = vmatpush.msra.mxu0 %v640
      %1378 = vmatpush.msra.mxu0 %v639
      %1379 = vmatpush.msra.mxu0 %v638
      %1380 = vmatpush.msra.mxu0 %v637
      %1381 = vmatpush.msra.mxu0 %v636
      %1382 = vmatmul.f32.gmra.mxu0 %v258
      %v1383 = vpop.f32.mrf.mxu0
      %v1384 = vadd.f32 %v1271, %v1383
      %1385 = vmatmul.f32.gmra.mxu0 %v267
      %v1386 = vpop.f32.mrf.mxu0
      %v1387 = vadd.f32 %v1274, %v1386
      %1388 = vmatmul.f32.gmra.mxu0 %v276
      %v1389 = vpop.f32.mrf.mxu0
      %v1390 = vadd.f32 %v1277, %v1389
      %1391 = vmatmul.f32.gmra.mxu0 %v285
      %v1392 = vpop.f32.mrf.mxu0
      %v1393 = vadd.f32 %v1280, %v1392
      %1394 = vmatmul.f32.gmra.mxu0 %v294
      %v1395 = vpop.f32.mrf.mxu0
      %v1396 = vadd.f32 %v1283, %v1395
      %1397 = vmatmul.f32.gmra.mxu0 %v303
      %v1398 = vpop.f32.mrf.mxu0
      %v1399 = vadd.f32 %v1286, %v1398
      %1400 = vmatmul.f32.gmra.mxu0 %v312
      %v1401 = vpop.f32.mrf.mxu0
      %v1402 = vadd.f32 %v1289, %v1401
      %1403 = vmatmul.f32.gmra.mxu0 %v321
      %v1404 = vpop.f32.mrf.mxu0
      %v1405 = vadd.f32 %v1292, %v1404
      %1406 = vmatmul.f32.gmra.mxu0 %v330
      %v1407 = vpop.f32.mrf.mxu0
      %v1408 = vadd.f32 %v1295, %v1407
      %1409 = vmatmul.f32.gmra.mxu0 %v339
      %v1410 = vpop.f32.mrf.mxu0
      %v1411 = vadd.f32 %v1298, %v1410
      %1412 = vmatmul.f32.gmra.mxu0 %v348
      %v1413 = vpop.f32.mrf.mxu0
      %v1414 = vadd.f32 %v1301, %v1413
      %1415 = vmatmul.f32.gmra.mxu0 %v357
      %v1416 = vpop.f32.mrf.mxu0
      %v1417 = vadd.f32 %v1304, %v1416
      %1418 = vmatmul.f32.gmra.mxu0 %v366
      %v1419 = vpop.f32.mrf.mxu0
      %v1420 = vadd.f32 %v1307, %v1419
      %1421 = vmatmul.f32.gmra.mxu0 %v375
      %v1422 = vpop.f32.mrf.mxu0
      %v1423 = vadd.f32 %v1310, %v1422
      %1424 = vmatmul.f32.gmra.mxu0 %v384
      %v1425 = vpop.f32.mrf.mxu0
      %v1426 = vadd.f32 %v1313, %v1425
      %1427 = vmatmul.f32.gmra.mxu0 %v393
      %v1428 = vpop.f32.mrf.mxu0
      %v1429 = vadd.f32 %v1316, %v1428
      %1430 = vmatmul.f32.gmra.mxu0 %v402
      %v1431 = vpop.f32.mrf.mxu0
      %v1432 = vadd.f32 %v1319, %v1431
      %1433 = vmatmul.f32.gmra.mxu0 %v411
      %v1434 = vpop.f32.mrf.mxu0
      %v1435 = vadd.f32 %v1322, %v1434
      %1436 = vmatmul.f32.gmra.mxu0 %v420
      %v1437 = vpop.f32.mrf.mxu0
      %v1438 = vadd.f32 %v1325, %v1437
      %1439 = vmatmul.f32.gmra.mxu0 %v429
      %v1440 = vpop.f32.mrf.mxu0
      %v1441 = vadd.f32 %v1328, %v1440
      %1442 = vmatmul.f32.gmra.mxu0 %v438
      %v1443 = vpop.f32.mrf.mxu0
      %v1444 = vadd.f32 %v1331, %v1443
      %1445 = vmatmul.f32.gmra.mxu0 %v447
      %v1446 = vpop.f32.mrf.mxu0
      %v1447 = vadd.f32 %v1334, %v1446
      %1448 = vmatmul.f32.gmra.mxu0 %v456
      %v1449 = vpop.f32.mrf.mxu0
      %v1450 = vadd.f32 %v1337, %v1449
      %1451 = vmatmul.f32.gmra.mxu0 %v465
      %v1452 = vpop.f32.mrf.mxu0
      %v1453 = vadd.f32 %v1340, %v1452
      %1454 = vmatmul.f32.gmra.mxu0 %v474
      %v1455 = vpop.f32.mrf.mxu0
      %v1456 = vadd.f32 %v1343, %v1455
      %1457 = vmatmul.f32.gmra.mxu0 %v483
      %v1458 = vpop.f32.mrf.mxu0
      %v1459 = vadd.f32 %v1346, %v1458
      %1460 = vmatmul.f32.gmra.mxu0 %v492
      %v1461 = vpop.f32.mrf.mxu0
      %v1462 = vadd.f32 %v1349, %v1461
      %1463 = vmatmul.f32.gmra.mxu0 %v501
      %v1464 = vpop.f32.mrf.mxu0
      %v1465 = vadd.f32 %v1352, %v1464
      %1466 = vmatmul.f32.gmra.mxu0 %v510
      %v1467 = vpop.f32.mrf.mxu0
      %v1468 = vadd.f32 %v1355, %v1467
      %1469 = vmatmul.f32.gmra.mxu0 %v519
      %v1470 = vpop.f32.mrf.mxu0
      %v1471 = vadd.f32 %v1358, %v1470
      %1472 = vmatmul.f32.gmra.mxu0 %v528
      %v1473 = vpop.f32.mrf.mxu0
      %v1474 = vadd.f32 %v1361, %v1473
      %1475 = vmatmul.f32.gmra.mxu0 %v537
      %v1476 = vpop.f32.mrf.mxu0
      %v1477 = vadd.f32 %v1364, %v1476
      %1478 = vdwg.mxu0
      %1479 = vmatpush.msra.mxu0 %v667
      %1480 = vmatpush.msra.mxu0 %v666
      %1481 = vmatpush.msra.mxu0 %v665
      %1482 = vmatpush.msra.mxu0 %v664
      %1483 = vmatpush.msra.mxu0 %v663
      %1484 = vmatpush.msra.mxu0 %v662
      %1485 = vmatpush.msra.mxu0 %v661
      %1486 = vmatpush.msra.mxu0 %v660
      %1487 = vmatpush.msra.mxu0 %v659
      %1488 = vmatpush.msra.mxu0 %v658
      %1489 = vmatpush.msra.mxu0 %v657
      %1490 = vmatpush.msra.mxu0 %v656
      %1491 = vmatpush.msra.mxu0 %v655
      %1492 = vmatpush.msra.mxu0 %v654
      %1493 = vmatpush.msra.mxu0 %v653
      %1494 = vmatpush.msra.mxu0 %v652
      %1495 = vmatmul.f32.gmra.mxu0 %v259
      %v1496 = vpop.f32.mrf.mxu0
      %v1497 = vadd.f32 %v1384, %v1496
      %1498 = vmatmul.f32.gmra.mxu0 %v268
      %v1499 = vpop.f32.mrf.mxu0
      %v1500 = vadd.f32 %v1387, %v1499
      %1501 = vmatmul.f32.gmra.mxu0 %v277
      %v1502 = vpop.f32.mrf.mxu0
      %v1503 = vadd.f32 %v1390, %v1502
      %1504 = vmatmul.f32.gmra.mxu0 %v286
      %v1505 = vpop.f32.mrf.mxu0
      %v1506 = vadd.f32 %v1393, %v1505
      %1507 = vmatmul.f32.gmra.mxu0 %v295
      %v1508 = vpop.f32.mrf.mxu0
      %v1509 = vadd.f32 %v1396, %v1508
      %1510 = vmatmul.f32.gmra.mxu0 %v304
      %v1511 = vpop.f32.mrf.mxu0
      %v1512 = vadd.f32 %v1399, %v1511
      %1513 = vmatmul.f32.gmra.mxu0 %v313
      %v1514 = vpop.f32.mrf.mxu0
      %v1515 = vadd.f32 %v1402, %v1514
      %1516 = vmatmul.f32.gmra.mxu0 %v322
      %v1517 = vpop.f32.mrf.mxu0
      %v1518 = vadd.f32 %v1405, %v1517
      %1519 = vmatmul.f32.gmra.mxu0 %v331
      %v1520 = vpop.f32.mrf.mxu0
      %v1521 = vadd.f32 %v1408, %v1520
      %1522 = vmatmul.f32.gmra.mxu0 %v340
      %v1523 = vpop.f32.mrf.mxu0
      %v1524 = vadd.f32 %v1411, %v1523
      %1525 = vmatmul.f32.gmra.mxu0 %v349
      %v1526 = vpop.f32.mrf.mxu0
      %v1527 = vadd.f32 %v1414, %v1526
      %1528 = vmatmul.f32.gmra.mxu0 %v358
      %v1529 = vpop.f32.mrf.mxu0
      %v1530 = vadd.f32 %v1417, %v1529
      %1531 = vmatmul.f32.gmra.mxu0 %v367
      %v1532 = vpop.f32.mrf.mxu0
      %v1533 = vadd.f32 %v1420, %v1532
      %1534 = vmatmul.f32.gmra.mxu0 %v376
      %v1535 = vpop.f32.mrf.mxu0
      %v1536 = vadd.f32 %v1423, %v1535
      %1537 = vmatmul.f32.gmra.mxu0 %v385
      %v1538 = vpop.f32.mrf.mxu0
      %v1539 = vadd.f32 %v1426, %v1538
      %1540 = vmatmul.f32.gmra.mxu0 %v394
      %v1541 = vpop.f32.mrf.mxu0
      %v1542 = vadd.f32 %v1429, %v1541
      %1543 = vmatmul.f32.gmra.mxu0 %v403
      %v1544 = vpop.f32.mrf.mxu0
      %v1545 = vadd.f32 %v1432, %v1544
      %1546 = vmatmul.f32.gmra.mxu0 %v412
      %v1547 = vpop.f32.mrf.mxu0
      %v1548 = vadd.f32 %v1435, %v1547
      %1549 = vmatmul.f32.gmra.mxu0 %v421
      %v1550 = vpop.f32.mrf.mxu0
      %v1551 = vadd.f32 %v1438, %v1550
      %1552 = vmatmul.f32.gmra.mxu0 %v430
      %v1553 = vpop.f32.mrf.mxu0
      %v1554 = vadd.f32 %v1441, %v1553
      %1555 = vmatmul.f32.gmra.mxu0 %v439
      %v1556 = vpop.f32.mrf.mxu0
      %v1557 = vadd.f32 %v1444, %v1556
      %1558 = vmatmul.f32.gmra.mxu0 %v448
      %v1559 = vpop.f32.mrf.mxu0
      %v1560 = vadd.f32 %v1447, %v1559
      %1561 = vmatmul.f32.gmra.mxu0 %v457
      %v1562 = vpop.f32.mrf.mxu0
      %v1563 = vadd.f32 %v1450, %v1562
      %1564 = vmatmul.f32.gmra.mxu0 %v466
      %v1565 = vpop.f32.mrf.mxu0
      %v1566 = vadd.f32 %v1453, %v1565
      %1567 = vmatmul.f32.gmra.mxu0 %v475
      %v1568 = vpop.f32.mrf.mxu0
      %v1569 = vadd.f32 %v1456, %v1568
      %1570 = vmatmul.f32.gmra.mxu0 %v484
      %v1571 = vpop.f32.mrf.mxu0
      %v1572 = vadd.f32 %v1459, %v1571
      %1573 = vmatmul.f32.gmra.mxu0 %v493
      %v1574 = vpop.f32.mrf.mxu0
      %v1575 = vadd.f32 %v1462, %v1574
      %1576 = vmatmul.f32.gmra.mxu0 %v502
      %v1577 = vpop.f32.mrf.mxu0
      %v1578 = vadd.f32 %v1465, %v1577
      %1579 = vmatmul.f32.gmra.mxu0 %v511
      %v1580 = vpop.f32.mrf.mxu0
      %v1581 = vadd.f32 %v1468, %v1580
      %1582 = vmatmul.f32.gmra.mxu0 %v520
      %v1583 = vpop.f32.mrf.mxu0
      %v1584 = vadd.f32 %v1471, %v1583
      %1585 = vmatmul.f32.gmra.mxu0 %v529
      %v1586 = vpop.f32.mrf.mxu0
      %v1587 = vadd.f32 %v1474, %v1586
      %1588 = vmatmul.f32.gmra.mxu0 %v538
      %v1589 = vpop.f32.mrf.mxu0
      %v1590 = vadd.f32 %v1477, %v1589
      %1591 = vdwg.mxu0
      %1592 = vmatpush.msra.mxu0 %v683
      %1593 = vmatpush.msra.mxu0 %v682
      %1594 = vmatpush.msra.mxu0 %v681
      %1595 = vmatpush.msra.mxu0 %v680
      %1596 = vmatpush.msra.mxu0 %v679
      %1597 = vmatpush.msra.mxu0 %v678
      %1598 = vmatpush.msra.mxu0 %v677
      %1599 = vmatpush.msra.mxu0 %v676
      %1600 = vmatpush.msra.mxu0 %v675
      %1601 = vmatpush.msra.mxu0 %v674
      %1602 = vmatpush.msra.mxu0 %v673
      %1603 = vmatpush.msra.mxu0 %v672
      %1604 = vmatpush.msra.mxu0 %v671
      %1605 = vmatpush.msra.mxu0 %v670
      %1606 = vmatpush.msra.mxu0 %v669
      %1607 = vmatpush.msra.mxu0 %v668
      %1608 = vmatmul.f32.gmra.mxu0 %v260
      %v1609 = vpop.f32.mrf.mxu0
      %v1610 = vadd.f32 %v1497, %v1609
      %1611 = vmatmul.f32.gmra.mxu0 %v269
      %v1612 = vpop.f32.mrf.mxu0
      %v1613 = vadd.f32 %v1500, %v1612
      %1614 = vmatmul.f32.gmra.mxu0 %v278
      %v1615 = vpop.f32.mrf.mxu0
      %v1616 = vadd.f32 %v1503, %v1615
      %1617 = vmatmul.f32.gmra.mxu0 %v287
      %v1618 = vpop.f32.mrf.mxu0
      %v1619 = vadd.f32 %v1506, %v1618
      %1620 = vmatmul.f32.gmra.mxu0 %v296
      %v1621 = vpop.f32.mrf.mxu0
      %v1622 = vadd.f32 %v1509, %v1621
      %1623 = vmatmul.f32.gmra.mxu0 %v305
      %v1624 = vpop.f32.mrf.mxu0
      %v1625 = vadd.f32 %v1512, %v1624
      %1626 = vmatmul.f32.gmra.mxu0 %v314
      %v1627 = vpop.f32.mrf.mxu0
      %v1628 = vadd.f32 %v1515, %v1627
      %1629 = vmatmul.f32.gmra.mxu0 %v323
      %v1630 = vpop.f32.mrf.mxu0
      %v1631 = vadd.f32 %v1518, %v1630
      %1632 = vmatmul.f32.gmra.mxu0 %v332
      %v1633 = vpop.f32.mrf.mxu0
      %v1634 = vadd.f32 %v1521, %v1633
      %1635 = vmatmul.f32.gmra.mxu0 %v341
      %v1636 = vpop.f32.mrf.mxu0
      %v1637 = vadd.f32 %v1524, %v1636
      %1638 = vmatmul.f32.gmra.mxu0 %v350
      %v1639 = vpop.f32.mrf.mxu0
      %v1640 = vadd.f32 %v1527, %v1639
      %1641 = vmatmul.f32.gmra.mxu0 %v359
      %v1642 = vpop.f32.mrf.mxu0
      %v1643 = vadd.f32 %v1530, %v1642
      %1644 = vmatmul.f32.gmra.mxu0 %v368
      %v1645 = vpop.f32.mrf.mxu0
      %v1646 = vadd.f32 %v1533, %v1645
      %1647 = vmatmul.f32.gmra.mxu0 %v377
      %v1648 = vpop.f32.mrf.mxu0
      %v1649 = vadd.f32 %v1536, %v1648
      %1650 = vmatmul.f32.gmra.mxu0 %v386
      %v1651 = vpop.f32.mrf.mxu0
      %v1652 = vadd.f32 %v1539, %v1651
      %1653 = vmatmul.f32.gmra.mxu0 %v395
      %v1654 = vpop.f32.mrf.mxu0
      %v1655 = vadd.f32 %v1542, %v1654
      %1656 = vmatmul.f32.gmra.mxu0 %v404
      %v1657 = vpop.f32.mrf.mxu0
      %v1658 = vadd.f32 %v1545, %v1657
      %1659 = vmatmul.f32.gmra.mxu0 %v413
      %v1660 = vpop.f32.mrf.mxu0
      %v1661 = vadd.f32 %v1548, %v1660
      %1662 = vmatmul.f32.gmra.mxu0 %v422
      %v1663 = vpop.f32.mrf.mxu0
      %v1664 = vadd.f32 %v1551, %v1663
      %1665 = vmatmul.f32.gmra.mxu0 %v431
      %v1666 = vpop.f32.mrf.mxu0
      %v1667 = vadd.f32 %v1554, %v1666
      %1668 = vmatmul.f32.gmra.mxu0 %v440
      %v1669 = vpop.f32.mrf.mxu0
      %v1670 = vadd.f32 %v1557, %v1669
      %1671 = vmatmul.f32.gmra.mxu0 %v449
      %v1672 = vpop.f32.mrf.mxu0
      %v1673 = vadd.f32 %v1560, %v1672
      %1674 = vmatmul.f32.gmra.mxu0 %v458
      %v1675 = vpop.f32.mrf.mxu0
      %v1676 = vadd.f32 %v1563, %v1675
      %1677 = vmatmul.f32.gmra.mxu0 %v467
      %v1678 = vpop.f32.mrf.mxu0
      %v1679 = vadd.f32 %v1566, %v1678
      %1680 = vmatmul.f32.gmra.mxu0 %v476
      %v1681 = vpop.f32.mrf.mxu0
      %v1682 = vadd.f32 %v1569, %v1681
      %1683 = vmatmul.f32.gmra.mxu0 %v485
      %v1684 = vpop.f32.mrf.mxu0
      %v1685 = vadd.f32 %v1572, %v1684
      %1686 = vmatmul.f32.gmra.mxu0 %v494
      %v1687 = vpop.f32.mrf.mxu0
      %v1688 = vadd.f32 %v1575, %v1687
      %1689 = vmatmul.f32.gmra.mxu0 %v503
      %v1690 = vpop.f32.mrf.mxu0
      %v1691 = vadd.f32 %v1578, %v1690
      %1692 = vmatmul.f32.gmra.mxu0 %v512
      %v1693 = vpop.f32.mrf.mxu0
      %v1694 = vadd.f32 %v1581, %v1693
      %1695 = vmatmul.f32.gmra.mxu0 %v521
      %v1696 = vpop.f32.mrf.mxu0
      %v1697 = vadd.f32 %v1584, %v1696
      %1698 = vmatmul.f32.gmra.mxu0 %v530
      %v1699 = vpop.f32.mrf.mxu0
      %v1700 = vadd.f32 %v1587, %v1699
      %1701 = vmatmul.f32.gmra.mxu0 %v539
      %v1702 = vpop.f32.mrf.mxu0
      %v1703 = vadd.f32 %v1590, %v1702
      %1704 = vdwg.mxu0
      %1705 = vst [vmem:[%s242] sm:$0xff] %v1610
      %1706 = vst [vmem:[%s242 + $0x8] sm:$0xff] %v1613
      %1707 = vst [vmem:[%s242 + $0x10] sm:$0xff] %v1616
      %1708 = vst [vmem:[%s242 + $0x18] sm:$0xff] %v1619
      %1709 = vst [vmem:[%s242 + $0x20] sm:$0xff] %v1622
      %1710 = vst [vmem:[%s242 + $0x28] sm:$0xff] %v1625
      %1711 = vst [vmem:[%s242 + $0x30] sm:$0xff] %v1628
      %1712 = vst [vmem:[%s242 + $0x38] sm:$0xff] %v1631
      %1713 = vst [vmem:[%s242 + $0x40] sm:$0xff] %v1634
      %1714 = vst [vmem:[%s242 + $0x48] sm:$0xff] %v1637
      %1715 = vst [vmem:[%s242 + $0x50] sm:$0xff] %v1640
      %1716 = vst [vmem:[%s242 + $0x58] sm:$0xff] %v1643
      %1717 = vst [vmem:[%s242 + $0x60] sm:$0xff] %v1646
      %1718 = vst [vmem:[%s242 + $0x68] sm:$0xff] %v1649
      %1719 = vst [vmem:[%s242 + $0x70] sm:$0xff] %v1652
      %1720 = vst [vmem:[%s242 + $0x78] sm:$0xff] %v1655
      %1721 = vst [vmem:[%s242 + $0x80] sm:$0xff] %v1658
      %1722 = vst [vmem:[%s242 + $0x88] sm:$0xff] %v1661
      %1723 = vst [vmem:[%s242 + $0x90] sm:$0xff] %v1664
      %1724 = vst [vmem:[%s242 + $0x98] sm:$0xff] %v1667
      %1725 = vst [vmem:[%s242 + $0xa0] sm:$0xff] %v1670
      %1726 = vst [vmem:[%s242 + $0xa8] sm:$0xff] %v1673
      %1727 = vst [vmem:[%s242 + $0xb0] sm:$0xff] %v1676
      %1728 = vst [vmem:[%s242 + $0xb8] sm:$0xff] %v1679
      %1729 = vst [vmem:[%s242 + $0xc0] sm:$0xff] %v1682
      %1730 = vst [vmem:[%s242 + $0xc8] sm:$0xff] %v1685
      %1731 = vst [vmem:[%s242 + $0xd0] sm:$0xff] %v1688
      %1732 = vst [vmem:[%s242 + $0xd8] sm:$0xff] %v1691
      %1733 = vst [vmem:[%s242 + $0xe0] sm:$0xff] %v1694
      %1734 = vst [vmem:[%s242 + $0xe8] sm:$0xff] %v1697
      %1735 = vst [vmem:[%s242 + $0xf0] sm:$0xff] %v1700
      %1736 = vst [vmem:[%s242 + $0xf8] sm:$0xff] %v1703
      %v1737 = vadd.f32 %v1610, %v1613
      %v1738 = vadd.f32 %v1737, %v1616
      %v1739 = vadd.f32 %v1738, %v1619
      %v1740 = vadd.f32 %v1739, %v1622
      %v1741 = vadd.f32 %v1740, %v1625
      %v1742 = vadd.f32 %v1741, %v1628
      %v1743 = vadd.f32 %v1742, %v1631
      %v1744 = vadd.f32 %v1743, %v1634
      %v1745 = vadd.f32 %v1744, %v1637
      %v1746 = vadd.f32 %v1745, %v1640
      %v1747 = vadd.f32 %v1746, %v1643
      %v1748 = vadd.f32 %v1747, %v1646
      %v1749 = vadd.f32 %v1748, %v1649
      %v1750 = vadd.f32 %v1749, %v1652
      %v1751 = vadd.f32 %v1750, %v1655
      %v1752 = vadd.f32 %v1751, %v1658
      %v1753 = vadd.f32 %v1752, %v1661
      %v1754 = vadd.f32 %v1753, %v1664
      %v1755 = vadd.f32 %v1754, %v1667
      %v1756 = vadd.f32 %v1755, %v1670
      %v1757 = vadd.f32 %v1756, %v1673
      %v1758 = vadd.f32 %v1757, %v1676
      %v1759 = vadd.f32 %v1758, %v1679
      %v1760 = vadd.f32 %v1759, %v1682
      %v1761 = vadd.f32 %v1760, %v1685
      %v1762 = vadd.f32 %v1761, %v1688
      %v1763 = vadd.f32 %v1762, %v1691
      %v1764 = vadd.f32 %v1763, %v1694
      %v1765 = vadd.f32 %v1764, %v1697
      %v1766 = vadd.f32 %v1765, %v1700
      %v1767 = vadd.f32 %v1766, %v1703
      %v1768 = vrot.slane %v1767, 4
      %v1769 = vadd.f32 %v1767, %v1768
      %v1770 = vrot.slane %v1769, 2
      %v1771 = vadd.f32 %v1769, %v1770
      %v1772 = vrot.slane %v1771, 1
      %v1773 = vadd.f32 %v1771, %v1772
      %v1774 = vmul.f32 %v1610, %v1610
      %v1775 = vmul.f32 %v1613, %v1613
      %v1776 = vmul.f32 %v1616, %v1616
      %v1777 = vmul.f32 %v1619, %v1619
      %v1778 = vmul.f32 %v1622, %v1622
      %v1779 = vmul.f32 %v1625, %v1625
      %v1780 = vmul.f32 %v1628, %v1628
      %v1781 = vmul.f32 %v1631, %v1631
      %v1782 = vmul.f32 %v1634, %v1634
      %v1783 = vmul.f32 %v1637, %v1637
      %v1784 = vmul.f32 %v1640, %v1640
      %v1785 = vmul.f32 %v1643, %v1643
      %v1786 = vmul.f32 %v1646, %v1646
      %v1787 = vmul.f32 %v1649, %v1649
      %v1788 = vmul.f32 %v1652, %v1652
      %v1789 = vmul.f32 %v1655, %v1655
      %v1790 = vmul.f32 %v1658, %v1658
      %v1791 = vmul.f32 %v1661, %v1661
      %v1792 = vmul.f32 %v1664, %v1664
      %v1793 = vmul.f32 %v1667, %v1667
      %v1794 = vmul.f32 %v1670, %v1670
      %v1795 = vmul.f32 %v1673, %v1673
      %v1796 = vmul.f32 %v1676, %v1676
      %v1797 = vmul.f32 %v1679, %v1679
      %v1798 = vmul.f32 %v1682, %v1682
      %v1799 = vmul.f32 %v1685, %v1685
      %v1800 = vmul.f32 %v1688, %v1688
      %v1801 = vmul.f32 %v1691, %v1691
      %v1802 = vmul.f32 %v1694, %v1694
      %v1803 = vmul.f32 %v1697, %v1697
      %v1804 = vmul.f32 %v1700, %v1700
      %v1805 = vmul.f32 %v1703, %v1703
      %v1806 = vadd.f32 %v1774, %v1775
      %v1807 = vadd.f32 %v1806, %v1776
      %v1808 = vadd.f32 %v1807, %v1777
      %v1809 = vadd.f32 %v1808, %v1778
      %v1810 = vadd.f32 %v1809, %v1779
      %v1811 = vadd.f32 %v1810, %v1780
      %v1812 = vadd.f32 %v1811, %v1781
      %v1813 = vadd.f32 %v1812, %v1782
      %v1814 = vadd.f32 %v1813, %v1783
      %v1815 = vadd.f32 %v1814, %v1784
      %v1816 = vadd.f32 %v1815, %v1785
      %v1817 = vadd.f32 %v1816, %v1786
      %v1818 = vadd.f32 %v1817, %v1787
      %v1819 = vadd.f32 %v1818, %v1788
      %v1820 = vadd.f32 %v1819, %v1789
      %v1821 = vadd.f32 %v1820, %v1790
      %v1822 = vadd.f32 %v1821, %v1791
      %v1823 = vadd.f32 %v1822, %v1792
      %v1824 = vadd.f32 %v1823, %v1793
      %v1825 = vadd.f32 %v1824, %v1794
      %v1826 = vadd.f32 %v1825, %v1795
      %v1827 = vadd.f32 %v1826, %v1796
      %v1828 = vadd.f32 %v1827, %v1797
      %v1829 = vadd.f32 %v1828, %v1798
      %v1830 = vadd.f32 %v1829, %v1799
      %v1831 = vadd.f32 %v1830, %v1800
      %v1832 = vadd.f32 %v1831, %v1801
      %v1833 = vadd.f32 %v1832, %v1802
      %v1834 = vadd.f32 %v1833, %v1803
      %v1835 = vadd.f32 %v1834, %v1804
      %v1836 = vadd.f32 %v1835, %v1805
      %v1837 = vrot.slane %v1836, 4
      %v1838 = vadd.f32 %v1836, %v1837
      %v1839 = vrot.slane %v1838, 2
      %v1840 = vadd.f32 %v1838, %v1839
      %v1841 = vrot.slane %v1840, 1
      %v1842 = vadd.f32 %v1840, %v1841
      %v1843 = vlaneseq
      %v1844 = vshrl.u32 %v1843, 7
      %vm1845 = vcmp.eq.s32.totalorder %v1844, 0
      %v1846 = vsel %vm1845, %v1773, 0.0
      %1847 = vst [vmem:[%s247] sm:$0xff] %v1846
      %v1848 = vsel %vm1845, %v1842, 0.0
      %1849 = vst [vmem:[%s251] sm:$0xff] %v1848
      %s1850 = smul.u32 32, %s17
      %p1851 = scmp.lt.s32.totalorder %s1850, 63
      %s1852 = scalar_select %p1851, %s1850, 63
      %s1853 = smul.addr %s1852, 8
      %s1854 = scalar_lea.vmem %s3, %s1853
      %p1855 = scmp.lt.s32.totalorder %s17, 1
      %s1856 = scalar_select %p1855, %s17, 1
      %s1857 = smul.addr %s1856, 8
      %s1858 = scalar_lea.vmem %s4, %s1857
      %p1859 = scmp.lt.s32.totalorder %s17, 1
      %s1860 = scalar_select %p1859, %s17, 1
      %s1861 = smul.addr %s1860, 8
      %s1862 = scalar_lea.vmem %s5, %s1861
      // Predicated region
      $region33: #{double_conv_forward.4} parent=31 // pred_check
        %p1863 = pneg %p103
      $region34: #{double_conv_forward.4} parent=31 // pred_check_branch
        %1865 = sbr.rel (%p1863) target = $region36
      $region35: #{double_conv_forward.4} parent=31 // pred_region
        %s1866 = smul.u32 32, %s17
      $region36: #{double_conv_forward.4} parent=31 // pred_fallthru
        _
      // Predicated region
      $region37: #{double_conv_forward.4} parent=31 // pred_check
        %p1867 = pneg %p129
      $region38: #{double_conv_forward.4} parent=31 // pred_check_branch
        %1869 = sbr.rel (%p1867) target = $region40
      $region39: #{double_conv_forward.4} parent=31 // pred_region
        _
      $region40: #{double_conv_forward.4} parent=31 // pred_fallthru
        _
      // Predicated region
      $region41: #{double_conv_forward.4} parent=31 // pred_check
        %p1870 = pneg %p155
      $region42: #{double_conv_forward.4} parent=31 // pred_check_branch
        %1872 = sbr.rel (%p1870) target = $region44
      $region43: #{double_conv_forward.4} parent=31 // pred_region
        _
      $region44: #{double_conv_forward.4} parent=31 // pred_fallthru
        _
    $region32: #{double_conv_forward.4} parent=5 // pred_fallthru
      _
    %p1873 = scmp.le.s32.totalorder 2, %s12
    // Predicated region
    $region45: #{double_conv_forward.4} parent=5 // pred_check
      %p1874 = pneg %p1873
    $region46: #{double_conv_forward.4} parent=5 // pred_check_branch
      %1876 = sbr.rel (%p1874) target = $region48
    $region47: #{double_conv_forward.4} parent=5 // pred_region
      %s1877 = ssub.s32 %s12, 2
      // Predicated region
      $region49: #{double_conv_forward.4} parent=47 // pred_check
        %p1878 = pneg %p109
      $region50: #{double_conv_forward.4} parent=47 // pred_check_branch
        %1880 = sbr.rel (%p1878) target = $region52
      $region51: #{double_conv_forward.4} parent=47 // pred_region
        %s1881 = smul.u32 32, %s18
        %p1882 = scmp.lt.s32.totalorder %s1881, 63
        %s1883 = scalar_select %p1882, %s1881, 63
        %s1884 = smul.addr %s1883, 8
        %s1885 = scalar_lea.vmem %s3, %s1884
      $region52: #{double_conv_forward.4} parent=47 // pred_fallthru
        _
      // Predicated region
      $region53: #{double_conv_forward.4} parent=47 // pred_check
        %p1886 = pneg %p135
      $region54: #{double_conv_forward.4} parent=47 // pred_check_branch
        %1888 = sbr.rel (%p1886) target = $region56
      $region55: #{double_conv_forward.4} parent=47 // pred_region
        %p1889 = scmp.lt.s32.totalorder %s18, 1
        %s1890 = scalar_select %p1889, %s18, 1
        %s1891 = smul.addr %s1890, 8
        %s1892 = scalar_lea.vmem %s4, %s1891
      $region56: #{double_conv_forward.4} parent=47 // pred_fallthru
        _
      // Predicated region
      $region57: #{double_conv_forward.4} parent=47 // pred_check
        %p1893 = pneg %p161
      $region58: #{double_conv_forward.4} parent=47 // pred_check_branch
        %1895 = sbr.rel (%p1893) target = $region60
      $region59: #{double_conv_forward.4} parent=47 // pred_region
        %p1896 = scmp.lt.s32.totalorder %s18, 1
        %s1897 = scalar_select %p1896, %s18, 1
        %s1898 = smul.addr %s1897, 8
        %s1899 = scalar_lea.vmem %s5, %s1898
      $region60: #{double_conv_forward.4} parent=47 // pred_fallthru
        _
    $region48: #{double_conv_forward.4} parent=5 // pred_fallthru
      _
  $region6: #{double_conv_forward.4} parent=0 // loop_footer
    %s16 = sadd.s32 1, %s12
  $region7: #{double_conv_forward.4} parent=0 // loop_footer_branch
    %11 = sbr.rel target = $region3
  $region8: #{double_conv_forward.4} parent=0 // loop_exit
    _

</llo_original>
